<compile_context>
chip_gen: v7x
topology: tpu7x:2x2x1
jax: 0.10.0
libtpu: 0.0.40
codegen_flags: <defaults>
</compile_context>

<pallas_src>
import functools

import jax
import jax.numpy as jnp
from jax import lax
from jax.experimental import pallas as pl
from jax.experimental.pallas import tpu as pltpu


def _global_pointer_kernel(x_ref, w_ref, b_ref, cs_ref, amk_ref, colpen_ref,
                           tril_ref, out_ref, *, eb, inner_dim):
    """One grid step = one batch element x one block of `eb` entity types.

    x_ref:      (1, S, H)    bf16 hidden states
    w_ref:      (Eb, H, 2D)  bf16, half-split-permuted, q cols pre-scaled by 1/sqrt(D)
    b_ref:      (Eb, 1, 2D)  f32  bias, same permute/scale
    cs_ref:     (S, 2D)      f32  [cos|cos | -sin|+sin] packed lane-dense
    amk_ref:    (1, S, 1)    f32  binary pad mask as a column (folded into k)
    colpen_ref: (1, 1, S)    f32  additive key-column penalty  -(1-am)*1e12/sqrt(D)
    tril_ref:   (S, S)       f32  resident strictly-lower-tri penalty tril*1e12/sqrt(D)
    out_ref:    (1, Eb, S, S)
    """
    D = inner_dim

    x = x_ref[0]                      # (S, H)   bf16
    cs = cs_ref[...]                  # (S, 2D)  f32
    cos = cs[:, :D]
    sin = cs[:, D:]                   # sign already folded in
    amk = amk_ref[0]                  # (S, 1)   f32

    def rope(t):                      # half-split RoPE: 1 XLU roll, 2 muls, 1 add
        return t * cos + pltpu.roll(t, D // 2, axis=1) * sin

    for ee in range(eb):              # static unroll over entity types in this block
        # small per-entity projection (f32 accumulation on the MXU)
        qk = jnp.dot(x, w_ref[ee], preferred_element_type=jnp.float32) + b_ref[ee]
        q = rope(qk[:, :D]).astype(jnp.bfloat16)            # 1/sqrt(D) pre-folded
        k = (rope(qk[:, D:]) * amk).astype(jnp.bfloat16)    # pad mask folded into k
        raw = lax.dot_general(q, k, dimension_numbers=(((1,), (1,)), ((), ())),
                              preferred_element_type=jnp.float32)   # (S, S)
        # epilogue: 2 adds over (S, S) — column penalty broadcast + resident tril
        out_ref[0, ee] = (raw + colpen_ref[0] - tril_ref[...]).astype(out_ref.dtype)


def _pick_entity_block(ent_type_size, seq_len, out_itemsize, budget_bytes=8 << 20):
    """Largest divisor Eb of E whose double-buffered output block fits the budget."""
    for eb in range(ent_type_size, 0, -1):
        if ent_type_size % eb == 0 and 2 * eb * seq_len * seq_len * out_itemsize <= budget_bytes:
            return eb
    return 1


@functools.partial(jax.jit, static_argnames=("ent_type_size", "inner_dim", "out_dtype"))
def raw_global_pointer(last_hidden_state, attention_mask, weight_t, bias, *,
                       ent_type_size, inner_dim, out_dtype=jnp.float32):
    """Pallas implementation of RawGlobalPointer.forward (RoPE=True, tril_mask=True).

    last_hidden_state: (B, S, H); attention_mask: (B, S) binary {0,1};
    weight_t: (H, E*2*D) (nn.Linear weight, pre-transposed); bias: (E*2*D,).
    Returns logits (B, E, S, S) in `out_dtype` (bf16 output is an option for
    write-bound deployments, default f32 matches the PyTorch reference).
    """
    B, S, H = last_hidden_state.shape
    E, D = ent_type_size, inner_dim
    assert weight_t.shape == (H, E * 2 * D)
    assert bias.shape == (E * 2 * D,)
    assert D % 2 == 0

    f32 = jnp.float32
    scale = 1.0 / float(D) ** 0.5
    mask_penalty = float(1e12 * scale)

    # ---- host-side prep (done once under jit) ------------------------------
    # sinusoidal factors in half-split layout, packed lane-dense into (S, 2D):
    #   cols [0:D)  = [cos | cos],  cols [D:2D) = [-sin | +sin]  (sign folded)
    pos = jnp.arange(S, dtype=f32)[:, None]
    idx = jnp.arange(D // 2, dtype=f32)
    theta = jnp.power(10000.0, -2.0 * idx / D)
    ang = pos * theta                                         # (S, D/2)
    cos_h = jnp.cos(ang)
    sin_h = jnp.sin(ang)
    cs = jnp.concatenate([cos_h, cos_h, -sin_h, sin_h], axis=1)        # (S, 2D)

    # Per-entity column permutation: interleaved [d0,d1,...] -> half-split
    # [evens | odds], applied identically to q and k so q.k^T is unchanged.
    # 1/sqrt(D) folded into the q columns (exact for power-of-two D).
    half = jnp.concatenate([jnp.arange(0, D, 2), jnp.arange(1, D, 2)])
    blk = jnp.concatenate([half, half + D])                            # (2D,)
    col_scale = jnp.concatenate([jnp.full((D,), scale, f32),
                                 jnp.ones((D,), f32)])                 # (2D,)

    w_p = weight_t.astype(f32).reshape(H, E, 2 * D)[:, :, blk] * col_scale
    w_p = jnp.transpose(w_p, (1, 0, 2)).astype(jnp.bfloat16)           # (E, H, 2D)
    b_p = (bias.astype(f32).reshape(E, 2 * D)[:, blk] * col_scale).reshape(E, 1, 2 * D)

    x_bf16 = last_hidden_state.astype(jnp.bfloat16)
    am = attention_mask.astype(f32)                                    # (B, S), binary
    amk = am.reshape(B, S, 1)                                          # mult. fold into k
    colpen = (-(1.0 - am) * mask_penalty).reshape(B, 1, S)             # additive col pen
    trilpen = jnp.tril(jnp.ones((S, S), f32), -1) * mask_penalty       # resident

    # ---- tiling / VMEM plan -------------------------------------------------
    out_isize = jnp.dtype(out_dtype).itemsize
    Eb = _pick_entity_block(E, S, out_isize)
    EG = E // Eb

    est = (2 * Eb * S * S * out_isize      # double-buffered output block
           + 2 * S * H * 2                 # x block (bf16)
           + 2 * Eb * H * 2 * D * 2        # W block (bf16)
           + 2 * Eb * 2 * D * 4            # bias block
           + 2 * S * 2 * D * 4             # packed cos/sin
           + 2 * S * S * 4                 # resident tril penalty
           + (2 << 20))                    # mask/colpen blocks + headroom
    try:
        phys = int(getattr(pltpu.get_tpu_info(), "vmem_capacity_bytes", 64 << 20))
    except Exception:
        phys = 64 << 20                    # most conservative per-TC assumption
    vmem_limit = int(min(phys * 3 // 4, max(16 << 20, est)))

    kernel = functools.partial(_global_pointer_kernel, eb=Eb, inner_dim=D)

    out = pl.pallas_call(
        kernel,
        out_shape=jax.ShapeDtypeStruct((B, E, S, S), out_dtype),
        grid_spec=pltpu.PrefetchScalarGridSpec(
            num_scalar_prefetch=0,
            grid=(B, EG),
            in_specs=[
                pl.BlockSpec((1, S, H), lambda b, eg: (b, 0, 0)),          # x
                pl.BlockSpec((Eb, H, 2 * D), lambda b, eg: (eg, 0, 0)),    # W
                pl.BlockSpec((Eb, 1, 2 * D), lambda b, eg: (eg, 0, 0)),    # bias
                pl.BlockSpec((S, 2 * D), lambda b, eg: (0, 0)),            # cos/sin (resident)
                pl.BlockSpec((1, S, 1), lambda b, eg: (b, 0, 0)),          # pad mask column
                pl.BlockSpec((1, 1, S), lambda b, eg: (b, 0, 0)),          # column penalty row
                pl.BlockSpec((S, S), lambda b, eg: (0, 0)),                # tril penalty (resident)
            ],
            out_specs=pl.BlockSpec((1, Eb, S, S), lambda b, eg: (b, eg, 0, 0)),
        ),
        compiler_params=pltpu.CompilerParams(
            dimension_semantics=("parallel", "parallel"),
            vmem_limit_bytes=vmem_limit),
    )(x_bf16, w_p, b_p, cs, amk, colpen, trilpen)
    return out


def _reference(last_hidden_state, attention_mask, weight_t, bias, E, D):
    """Pure-JAX f32 reference mirroring the PyTorch forward exactly."""
    B, S, H = last_hidden_state.shape
    out = last_hidden_state @ weight_t + bias                      # (B, S, E*2D)
    out = out.reshape(B, S, E, 2 * D)
    qw, kw = out[..., :D], out[..., D:]

    pos = jnp.arange(S, dtype=jnp.float32)[:, None]
    idx = jnp.arange(D // 2, dtype=jnp.float32)
    theta = jnp.power(10000.0, -2.0 * idx / D)
    ang = pos * theta
    cos_pos = jnp.repeat(jnp.cos(ang), 2, axis=-1)[None, :, None, :]
    sin_pos = jnp.repeat(jnp.sin(ang), 2, axis=-1)[None, :, None, :]

    def rot(t):
        t2 = jnp.stack([-t[..., 1::2], t[..., ::2]], axis=-1).reshape(t.shape)
        return t * cos_pos + t2 * sin_pos

    q = rot(qw)
    k = rot(kw)
    logits = jnp.einsum('bmhd,bnhd->bhmn', q, k)
    pm = attention_mask.astype(jnp.float32)[:, None, None, :]
    logits = logits * pm - (1.0 - pm) * 1e12
    tril = jnp.tril(jnp.ones((S, S), jnp.float32), -1)
    logits = logits - tril[None, None] * 1e12
    return logits / D ** 0.5


if __name__ == "__main__":
    B, S, H = 2, 128, 128        # batch, seq_len, hidden_size (lane-dense demo shapes)
    E, D = 4, 64                 # ent_type_size, inner_dim

    key = jax.random.PRNGKey(0)
    k_x, k_w, k_b = jax.random.split(key, 3)

    last_hidden_state = jax.random.normal(k_x, (B, S, H), jnp.float32)
    weight_t = jax.random.normal(k_w, (H, E * 2 * D), jnp.float32) * 0.03
    bias = jax.random.normal(k_b, (E * 2 * D,), jnp.float32) * 0.03
    # binary attention mask with padding on the second example
    attention_mask = jnp.stack([
        jnp.ones((S,), jnp.float32),
        (jnp.arange(S) < 96).astype(jnp.float32),
    ], axis=0)

    logits = raw_global_pointer(last_hidden_state, attention_mask, weight_t, bias,
                                ent_type_size=E, inner_dim=D, out_dtype=jnp.float32)
    logits = jax.block_until_ready(logits)

    ref = _reference(last_hidden_state, attention_mask, weight_t, bias, E, D)
    assert logits.shape == (B, E, S, S)
    # bf16 inputs + bf16 q.k^T in the kernel vs f32 reference -> bf16-level tolerance.
    assert jnp.allclose(logits, ref, rtol=2e-2, atol=2e-2), "mismatch vs reference"

    print("KERNEL_OK")
</pallas_src>

<mosaic_0001>
module attributes {stable_mosaic.version = 11 : i64} {
  func.func @_global_pointer_kernel(%arg0: i32, %arg1: i32, %arg2: memref<1x128x128xbf16, #tpu.memory_space<vmem>>, %arg3: memref<4x128x128xbf16, #tpu.memory_space<vmem>>, %arg4: memref<4x1x128xf32, #tpu.memory_space<vmem>>, %arg5: memref<128x128xf32, #tpu.memory_space<vmem>>, %arg6: memref<1x128x1xf32, #tpu.memory_space<vmem>>, %arg7: memref<1x1x128xf32, #tpu.memory_space<vmem>>, %arg8: memref<128x128xf32, #tpu.memory_space<vmem>>, %arg9: memref<1x4x128x128xf32, #tpu.memory_space<vmem>>) attributes {dimension_semantics = [#tpu.dimension_semantics<parallel>, #tpu.dimension_semantics<parallel>], iteration_bounds = array<i64: 2, 1>, scalar_prefetch = 0 : i64, scratch_operands = 0 : i64, tpu.core_type = #tpu.core_type<tc>, window_params = [{transform_indices = @transform_0, window_bounds = array<i64: 1, 128, 128>}, {transform_indices = @transform_1, window_bounds = array<i64: 4, 128, 128>}, {transform_indices = @transform_2, window_bounds = array<i64: 4, 1, 128>}, {pipeline_mode = #tpu.pipeline_mode<synchronous>, transform_indices = @transform_3, window_bounds = array<i64: 128, 128>}, {transform_indices = @transform_4, window_bounds = array<i64: 1, 128, 1>}, {transform_indices = @transform_5, window_bounds = array<i64: 1, 1, 128>}, {pipeline_mode = #tpu.pipeline_mode<synchronous>, transform_indices = @transform_6, window_bounds = array<i64: 128, 128>}, {transform_indices = @transform_7, window_bounds = array<i64: 1, 4, 128, 128>}]} {
    %c0 = arith.constant 0 : index
    %c0_0 = arith.constant 0 : index
    %c0_1 = arith.constant 0 : index
    %0 = vector.load %arg2[%c0, %c0_0, %c0_1] : memref<1x128x128xbf16, #tpu.memory_space<vmem>>, vector<1x128x128xbf16>
    %1 = vector.shape_cast %0 : vector<1x128x128xbf16> to vector<128x128xbf16>
    %c0_2 = arith.constant 0 : index
    %c0_3 = arith.constant 0 : index
    %2 = vector.load %arg5[%c0_2, %c0_3] : memref<128x128xf32, #tpu.memory_space<vmem>>, vector<128x128xf32>
    %3 = vector.extract_strided_slice %2 {offsets = [0, 0], sizes = [128, 64], strides = [1, 1]} : vector<128x128xf32> to vector<128x64xf32>
    %4 = vector.extract_strided_slice %2 {offsets = [0, 64], sizes = [128, 64], strides = [1, 1]} : vector<128x128xf32> to vector<128x64xf32>
    %c0_4 = arith.constant 0 : index
    %c0_5 = arith.constant 0 : index
    %c0_6 = arith.constant 0 : index
    %5 = vector.load %arg6[%c0_4, %c0_5, %c0_6] : memref<1x128x1xf32, #tpu.memory_space<vmem>>, vector<1x128x1xf32>
    %6 = vector.shape_cast %5 : vector<1x128x1xf32> to vector<128x1xf32>
    %c0_7 = arith.constant 0 : index
    %c0_8 = arith.constant 0 : index
    %c0_9 = arith.constant 0 : index
    %7 = vector.load %arg3[%c0_7, %c0_8, %c0_9] : memref<4x128x128xbf16, #tpu.memory_space<vmem>>, vector<1x128x128xbf16>
    %8 = vector.shape_cast %7 : vector<1x128x128xbf16> to vector<128x128xbf16>
    %cst = arith.constant dense<0.000000e+00> : vector<128x128xf32>
    %9 = tpu.matmul %1, %8, %cst {dimension_numbers = #tpu.dot_dimension_numbers<[1], [0], [0], [1], [0, 0, 1, 1], [], []>} : vector<128x128xbf16>, vector<128x128xbf16>, vector<128x128xf32> -> vector<128x128xf32>
    %c0_10 = arith.constant 0 : index
    %c0_11 = arith.constant 0 : index
    %c0_12 = arith.constant 0 : index
    %10 = vector.load %arg4[%c0_10, %c0_11, %c0_12] : memref<4x1x128xf32, #tpu.memory_space<vmem>>, vector<1x1x128xf32>
    %11 = vector.shape_cast %10 : vector<1x1x128xf32> to vector<1x128xf32>
    %12 = vector.broadcast %11 : vector<1x128xf32> to vector<128x128xf32>
    %13 = arith.addf %9, %12 : vector<128x128xf32>
    %14 = vector.extract_strided_slice %13 {offsets = [0, 0], sizes = [128, 64], strides = [1, 1]} : vector<128x128xf32> to vector<128x64xf32>
    %15 = arith.mulf %14, %3 : vector<128x64xf32>
    %c32_i32 = arith.constant 32 : i32
    %16 = tpu.dynamic_rotate %14 by %c32_i32 dim 1 : vector<128x64xf32>, i32 -> vector<128x64xf32>
    %17 = arith.mulf %16, %4 : vector<128x64xf32>
    %18 = arith.addf %15, %17 : vector<128x64xf32>
    %19 = arith.truncf %18 : vector<128x64xf32> to vector<128x64xbf16>
    %20 = vector.extract_strided_slice %13 {offsets = [0, 64], sizes = [128, 64], strides = [1, 1]} : vector<128x128xf32> to vector<128x64xf32>
    %21 = arith.mulf %20, %3 : vector<128x64xf32>
    %c32_i32_13 = arith.constant 32 : i32
    %22 = tpu.dynamic_rotate %20 by %c32_i32_13 dim 1 : vector<128x64xf32>, i32 -> vector<128x64xf32>
    %23 = arith.mulf %22, %4 : vector<128x64xf32>
    %24 = arith.addf %21, %23 : vector<128x64xf32>
    %25 = vector.broadcast %6 : vector<128x1xf32> to vector<128x64xf32>
    %26 = arith.mulf %24, %25 : vector<128x64xf32>
    %27 = arith.truncf %26 : vector<128x64xf32> to vector<128x64xbf16>
    %cst_14 = arith.constant dense<0.000000e+00> : vector<128x128xf32>
    %28 = tpu.matmul %19, %27, %cst_14 {dimension_numbers = #tpu.dot_dimension_numbers<[1], [1], [0], [0], [0, 0, 1, 0], [], []>} : vector<128x64xbf16>, vector<128x64xbf16>, vector<128x128xf32> -> vector<128x128xf32>
    %c0_15 = arith.constant 0 : index
    %c0_16 = arith.constant 0 : index
    %c0_17 = arith.constant 0 : index
    %29 = vector.load %arg7[%c0_15, %c0_16, %c0_17] : memref<1x1x128xf32, #tpu.memory_space<vmem>>, vector<1x1x128xf32>
    %30 = vector.shape_cast %29 : vector<1x1x128xf32> to vector<1x128xf32>
    %31 = vector.broadcast %30 : vector<1x128xf32> to vector<128x128xf32>
    %32 = arith.addf %28, %31 : vector<128x128xf32>
    %c0_18 = arith.constant 0 : index
    %c0_19 = arith.constant 0 : index
    %33 = vector.load %arg8[%c0_18, %c0_19] : memref<128x128xf32, #tpu.memory_space<vmem>>, vector<128x128xf32>
    %34 = arith.subf %32, %33 : vector<128x128xf32>
    %c0_20 = arith.constant 0 : index
    %c0_21 = arith.constant 0 : index
    %c0_22 = arith.constant 0 : index
    %c0_23 = arith.constant 0 : index
    %35 = vector.load %arg9[%c0_20, %c0_21, %c0_22, %c0_23] : memref<1x4x128x128xf32, #tpu.memory_space<vmem>>, vector<1x1x128x128xf32>
    %36 = vector.shape_cast %35 : vector<1x1x128x128xf32> to vector<128x128xf32>
    %37 = vector.shape_cast %34 : vector<128x128xf32> to vector<1x1x128x128xf32>
    tpu.vector_store %arg9[%c0_20, %c0_21, %c0_22, %c0_23], %37 {strides = array<i32>} : memref<1x4x128x128xf32, #tpu.memory_space<vmem>>, vector<1x1x128x128xf32>,
    %c1 = arith.constant 1 : index
    %c0_24 = arith.constant 0 : index
    %c0_25 = arith.constant 0 : index
    %38 = vector.load %arg3[%c1, %c0_24, %c0_25] : memref<4x128x128xbf16, #tpu.memory_space<vmem>>, vector<1x128x128xbf16>
    %39 = vector.shape_cast %38 : vector<1x128x128xbf16> to vector<128x128xbf16>
    %cst_26 = arith.constant dense<0.000000e+00> : vector<128x128xf32>
    %40 = tpu.matmul %1, %39, %cst_26 {dimension_numbers = #tpu.dot_dimension_numbers<[1], [0], [0], [1], [0, 0, 1, 1], [], []>} : vector<128x128xbf16>, vector<128x128xbf16>, vector<128x128xf32> -> vector<128x128xf32>
    %c1_27 = arith.constant 1 : index
    %c0_28 = arith.constant 0 : index
    %c0_29 = arith.constant 0 : index
    %41 = vector.load %arg4[%c1_27, %c0_28, %c0_29] : memref<4x1x128xf32, #tpu.memory_space<vmem>>, vector<1x1x128xf32>
    %42 = vector.shape_cast %41 : vector<1x1x128xf32> to vector<1x128xf32>
    %43 = vector.broadcast %42 : vector<1x128xf32> to vector<128x128xf32>
    %44 = arith.addf %40, %43 : vector<128x128xf32>
    %45 = vector.extract_strided_slice %44 {offsets = [0, 0], sizes = [128, 64], strides = [1, 1]} : vector<128x128xf32> to vector<128x64xf32>
    %46 = arith.mulf %45, %3 : vector<128x64xf32>
    %c32_i32_30 = arith.constant 32 : i32
    %47 = tpu.dynamic_rotate %45 by %c32_i32_30 dim 1 : vector<128x64xf32>, i32 -> vector<128x64xf32>
    %48 = arith.mulf %47, %4 : vector<128x64xf32>
    %49 = arith.addf %46, %48 : vector<128x64xf32>
    %50 = arith.truncf %49 : vector<128x64xf32> to vector<128x64xbf16>
    %51 = vector.extract_strided_slice %44 {offsets = [0, 64], sizes = [128, 64], strides = [1, 1]} : vector<128x128xf32> to vector<128x64xf32>
    %52 = arith.mulf %51, %3 : vector<128x64xf32>
    %c32_i32_31 = arith.constant 32 : i32
    %53 = tpu.dynamic_rotate %51 by %c32_i32_31 dim 1 : vector<128x64xf32>, i32 -> vector<128x64xf32>
    %54 = arith.mulf %53, %4 : vector<128x64xf32>
    %55 = arith.addf %52, %54 : vector<128x64xf32>
    %56 = vector.broadcast %6 : vector<128x1xf32> to vector<128x64xf32>
    %57 = arith.mulf %55, %56 : vector<128x64xf32>
    %58 = arith.truncf %57 : vector<128x64xf32> to vector<128x64xbf16>
    %cst_32 = arith.constant dense<0.000000e+00> : vector<128x128xf32>
    %59 = tpu.matmul %50, %58, %cst_32 {dimension_numbers = #tpu.dot_dimension_numbers<[1], [1], [0], [0], [0, 0, 1, 0], [], []>} : vector<128x64xbf16>, vector<128x64xbf16>, vector<128x128xf32> -> vector<128x128xf32>
    %c0_33 = arith.constant 0 : index
    %c0_34 = arith.constant 0 : index
    %c0_35 = arith.constant 0 : index
    %60 = vector.load %arg7[%c0_33, %c0_34, %c0_35] : memref<1x1x128xf32, #tpu.memory_space<vmem>>, vector<1x1x128xf32>
    %61 = vector.shape_cast %60 : vector<1x1x128xf32> to vector<1x128xf32>
    %62 = vector.broadcast %61 : vector<1x128xf32> to vector<128x128xf32>
    %63 = arith.addf %59, %62 : vector<128x128xf32>
    %c0_36 = arith.constant 0 : index
    %c0_37 = arith.constant 0 : index
    %64 = vector.load %arg8[%c0_36, %c0_37] : memref<128x128xf32, #tpu.memory_space<vmem>>, vector<128x128xf32>
    %65 = arith.subf %63, %64 : vector<128x128xf32>
    %c0_38 = arith.constant 0 : index
    %c1_39 = arith.constant 1 : index
    %c0_40 = arith.constant 0 : index
    %c0_41 = arith.constant 0 : index
    %66 = vector.load %arg9[%c0_38, %c1_39, %c0_40, %c0_41] : memref<1x4x128x128xf32, #tpu.memory_space<vmem>>, vector<1x1x128x128xf32>
    %67 = vector.shape_cast %66 : vector<1x1x128x128xf32> to vector<128x128xf32>
    %68 = vector.shape_cast %65 : vector<128x128xf32> to vector<1x1x128x128xf32>
    tpu.vector_store %arg9[%c0_38, %c1_39, %c0_40, %c0_41], %68 {strides = array<i32>} : memref<1x4x128x128xf32, #tpu.memory_space<vmem>>, vector<1x1x128x128xf32>,
    %c2 = arith.constant 2 : index
    %c0_42 = arith.constant 0 : index
    %c0_43 = arith.constant 0 : index
    %69 = vector.load %arg3[%c2, %c0_42, %c0_43] : memref<4x128x128xbf16, #tpu.memory_space<vmem>>, vector<1x128x128xbf16>
    %70 = vector.shape_cast %69 : vector<1x128x128xbf16> to vector<128x128xbf16>
    %cst_44 = arith.constant dense<0.000000e+00> : vector<128x128xf32>
    %71 = tpu.matmul %1, %70, %cst_44 {dimension_numbers = #tpu.dot_dimension_numbers<[1], [0], [0], [1], [0, 0, 1, 1], [], []>} : vector<128x128xbf16>, vector<128x128xbf16>, vector<128x128xf32> -> vector<128x128xf32>
    %c2_45 = arith.constant 2 : index
    %c0_46 = arith.constant 0 : index
    %c0_47 = arith.constant 0 : index
    %72 = vector.load %arg4[%c2_45, %c0_46, %c0_47] : memref<4x1x128xf32, #tpu.memory_space<vmem>>, vector<1x1x128xf32>
    %73 = vector.shape_cast %72 : vector<1x1x128xf32> to vector<1x128xf32>
    %74 = vector.broadcast %73 : vector<1x128xf32> to vector<128x128xf32>
    %75 = arith.addf %71, %74 : vector<128x128xf32>
    %76 = vector.extract_strided_slice %75 {offsets = [0, 0], sizes = [128, 64], strides = [1, 1]} : vector<128x128xf32> to vector<128x64xf32>
    %77 = arith.mulf %76, %3 : vector<128x64xf32>
    %c32_i32_48 = arith.constant 32 : i32
    %78 = tpu.dynamic_rotate %76 by %c32_i32_48 dim 1 : vector<128x64xf32>, i32 -> vector<128x64xf32>
    %79 = arith.mulf %78, %4 : vector<128x64xf32>
    %80 = arith.addf %77, %79 : vector<128x64xf32>
    %81 = arith.truncf %80 : vector<128x64xf32> to vector<128x64xbf16>
    %82 = vector.extract_strided_slice %75 {offsets = [0, 64], sizes = [128, 64], strides = [1, 1]} : vector<128x128xf32> to vector<128x64xf32>
    %83 = arith.mulf %82, %3 : vector<128x64xf32>
    %c32_i32_49 = arith.constant 32 : i32
    %84 = tpu.dynamic_rotate %82 by %c32_i32_49 dim 1 : vector<128x64xf32>, i32 -> vector<128x64xf32>
    %85 = arith.mulf %84, %4 : vector<128x64xf32>
    %86 = arith.addf %83, %85 : vector<128x64xf32>
    %87 = vector.broadcast %6 : vector<128x1xf32> to vector<128x64xf32>
    %88 = arith.mulf %86, %87 : vector<128x64xf32>
    %89 = arith.truncf %88 : vector<128x64xf32> to vector<128x64xbf16>
    %cst_50 = arith.constant dense<0.000000e+00> : vector<128x128xf32>
    %90 = tpu.matmul %81, %89, %cst_50 {dimension_numbers = #tpu.dot_dimension_numbers<[1], [1], [0], [0], [0, 0, 1, 0], [], []>} : vector<128x64xbf16>, vector<128x64xbf16>, vector<128x128xf32> -> vector<128x128xf32>
    %c0_51 = arith.constant 0 : index
    %c0_52 = arith.constant 0 : index
    %c0_53 = arith.constant 0 : index
    %91 = vector.load %arg7[%c0_51, %c0_52, %c0_53] : memref<1x1x128xf32, #tpu.memory_space<vmem>>, vector<1x1x128xf32>
    %92 = vector.shape_cast %91 : vector<1x1x128xf32> to vector<1x128xf32>
    %93 = vector.broadcast %92 : vector<1x128xf32> to vector<128x128xf32>
    %94 = arith.addf %90, %93 : vector<128x128xf32>
    %c0_54 = arith.constant 0 : index
    %c0_55 = arith.constant 0 : index
    %95 = vector.load %arg8[%c0_54, %c0_55] : memref<128x128xf32, #tpu.memory_space<vmem>>, vector<128x128xf32>
    %96 = arith.subf %94, %95 : vector<128x128xf32>
    %c0_56 = arith.constant 0 : index
    %c2_57 = arith.constant 2 : index
    %c0_58 = arith.constant 0 : index
    %c0_59 = arith.constant 0 : index
    %97 = vector.load %arg9[%c0_56, %c2_57, %c0_58, %c0_59] : memref<1x4x128x128xf32, #tpu.memory_space<vmem>>, vector<1x1x128x128xf32>
    %98 = vector.shape_cast %97 : vector<1x1x128x128xf32> to vector<128x128xf32>
    %99 = vector.shape_cast %96 : vector<128x128xf32> to vector<1x1x128x128xf32>
    tpu.vector_store %arg9[%c0_56, %c2_57, %c0_58, %c0_59], %99 {strides = array<i32>} : memref<1x4x128x128xf32, #tpu.memory_space<vmem>>, vector<1x1x128x128xf32>,
    %c3 = arith.constant 3 : index
    %c0_60 = arith.constant 0 : index
    %c0_61 = arith.constant 0 : index
    %100 = vector.load %arg3[%c3, %c0_60, %c0_61] : memref<4x128x128xbf16, #tpu.memory_space<vmem>>, vector<1x128x128xbf16>
    %101 = vector.shape_cast %100 : vector<1x128x128xbf16> to vector<128x128xbf16>
    %cst_62 = arith.constant dense<0.000000e+00> : vector<128x128xf32>
    %102 = tpu.matmul %1, %101, %cst_62 {dimension_numbers = #tpu.dot_dimension_numbers<[1], [0], [0], [1], [0, 0, 1, 1], [], []>} : vector<128x128xbf16>, vector<128x128xbf16>, vector<128x128xf32> -> vector<128x128xf32>
    %c3_63 = arith.constant 3 : index
    %c0_64 = arith.constant 0 : index
    %c0_65 = arith.constant 0 : index
    %103 = vector.load %arg4[%c3_63, %c0_64, %c0_65] : memref<4x1x128xf32, #tpu.memory_space<vmem>>, vector<1x1x128xf32>
    %104 = vector.shape_cast %103 : vector<1x1x128xf32> to vector<1x128xf32>
    %105 = vector.broadcast %104 : vector<1x128xf32> to vector<128x128xf32>
    %106 = arith.addf %102, %105 : vector<128x128xf32>
    %107 = vector.extract_strided_slice %106 {offsets = [0, 0], sizes = [128, 64], strides = [1, 1]} : vector<128x128xf32> to vector<128x64xf32>
    %108 = arith.mulf %107, %3 : vector<128x64xf32>
    %c32_i32_66 = arith.constant 32 : i32
    %109 = tpu.dynamic_rotate %107 by %c32_i32_66 dim 1 : vector<128x64xf32>, i32 -> vector<128x64xf32>
    %110 = arith.mulf %109, %4 : vector<128x64xf32>
    %111 = arith.addf %108, %110 : vector<128x64xf32>
    %112 = arith.truncf %111 : vector<128x64xf32> to vector<128x64xbf16>
    %113 = vector.extract_strided_slice %106 {offsets = [0, 64], sizes = [128, 64], strides = [1, 1]} : vector<128x128xf32> to vector<128x64xf32>
    %114 = arith.mulf %113, %3 : vector<128x64xf32>
    %c32_i32_67 = arith.constant 32 : i32
    %115 = tpu.dynamic_rotate %113 by %c32_i32_67 dim 1 : vector<128x64xf32>, i32 -> vector<128x64xf32>
    %116 = arith.mulf %115, %4 : vector<128x64xf32>
    %117 = arith.addf %114, %116 : vector<128x64xf32>
    %118 = vector.broadcast %6 : vector<128x1xf32> to vector<128x64xf32>
    %119 = arith.mulf %117, %118 : vector<128x64xf32>
    %120 = arith.truncf %119 : vector<128x64xf32> to vector<128x64xbf16>
    %cst_68 = arith.constant dense<0.000000e+00> : vector<128x128xf32>
    %121 = tpu.matmul %112, %120, %cst_68 {dimension_numbers = #tpu.dot_dimension_numbers<[1], [1], [0], [0], [0, 0, 1, 0], [], []>} : vector<128x64xbf16>, vector<128x64xbf16>, vector<128x128xf32> -> vector<128x128xf32>
    %c0_69 = arith.constant 0 : index
    %c0_70 = arith.constant 0 : index
    %c0_71 = arith.constant 0 : index
    %122 = vector.load %arg7[%c0_69, %c0_70, %c0_71] : memref<1x1x128xf32, #tpu.memory_space<vmem>>, vector<1x1x128xf32>
    %123 = vector.shape_cast %122 : vector<1x1x128xf32> to vector<1x128xf32>
    %124 = vector.broadcast %123 : vector<1x128xf32> to vector<128x128xf32>
    %125 = arith.addf %121, %124 : vector<128x128xf32>
    %c0_72 = arith.constant 0 : index
    %c0_73 = arith.constant 0 : index
    %126 = vector.load %arg8[%c0_72, %c0_73] : memref<128x128xf32, #tpu.memory_space<vmem>>, vector<128x128xf32>
    %127 = arith.subf %125, %126 : vector<128x128xf32>
    %c0_74 = arith.constant 0 : index
    %c3_75 = arith.constant 3 : index
    %c0_76 = arith.constant 0 : index
    %c0_77 = arith.constant 0 : index
    %128 = vector.load %arg9[%c0_74, %c3_75, %c0_76, %c0_77] : memref<1x4x128x128xf32, #tpu.memory_space<vmem>>, vector<1x1x128x128xf32>
    %129 = vector.shape_cast %128 : vector<1x1x128x128xf32> to vector<128x128xf32>
    %130 = vector.shape_cast %127 : vector<128x128xf32> to vector<1x1x128x128xf32>
    tpu.vector_store %arg9[%c0_74, %c3_75, %c0_76, %c0_77], %130 {strides = array<i32>} : memref<1x4x128x128xf32, #tpu.memory_space<vmem>>, vector<1x1x128x128xf32>,
    return
  }
  func.func @transform_0(%arg0: i32, %arg1: i32) -> (i32, i32, i32) {
    %c0_i32 = arith.constant 0 : i32
    %c0_i32_0 = arith.constant 0 : i32
    %c0_i32_1 = arith.constant 0 : i32
    return %arg0, %c0_i32, %c0_i32_0 : i32, i32, i32
  }
  func.func @transform_1(%arg0: i32, %arg1: i32) -> (i32, i32, i32) {
    %c0_i32 = arith.constant 0 : i32
    %c0_i32_0 = arith.constant 0 : i32
    %c0_i32_1 = arith.constant 0 : i32
    return %arg1, %c0_i32, %c0_i32_0 : i32, i32, i32
  }
  func.func @transform_2(%arg0: i32, %arg1: i32) -> (i32, i32, i32) {
    %c0_i32 = arith.constant 0 : i32
    %c0_i32_0 = arith.constant 0 : i32
    %c0_i32_1 = arith.constant 0 : i32
    return %arg1, %c0_i32, %c0_i32_0 : i32, i32, i32
  }
  func.func @transform_3(%arg0: i32, %arg1: i32) -> (i32, i32) {
    %c0_i32 = arith.constant 0 : i32
    %c0_i32_0 = arith.constant 0 : i32
    %c0_i32_1 = arith.constant 0 : i32
    return %c0_i32, %c0_i32_0 : i32, i32
  }
  func.func @transform_4(%arg0: i32, %arg1: i32) -> (i32, i32, i32) {
    %c0_i32 = arith.constant 0 : i32
    %c0_i32_0 = arith.constant 0 : i32
    %c0_i32_1 = arith.constant 0 : i32
    return %arg0, %c0_i32, %c0_i32_0 : i32, i32, i32
  }
  func.func @transform_5(%arg0: i32, %arg1: i32) -> (i32, i32, i32) {
    %c0_i32 = arith.constant 0 : i32
    %c0_i32_0 = arith.constant 0 : i32
    %c0_i32_1 = arith.constant 0 : i32
    return %arg0, %c0_i32, %c0_i32_0 : i32, i32, i32
  }
  func.func @transform_6(%arg0: i32, %arg1: i32) -> (i32, i32) {
    %c0_i32 = arith.constant 0 : i32
    %c0_i32_0 = arith.constant 0 : i32
    %c0_i32_1 = arith.constant 0 : i32
    return %c0_i32, %c0_i32_0 : i32, i32
  }
  func.func @transform_7(%arg0: i32, %arg1: i32) -> (i32, i32, i32, i32) {
    %c0_i32 = arith.constant 0 : i32
    %c0_i32_0 = arith.constant 0 : i32
    %c0_i32_1 = arith.constant 0 : i32
    return %arg0, %arg1, %c0_i32, %c0_i32_0 : i32, i32, i32, i32
  }
}

</mosaic_0001>

<llo_original>
// kernel: raw_global_pointer.1
$region0: #{raw_global_pointer.1}
  #allocation0 [shape = 'u32[]', space=smem, size = 0x4, offset = 0x4, fixed_abs, tag = 'smem constant byte address 0x4 - core index']
  #allocation1 [shape = 'u32[144,128]{1,0:T(1,128)}', space=vmem, size = 0x12000, scoped, tag = 'internal scratch']
  %s0 = inlined_call_operand.vmem [shape: bf16[2,128,128], index: 0, kind: input, shape index: {}]
  %s1 = inlined_call_operand.vmem [shape: bf16[4,128,128], index: 1, kind: input, shape index: {}]
  %s2 = inlined_call_operand.vmem [shape: f32[4,1,128], index: 2, kind: input, shape index: {}]
  %s3 = inlined_call_operand.vmem [shape: f32[128,128], index: 3, kind: input, shape index: {}]
  %s4 = inlined_call_operand.vmem [shape: f32[2,128,1], index: 4, kind: input, shape index: {}]
  %s5 = inlined_call_operand.vmem [shape: f32[2,1,128], index: 5, kind: input, shape index: {}]
  %s6 = inlined_call_operand.vmem [shape: f32[128,128], index: 6, kind: input, shape index: {}]
  %s7 = inlined_call_operand.hbm [shape: f32[2,4,128,128], index: 7, kind: output, shape index: {}]
  %s8 = sld [smem:[#allocation0]]
  $region61: #{raw_global_pointer.1} parent=0
    _
  %s10 = ssub.s32 1, %s8
  %s11 = scalar_select 0, %s10, %s8
  $region1: #{raw_global_pointer.1} parent=0
    #allocation2 [shape = 'u8[524288]{0}', space=vmem, size = 0x80000, scoped, tag = 'output window, operand 0']
    #allocation3 [shape = 's32[2]{0}', space=sflag, size = 0x8, scoped, tag = 'scoped memory for raw_global_pointer.1']
    %12 = vsyncpa [#allocation3], 0
    %s13 = scalar_lea.sflag [#allocation3], 1
    %14 = vsyncpa %s13, 0
    loop: start=0, step=1, limit=4
    $region2: #{raw_global_pointer.1} parent=1 // loop_pre_header
      _
    $region3: #{raw_global_pointer.1} parent=1 // loop_header
      %s16 = sphi 0, %s20
      %p17 = scmp.ge.s32.totalorder %s16, 4
      %s23 = sphi 0, %s35
      %s24 = sphi 0, %s31
      %s25 = sphi 0, %s23
      %s26 = sphi 0, %s24
      %s27 = sphi 0, %s25
      %s28 = sphi 0, %s26
      %s38 = sphi 0, %s40
      %s41 = sphi 0, %s38
      %s42 = sphi 0, %s41
      %s58 = sphi 0, %s42
      %s64 = sphi 0, %s66
      %s67 = sphi 0, %s64
      %s68 = sphi 0, %s67
      %s84 = sphi 0, %s68
      %s90 = sphi 0, %s92
      %s93 = sphi 0, %s90
      %s94 = sphi 0, %s93
      %s110 = sphi 0, %s94
      %s114 = sphi 0, %s114
      %s116 = sphi 0, %s114
      %s117 = sphi 0, %s116
      %s131 = sphi 0, %s117
      %s137 = sphi 0, %s139
      %s140 = sphi 0, %s137
      %s141 = sphi 0, %s140
      %s157 = sphi 0, %s141
      %s163 = sphi 0, %s165
      %s166 = sphi 0, %s163
      %s167 = sphi 0, %s166
      %s183 = sphi 0, %s167
      %s187 = sphi 0, %s187
      %s189 = sphi 0, %s187
      %s190 = sphi 0, %s189
      %s204 = sphi 0, %s190
      %s212 = sphi 0, %s214
      %s215 = sphi 0, %s212
      %s216 = sphi 0, %s215
      %s232 = sphi 0, %s216
    $region4: #{raw_global_pointer.1} parent=1 // loop_header_branch
      %19 = sbr.rel (%p17) target = $region8
    $region5: #{raw_global_pointer.1} parent=1 // loop_body
      %s21 = ssub.s32 %s16, 1
      %s22 = ssub.s32 %s16, 2
      %s29 = sadd.s32 1, %s24
      %p30 = scmp.ge.s32.totalorder %s29, 1
      %s31 = scalar_select %p30, 0, %s29
      %s32 = sadd.s32 1, %s23
      %s33 = scalar_select %p30, %s32, %s23
      %p34 = scmp.ge.s32.totalorder %s33, 2
      %s35 = scalar_select %p34, 0, %s33
      %s36 = ssub.s32 %s23, %s35
      %p37 = scmp.eq.s32.totalorder %s36, 0
      %s39 = sadd.s32 %s38, 1
      %s40 = scalar_select %p37, %s38, %s39
      %p43 = pneg %p37
      %p44 = scmp.eq.s32.totalorder %s16, 1
      %p45 = por %p43, %p44
      %p46 = scmp.ne.s32.totalorder %s38, %s41
      %p47 = scmp.eq.s32.totalorder %s16, 0
      %p48 = por %p46, %p47
      %p49 = scmp.ne.s32.totalorder %s38, %s41
      %p50 = scmp.eq.s32.totalorder %s21, 1
      %p51 = por %p49, %p50
      %p52 = scmp.ne.s32.totalorder %s41, %s42
      %p53 = scmp.eq.s32.totalorder %s21, 0
      %p54 = por %p52, %p53
      %p55 = scmp.ne.s32.totalorder %s41, %s42
      %p56 = scmp.eq.s32.totalorder %s22, 1
      %p57 = por %p55, %p56
      %p59 = scmp.ne.s32.totalorder %s42, %s58
      %p60 = scmp.eq.s32.totalorder %s22, 0
      %p61 = por %p59, %p60
      %s62 = ssub.s32 %s24, %s31
      %p63 = scmp.eq.s32.totalorder %s62, 0
      %s65 = sadd.s32 %s64, 1
      %s66 = scalar_select %p63, %s64, %s65
      %p69 = pneg %p63
      %p70 = scmp.eq.s32.totalorder %s16, 1
      %p71 = por %p69, %p70
      %p72 = scmp.ne.s32.totalorder %s64, %s67
      %p73 = scmp.eq.s32.totalorder %s16, 0
      %p74 = por %p72, %p73
      %p75 = scmp.ne.s32.totalorder %s64, %s67
      %p76 = scmp.eq.s32.totalorder %s21, 1
      %p77 = por %p75, %p76
      %p78 = scmp.ne.s32.totalorder %s67, %s68
      %p79 = scmp.eq.s32.totalorder %s21, 0
      %p80 = por %p78, %p79
      %p81 = scmp.ne.s32.totalorder %s67, %s68
      %p82 = scmp.eq.s32.totalorder %s22, 1
      %p83 = por %p81, %p82
      %p85 = scmp.ne.s32.totalorder %s68, %s84
      %p86 = scmp.eq.s32.totalorder %s22, 0
      %p87 = por %p85, %p86
      %s88 = ssub.s32 %s24, %s31
      %p89 = scmp.eq.s32.totalorder %s88, 0
      %s91 = sadd.s32 %s90, 1
      %s92 = scalar_select %p89, %s90, %s91
      %p95 = pneg %p89
      %p96 = scmp.eq.s32.totalorder %s16, 1
      %p97 = por %p95, %p96
      %p98 = scmp.ne.s32.totalorder %s90, %s93
      %p99 = scmp.eq.s32.totalorder %s16, 0
      %p100 = por %p98, %p99
      %p101 = scmp.ne.s32.totalorder %s90, %s93
      %p102 = scmp.eq.s32.totalorder %s21, 1
      %p103 = por %p101, %p102
      %p104 = scmp.ne.s32.totalorder %s93, %s94
      %p105 = scmp.eq.s32.totalorder %s21, 0
      %p106 = por %p104, %p105
      %p107 = scmp.ne.s32.totalorder %s93, %s94
      %p108 = scmp.eq.s32.totalorder %s22, 1
      %p109 = por %p107, %p108
      %p111 = scmp.ne.s32.totalorder %s94, %s110
      %p112 = scmp.eq.s32.totalorder %s22, 0
      %p113 = por %p111, %p112
      %s115 = sadd.s32 %s114, 1
      %p118 = scmp.eq.s32.totalorder %s16, 1
      %p119 = scmp.ne.s32.totalorder %s114, %s116
      %p120 = scmp.eq.s32.totalorder %s16, 0
      %p121 = por %p119, %p120
      %p122 = scmp.ne.s32.totalorder %s114, %s116
      %p123 = scmp.eq.s32.totalorder %s21, 1
      %p124 = por %p122, %p123
      %p125 = scmp.ne.s32.totalorder %s116, %s117
      %p126 = scmp.eq.s32.totalorder %s21, 0
      %p127 = por %p125, %p126
      %p128 = scmp.ne.s32.totalorder %s116, %s117
      %p129 = scmp.eq.s32.totalorder %s22, 1
      %p130 = por %p128, %p129
      %p132 = scmp.ne.s32.totalorder %s117, %s131
      %p133 = scmp.eq.s32.totalorder %s22, 0
      %p134 = por %p132, %p133
      %s135 = ssub.s32 %s23, %s35
      %p136 = scmp.eq.s32.totalorder %s135, 0
      %s138 = sadd.s32 %s137, 1
      %s139 = scalar_select %p136, %s137, %s138
      %p142 = pneg %p136
      %p143 = scmp.eq.s32.totalorder %s16, 1
      %p144 = por %p142, %p143
      %p145 = scmp.ne.s32.totalorder %s137, %s140
      %p146 = scmp.eq.s32.totalorder %s16, 0
      %p147 = por %p145, %p146
      %p148 = scmp.ne.s32.totalorder %s137, %s140
      %p149 = scmp.eq.s32.totalorder %s21, 1
      %p150 = por %p148, %p149
      %p151 = scmp.ne.s32.totalorder %s140, %s141
      %p152 = scmp.eq.s32.totalorder %s21, 0
      %p153 = por %p151, %p152
      %p154 = scmp.ne.s32.totalorder %s140, %s141
      %p155 = scmp.eq.s32.totalorder %s22, 1
      %p156 = por %p154, %p155
      %p158 = scmp.ne.s32.totalorder %s141, %s157
      %p159 = scmp.eq.s32.totalorder %s22, 0
      %p160 = por %p158, %p159
      %s161 = ssub.s32 %s23, %s35
      %p162 = scmp.eq.s32.totalorder %s161, 0
      %s164 = sadd.s32 %s163, 1
      %s165 = scalar_select %p162, %s163, %s164
      %p168 = pneg %p162
      %p169 = scmp.eq.s32.totalorder %s16, 1
      %p170 = por %p168, %p169
      %p171 = scmp.ne.s32.totalorder %s163, %s166
      %p172 = scmp.eq.s32.totalorder %s16, 0
      %p173 = por %p171, %p172
      %p174 = scmp.ne.s32.totalorder %s163, %s166
      %p175 = scmp.eq.s32.totalorder %s21, 1
      %p176 = por %p174, %p175
      %p177 = scmp.ne.s32.totalorder %s166, %s167
      %p178 = scmp.eq.s32.totalorder %s21, 0
      %p179 = por %p177, %p178
      %p180 = scmp.ne.s32.totalorder %s166, %s167
      %p181 = scmp.eq.s32.totalorder %s22, 1
      %p182 = por %p180, %p181
      %p184 = scmp.ne.s32.totalorder %s167, %s183
      %p185 = scmp.eq.s32.totalorder %s22, 0
      %p186 = por %p184, %p185
      %s188 = sadd.s32 %s187, 1
      %p191 = scmp.eq.s32.totalorder %s16, 1
      %p192 = scmp.ne.s32.totalorder %s187, %s189
      %p193 = scmp.eq.s32.totalorder %s16, 0
      %p194 = por %p192, %p193
      %p195 = scmp.ne.s32.totalorder %s187, %s189
      %p196 = scmp.eq.s32.totalorder %s21, 1
      %p197 = por %p195, %p196
      %p198 = scmp.ne.s32.totalorder %s189, %s190
      %p199 = scmp.eq.s32.totalorder %s21, 0
      %p200 = por %p198, %p199
      %p201 = scmp.ne.s32.totalorder %s189, %s190
      %p202 = scmp.eq.s32.totalorder %s22, 1
      %p203 = por %p201, %p202
      %p205 = scmp.ne.s32.totalorder %s190, %s204
      %p206 = scmp.eq.s32.totalorder %s22, 0
      %p207 = por %p205, %p206
      %s208 = ssub.s32 %s23, %s35
      %s209 = ssub.s32 %s24, %s31
      %s210 = sor.u32 %s208, %s209
      %p211 = scmp.eq.s32.totalorder %s210, 0
      %s213 = sadd.s32 %s212, 1
      %s214 = scalar_select %p211, %s212, %s213
      %p217 = pneg %p211
      %p218 = scmp.eq.s32.totalorder %s16, 1
      %p219 = por %p217, %p218
      %p220 = scmp.ne.s32.totalorder %s212, %s215
      %p221 = scmp.eq.s32.totalorder %s16, 0
      %p222 = por %p220, %p221
      %p223 = scmp.ne.s32.totalorder %s212, %s215
      %p224 = scmp.eq.s32.totalorder %s21, 1
      %p225 = por %p223, %p224
      %p226 = scmp.ne.s32.totalorder %s215, %s216
      %p227 = scmp.eq.s32.totalorder %s21, 0
      %p228 = por %p226, %p227
      %p229 = scmp.ne.s32.totalorder %s215, %s216
      %p230 = scmp.eq.s32.totalorder %s22, 1
      %p231 = por %p229, %p230
      %p233 = scmp.ne.s32.totalorder %s216, %s232
      %p234 = scmp.eq.s32.totalorder %s22, 0
      %p235 = por %p233, %p234
      %p236 = scmp.le.s32.totalorder 1, %s16
      %p237 = scmp.lt.s32.totalorder %s16, 3
      %p238 = pnand %p236, %p237
      %p239 = pneg %p238
      // Predicated region
      $region9: #{raw_global_pointer.1} parent=5 // pred_check
        _
      $region10: #{raw_global_pointer.1} parent=5 // pred_check_branch
        %241 = sbr.rel (%p238) target = $region12
      $region11: #{raw_global_pointer.1} parent=5 // pred_region
        %s242 = ssub.s32 %s16, 1
        // Predicated region
        $region13: #{raw_global_pointer.1} parent=11 // pred_check
          %p243 = pneg %p80
        $region14: #{raw_global_pointer.1} parent=11 // pred_check_branch
          %245 = sbr.rel (%p243) target = $region16
        $region15: #{raw_global_pointer.1} parent=11 // pred_region
          %s246 = smul.u32 4, %s26
          %p247 = scmp.lt.s32.totalorder %s246, 3
          %s248 = scalar_select %p247, %s246, 3
          %s249 = smul.addr %s248, 16
          %s250 = smul.addr %s249, 4
          %s251 = scalar_lea.vmem %s1, %s250
          %s252 = smul.u32 4, %s26
        $region16: #{raw_global_pointer.1} parent=11 // pred_fallthru
          _
        // Predicated region
        $region17: #{raw_global_pointer.1} parent=11 // pred_check
          %p253 = pneg %p106
        $region18: #{raw_global_pointer.1} parent=11 // pred_check_branch
          %255 = sbr.rel (%p253) target = $region20
        $region19: #{raw_global_pointer.1} parent=11 // pred_region
          %s256 = smul.u32 4, %s26
          %p257 = scmp.lt.s32.totalorder %s256, 3
          %s258 = scalar_select %p257, %s256, 3
          %s259 = scalar_lea.vmem %s2, %s258
          %s260 = smul.u32 4, %s26
        $region20: #{raw_global_pointer.1} parent=11 // pred_fallthru
          _
        // Predicated region
        $region21: #{raw_global_pointer.1} parent=11 // pred_check
          %p261 = pneg %p127
        $region22: #{raw_global_pointer.1} parent=11 // pred_check_branch
          %263 = sbr.rel (%p261) target = $region24
        $region23: #{raw_global_pointer.1} parent=11 // pred_region
          _
        $region24: #{raw_global_pointer.1} parent=11 // pred_fallthru
          _
        // Predicated region
        $region25: #{raw_global_pointer.1} parent=11 // pred_check
          %p264 = pneg %p200
        $region26: #{raw_global_pointer.1} parent=11 // pred_check_branch
          %266 = sbr.rel (%p264) target = $region28
        $region27: #{raw_global_pointer.1} parent=11 // pred_region
          _
        $region28: #{raw_global_pointer.1} parent=11 // pred_fallthru
          _
      $region12: #{raw_global_pointer.1} parent=5 // pred_fallthru
        _
      %p267 = scmp.lt.s32.totalorder %s16, 2
      // Predicated region
      $region29: #{raw_global_pointer.1} parent=5 // pred_check
        %p268 = pneg %p267
      $region30: #{raw_global_pointer.1} parent=5 // pred_check_branch
        %270 = sbr.rel (%p268) target = $region32
      $region31: #{raw_global_pointer.1} parent=5 // pred_region
        // Predicated region
        $region33: #{raw_global_pointer.1} parent=31 // pred_check
          %p271 = pneg %p48
        $region34: #{raw_global_pointer.1} parent=31 // pred_check_branch
          %273 = sbr.rel (%p271) target = $region36
        $region35: #{raw_global_pointer.1} parent=31 // pred_region
          %p274 = scmp.lt.s32.totalorder %s23, 1
          %s275 = scalar_select %p274, %s23, 1
          %s276 = smul.addr %s275, 16
          %s277 = smul.addr %s276, 4
          %s278 = scalar_lea.vmem %s0, %s277
        $region36: #{raw_global_pointer.1} parent=31 // pred_fallthru
          _
        // Predicated region
        $region37: #{raw_global_pointer.1} parent=31 // pred_check
          %p279 = pneg %p147
        $region38: #{raw_global_pointer.1} parent=31 // pred_check_branch
          %281 = sbr.rel (%p279) target = $region40
        $region39: #{raw_global_pointer.1} parent=31 // pred_region
          %p282 = scmp.lt.s32.totalorder %s23, 1
          %s283 = scalar_select %p282, %s23, 1
          %s284 = smul.addr %s283, 16
          %s285 = smul.addr %s284, 8
          %s286 = scalar_lea.vmem %s4, %s285
        $region40: #{raw_global_pointer.1} parent=31 // pred_fallthru
          _
        // Predicated region
        $region41: #{raw_global_pointer.1} parent=31 // pred_check
          %p287 = pneg %p173
        $region42: #{raw_global_pointer.1} parent=31 // pred_check_branch
          %289 = sbr.rel (%p287) target = $region44
        $region43: #{raw_global_pointer.1} parent=31 // pred_region
          %p290 = scmp.lt.s32.totalorder %s23, 1
          %s291 = scalar_select %p290, %s23, 1
          %s292 = scalar_lea.vmem %s5, %s291
        $region44: #{raw_global_pointer.1} parent=31 // pred_fallthru
          _
      $region32: #{raw_global_pointer.1} parent=5 // pred_fallthru
        _
      %p293 = scmp.le.s32.totalorder 1, %s16
      %p294 = scmp.lt.s32.totalorder %s16, 3
      %p295 = pnand %p293, %p294
      %p296 = pneg %p295
      // Predicated region
      $region45: #{raw_global_pointer.1} parent=5 // pred_check
        _
      $region46: #{raw_global_pointer.1} parent=5 // pred_check_branch
        %298 = sbr.rel (%p295) target = $region48
      $region47: #{raw_global_pointer.1} parent=5 // pred_region
        %s299 = ssub.s32 %s16, 1
        %p300 = scmp.lt.s32.totalorder %s25, 1
        %s301 = scalar_select %p300, %s25, 1
        %s302 = smul.addr %s301, 16
        %s303 = smul.addr %s302, 4
        %s304 = scalar_lea.vmem %s0, %s303
        %p305 = pneg %p54
        %p306 = pneg %p51
        %s307 = smul.u32 4, %s26
        %p308 = scmp.lt.s32.totalorder %s307, 3
        %s309 = scalar_select %p308, %s307, 3
        %s310 = smul.addr %s309, 16
        %s311 = smul.addr %s310, 4
        %s312 = scalar_lea.vmem %s1, %s311
        %p313 = pneg %p80
        %p314 = pneg %p77
        %s315 = smul.u32 4, %s26
        %p316 = scmp.lt.s32.totalorder %s315, 3
        %s317 = scalar_select %p316, %s315, 3
        %s318 = scalar_lea.vmem %s2, %s317
        %p319 = pneg %p106
        %p320 = pneg %p103
        %p321 = pneg %p127
        %p322 = pneg %p124
        %p323 = scmp.lt.s32.totalorder %s25, 1
        %s324 = scalar_select %p323, %s25, 1
        %s325 = smul.addr %s324, 16
        %s326 = smul.addr %s325, 8
        %s327 = scalar_lea.vmem %s4, %s326
        %p328 = pneg %p153
        %p329 = pneg %p150
        %p330 = scmp.lt.s32.totalorder %s25, 1
        %s331 = scalar_select %p330, %s25, 1
        %s332 = scalar_lea.vmem %s5, %s331
        %p333 = pneg %p179
        %p334 = pneg %p176
        %p335 = pneg %p200
        %p336 = pneg %p197
        %p337 = pneg %p228
        %p338 = pneg %p225
        %s339 = sand.u32 %s215, 1
        %s340 = scalar_lea.sflag [#allocation3], %s339
        %s341 = sand.u32 %s215, 1
        %s342 = smul.addr %s341, 512
        %s343 = scalar_lea.vmem [#allocation2], %s342
        %p344 = scmp.lt.s32.totalorder %s25, 1
        %s345 = scalar_select %p344, %s25, 1
        %s346 = smul.addr %s345, 16
        %s347 = smul.addr %s346, 4
        %s348 = scalar_lea.vmem %s0, %s347
        %s349 = smul.u32 4, %s26
        %p350 = scmp.lt.s32.totalorder %s349, 3
        %s351 = scalar_select %p350, %s349, 3
        %s352 = smul.addr %s351, 16
        %s353 = smul.addr %s352, 4
        %s354 = scalar_lea.vmem %s1, %s353
        %s355 = smul.u32 4, %s26
        %s356 = smul.u32 4, %s26
        %p357 = scmp.lt.s32.totalorder %s356, 3
        %s358 = scalar_select %p357, %s356, 3
        %s359 = scalar_lea.vmem %s2, %s358
        %s360 = smul.u32 4, %s26
        %p361 = scmp.lt.s32.totalorder %s25, 1
        %s362 = scalar_select %p361, %s25, 1
        %s363 = smul.addr %s362, 16
        %s364 = smul.addr %s363, 8
        %s365 = scalar_lea.vmem %s4, %s364
        %p366 = scmp.lt.s32.totalorder %s25, 1
        %s367 = scalar_select %p366, %s25, 1
        %s368 = scalar_lea.vmem %s5, %s367
        %s369 = smul.u32 4, %s26
        %v371 = vld [vmem:[%s348] sm:$0xf]
        %v372 = vld [vmem:[%s348 + $0x4] sm:$0xf]
        %v373 = vld [vmem:[%s348 + $0x8] sm:$0xf]
        %v374 = vld [vmem:[%s348 + $0xc] sm:$0xf]
        %v375 = vld [vmem:[%s348 + $0x10] sm:$0xf]
        %v376 = vld [vmem:[%s348 + $0x14] sm:$0xf]
        %v377 = vld [vmem:[%s348 + $0x18] sm:$0xf]
        %v378 = vld [vmem:[%s348 + $0x1c] sm:$0xf]
        %v379 = vld [vmem:[%s348 + $0x20] sm:$0xf]
        %v380 = vld [vmem:[%s348 + $0x24] sm:$0xf]
        %v381 = vld [vmem:[%s348 + $0x28] sm:$0xf]
        %v382 = vld [vmem:[%s348 + $0x2c] sm:$0xf]
        %v383 = vld [vmem:[%s348 + $0x30] sm:$0xf]
        %v384 = vld [vmem:[%s348 + $0x34] sm:$0xf]
        %v385 = vld [vmem:[%s348 + $0x38] sm:$0xf]
        %v386 = vld [vmem:[%s348 + $0x3c] sm:$0xf]
        %v387 = vld [vmem:[%s3] sm:$0xff]
        %v388 = vld [vmem:[%s3 + $0x8] sm:$0xff]
        %v389 = vld [vmem:[%s3 + $0x10] sm:$0xff]
        %v390 = vld [vmem:[%s3 + $0x18] sm:$0xff]
        %v391 = vld [vmem:[%s3 + $0x20] sm:$0xff]
        %v392 = vld [vmem:[%s3 + $0x28] sm:$0xff]
        %v393 = vld [vmem:[%s3 + $0x30] sm:$0xff]
        %v394 = vld [vmem:[%s3 + $0x38] sm:$0xff]
        %v395 = vld [vmem:[%s3 + $0x40] sm:$0xff]
        %v396 = vld [vmem:[%s3 + $0x48] sm:$0xff]
        %v397 = vld [vmem:[%s3 + $0x50] sm:$0xff]
        %v398 = vld [vmem:[%s3 + $0x58] sm:$0xff]
        %v399 = vld [vmem:[%s3 + $0x60] sm:$0xff]
        %v400 = vld [vmem:[%s3 + $0x68] sm:$0xff]
        %v401 = vld [vmem:[%s3 + $0x70] sm:$0xff]
        %v402 = vld [vmem:[%s3 + $0x78] sm:$0xff]
        %v403 = vld [vmem:[%s365] sm:$0xff]
        %v404 = vld [vmem:[%s365 + $0x8] sm:$0xff]
        %v405 = vld [vmem:[%s365 + $0x10] sm:$0xff]
        %v406 = vld [vmem:[%s365 + $0x18] sm:$0xff]
        %v407 = vld [vmem:[%s365 + $0x20] sm:$0xff]
        %v408 = vld [vmem:[%s365 + $0x28] sm:$0xff]
        %v409 = vld [vmem:[%s365 + $0x30] sm:$0xff]
        %v410 = vld [vmem:[%s365 + $0x38] sm:$0xff]
        %v411 = vld [vmem:[%s365 + $0x40] sm:$0xff]
        %v412 = vld [vmem:[%s365 + $0x48] sm:$0xff]
        %v413 = vld [vmem:[%s365 + $0x50] sm:$0xff]
        %v414 = vld [vmem:[%s365 + $0x58] sm:$0xff]
        %v415 = vld [vmem:[%s365 + $0x60] sm:$0xff]
        %v416 = vld [vmem:[%s365 + $0x68] sm:$0xff]
        %v417 = vld [vmem:[%s365 + $0x70] sm:$0xff]
        %v418 = vld [vmem:[%s365 + $0x78] sm:$0xff]
        %v419 = vld [vmem:[%s354] sm:$0xf]
        %v420 = vld [vmem:[%s354 + $0x4] sm:$0xf]
        %v421 = vld [vmem:[%s354 + $0x8] sm:$0xf]
        %v422 = vld [vmem:[%s354 + $0xc] sm:$0xf]
        %v423 = vld [vmem:[%s354 + $0x10] sm:$0xf]
        %v424 = vld [vmem:[%s354 + $0x14] sm:$0xf]
        %v425 = vld [vmem:[%s354 + $0x18] sm:$0xf]
        %v426 = vld [vmem:[%s354 + $0x1c] sm:$0xf]
        %v427 = vld [vmem:[%s354 + $0x20] sm:$0xf]
        %v428 = vld [vmem:[%s354 + $0x24] sm:$0xf]
        %v429 = vld [vmem:[%s354 + $0x28] sm:$0xf]
        %v430 = vld [vmem:[%s354 + $0x2c] sm:$0xf]
        %v431 = vld [vmem:[%s354 + $0x30] sm:$0xf]
        %v432 = vld [vmem:[%s354 + $0x34] sm:$0xf]
        %v433 = vld [vmem:[%s354 + $0x38] sm:$0xf]
        %v434 = vld [vmem:[%s354 + $0x3c] sm:$0xf]
        %v435 = vld [vmem:[%s359] sm:$0x1]
        %v437 = vlaneseq
        %v438 = vshrl.u32 %v437, 7
        %v439 = vsub.s32 0, %v438
        %v440 = vrot.slane %v435, %v439
        %v458 = vunpack.c.l.b16 %v371
        %v459 = vunpack.c.l.b16 %v372
        %v460 = vunpack.c.l.b16 %v373
        %v461 = vunpack.c.l.b16 %v374
        %v462 = vunpack.c.l.b16 %v375
        %v463 = vunpack.c.l.b16 %v376
        %v464 = vunpack.c.l.b16 %v377
        %v465 = vunpack.c.l.b16 %v378
        %v466 = vunpack.c.l.b16 %v379
        %v467 = vunpack.c.l.b16 %v380
        %v468 = vunpack.c.l.b16 %v381
        %v469 = vunpack.c.l.b16 %v382
        %v470 = vunpack.c.l.b16 %v383
        %v471 = vunpack.c.l.b16 %v384
        %v472 = vunpack.c.l.b16 %v385
        %v473 = vunpack.c.l.b16 %v386
        %v474 = vpack.c.b16 %v459, %v458
        %v475 = vpack.c.b16 %v461, %v460
        %v476 = vpack.c.b16 %v463, %v462
        %v477 = vpack.c.b16 %v465, %v464
        %v478 = vpack.c.b16 %v467, %v466
        %v479 = vpack.c.b16 %v469, %v468
        %v480 = vpack.c.b16 %v471, %v470
        %v481 = vpack.c.b16 %v473, %v472
        %v506 = vunpack.c.l.b16 %v419
        %v507 = vunpack.c.l.b16 %v420
        %v508 = vunpack.c.l.b16 %v421
        %v509 = vunpack.c.l.b16 %v422
        %v510 = vunpack.c.l.b16 %v423
        %v511 = vunpack.c.l.b16 %v424
        %v512 = vunpack.c.l.b16 %v425
        %v513 = vunpack.c.l.b16 %v426
        %v514 = vunpack.c.l.b16 %v427
        %v515 = vunpack.c.l.b16 %v428
        %v516 = vunpack.c.l.b16 %v429
        %v517 = vunpack.c.l.b16 %v430
        %v518 = vunpack.c.l.b16 %v431
        %v519 = vunpack.c.l.b16 %v432
        %v520 = vunpack.c.l.b16 %v433
        %v521 = vunpack.c.l.b16 %v434
        %v522 = vpack.c.b16 %v507, %v506
        %v523 = vpack.c.b16 %v509, %v508
        %v524 = vpack.c.b16 %v511, %v510
        %v525 = vpack.c.b16 %v513, %v512
        %v526 = vpack.c.b16 %v515, %v514
        %v527 = vpack.c.b16 %v517, %v516
        %v528 = vpack.c.b16 %v519, %v518
        %v529 = vpack.c.b16 %v521, %v520
        %538 = vmatprep.subr.bf16.mxu0 0
        %539 = vmatpush1.bf16.msra.mxu0 %v522
        %540 = vmatprep.subr.bf16.mxu0 0
        %541 = vmatpush1.bf16.msra.mxu0 %v523
        %542 = vmatprep.subr.bf16.mxu0 0
        %543 = vmatpush1.bf16.msra.mxu0 %v524
        %544 = vmatprep.subr.bf16.mxu0 0
        %545 = vmatpush1.bf16.msra.mxu0 %v525
        %546 = vmatprep.subr.bf16.mxu0 0
        %547 = vmatpush1.bf16.msra.mxu0 %v526
        %548 = vmatprep.subr.bf16.mxu0 0
        %549 = vmatpush1.bf16.msra.mxu0 %v527
        %550 = vmatprep.subr.bf16.mxu0 0
        %551 = vmatpush1.bf16.msra.mxu0 %v528
        %552 = vmatprep.subr.bf16.mxu0 0
        %553 = vmatpush1.bf16.msra.mxu0 %v529
        %554 = vmatprep.subr.bf16.mxu0 0
        %555 = vmatpush1.bf16.msra.mxu0 0
        %556 = vmatprep.subr.bf16.mxu0 0
        %557 = vmatpush1.bf16.msra.mxu0 0
        %558 = vmatprep.subr.bf16.mxu0 0
        %559 = vmatpush1.bf16.msra.mxu0 0
        %560 = vmatprep.subr.bf16.mxu0 0
        %561 = vmatpush1.bf16.msra.mxu0 0
        %562 = vmatprep.subr.bf16.mxu0 0
        %563 = vmatpush1.bf16.msra.mxu0 0
        %564 = vmatprep.subr.bf16.mxu0 0
        %565 = vmatpush1.bf16.msra.mxu0 0
        %566 = vmatprep.subr.bf16.mxu0 0
        %567 = vmatpush1.bf16.msra.mxu0 0
        %568 = vmatprep.subr.bf16.mxu0 0
        %569 = vmatpush1.bf16.msra.mxu0 0
        %570 = vmatprep.mubr.bf16.mxu0 0
        %571 = vmatmul.mubr.bf16.gmra.mrb[0].mxu0 %v474
        %v572 = vpop.f32.mrb[0].mxu0
        %v573 = vadd.f32 %v440, %v572
        %v574 = vpop.f32.mrb[0].mxu0
        %v575 = vpop.f32.mrb[0].mxu0
        %v576 = vadd.f32 %v440, %v575
        %v577 = vpop.f32.mrb[0].mxu0
        %578 = vmatprep.mubr.bf16.mxu0 0
        %579 = vmatmul.mubr.bf16.gmra.mrb[0].mxu0 %v475
        %v580 = vpop.f32.mrb[0].mxu0
        %v581 = vadd.f32 %v440, %v580
        %v582 = vpop.f32.mrb[0].mxu0
        %v583 = vpop.f32.mrb[0].mxu0
        %v584 = vadd.f32 %v440, %v583
        %v585 = vpop.f32.mrb[0].mxu0
        %586 = vmatprep.mubr.bf16.mxu0 0
        %587 = vmatmul.mubr.bf16.gmra.mrb[0].mxu0 %v476
        %v588 = vpop.f32.mrb[0].mxu0
        %v589 = vadd.f32 %v440, %v588
        %v590 = vpop.f32.mrb[0].mxu0
        %v591 = vpop.f32.mrb[0].mxu0
        %v592 = vadd.f32 %v440, %v591
        %v593 = vpop.f32.mrb[0].mxu0
        %594 = vmatprep.mubr.bf16.mxu0 0
        %595 = vmatmul.mubr.bf16.gmra.mrb[0].mxu0 %v477
        %v596 = vpop.f32.mrb[0].mxu0
        %v597 = vadd.f32 %v440, %v596
        %v598 = vpop.f32.mrb[0].mxu0
        %v599 = vpop.f32.mrb[0].mxu0
        %v600 = vadd.f32 %v440, %v599
        %v601 = vpop.f32.mrb[0].mxu0
        %602 = vmatprep.mubr.bf16.mxu0 0
        %603 = vmatmul.mubr.bf16.gmra.mrb[0].mxu0 %v478
        %v604 = vpop.f32.mrb[0].mxu0
        %v605 = vadd.f32 %v440, %v604
        %v606 = vpop.f32.mrb[0].mxu0
        %v607 = vpop.f32.mrb[0].mxu0
        %v608 = vadd.f32 %v440, %v607
        %v609 = vpop.f32.mrb[0].mxu0
        %610 = vmatprep.mubr.bf16.mxu0 0
        %611 = vmatmul.mubr.bf16.gmra.mrb[0].mxu0 %v479
        %v612 = vpop.f32.mrb[0].mxu0
        %v613 = vadd.f32 %v440, %v612
        %v614 = vpop.f32.mrb[0].mxu0
        %v615 = vpop.f32.mrb[0].mxu0
        %v616 = vadd.f32 %v440, %v615
        %v617 = vpop.f32.mrb[0].mxu0
        %618 = vmatprep.mubr.bf16.mxu0 0
        %619 = vmatmul.mubr.bf16.gmra.mrb[0].mxu0 %v480
        %v620 = vpop.f32.mrb[0].mxu0
        %v621 = vadd.f32 %v440, %v620
        %v622 = vpop.f32.mrb[0].mxu0
        %v623 = vpop.f32.mrb[0].mxu0
        %v624 = vadd.f32 %v440, %v623
        %v625 = vpop.f32.mrb[0].mxu0
        %626 = vmatprep.mubr.bf16.mxu0 0
        %627 = vmatmul.mubr.bf16.gmra.mrb[0].mxu0 %v481
        %v628 = vpop.f32.mrb[0].mxu0
        %v629 = vadd.f32 %v440, %v628
        %v630 = vpop.f32.mrb[0].mxu0
        %v631 = vpop.f32.mrb[0].mxu0
        %v632 = vadd.f32 %v440, %v631
        %v633 = vpop.f32.mrb[0].mxu0
        %634 = vdwg.mxu0
        %v635 = vmul.f32 %v573, %v387
        %v636 = vmul.f32 %v576, %v388
        %v637 = vmul.f32 %v581, %v389
        %v638 = vmul.f32 %v584, %v390
        %v639 = vmul.f32 %v589, %v391
        %v640 = vmul.f32 %v592, %v392
        %v641 = vmul.f32 %v597, %v393
        %v642 = vmul.f32 %v600, %v394
        %v643 = vmul.f32 %v605, %v395
        %v644 = vmul.f32 %v608, %v396
        %v645 = vmul.f32 %v613, %v397
        %v646 = vmul.f32 %v616, %v398
        %v647 = vmul.f32 %v621, %v399
        %v648 = vmul.f32 %v624, %v400
        %v649 = vmul.f32 %v629, %v401
        %v650 = vmul.f32 %v632, %v402
        %vm651 = vcmask 1048064
        %652 = vrot.lane.b32.xlu0 %v573, 64
        %v653 = vpop.permute.xlu0 %652
        %v654 = vsel %vm651, %v653, %v573
        %655 = vrot.lane.b32.xlu0 %v576, 64
        %v656 = vpop.permute.xlu0 %655
        %v657 = vsel %vm651, %v656, %v576
        %658 = vrot.lane.b32.xlu0 %v581, 64
        %v659 = vpop.permute.xlu0 %658
        %v660 = vsel %vm651, %v659, %v581
        %661 = vrot.lane.b32.xlu0 %v584, 64
        %v662 = vpop.permute.xlu0 %661
        %v663 = vsel %vm651, %v662, %v584
        %664 = vrot.lane.b32.xlu0 %v589, 64
        %v665 = vpop.permute.xlu0 %664
        %v666 = vsel %vm651, %v665, %v589
        %667 = vrot.lane.b32.xlu0 %v592, 64
        %v668 = vpop.permute.xlu0 %667
        %v669 = vsel %vm651, %v668, %v592
        %670 = vrot.lane.b32.xlu0 %v597, 64
        %v671 = vpop.permute.xlu0 %670
        %v672 = vsel %vm651, %v671, %v597
        %673 = vrot.lane.b32.xlu0 %v600, 64
        %v674 = vpop.permute.xlu0 %673
        %v675 = vsel %vm651, %v674, %v600
        %676 = vrot.lane.b32.xlu0 %v605, 64
        %v677 = vpop.permute.xlu0 %676
        %v678 = vsel %vm651, %v677, %v605
        %679 = vrot.lane.b32.xlu0 %v608, 64
        %v680 = vpop.permute.xlu0 %679
        %v681 = vsel %vm651, %v680, %v608
        %682 = vrot.lane.b32.xlu0 %v613, 64
        %v683 = vpop.permute.xlu0 %682
        %v684 = vsel %vm651, %v683, %v613
        %685 = vrot.lane.b32.xlu0 %v616, 64
        %v686 = vpop.permute.xlu0 %685
        %v687 = vsel %vm651, %v686, %v616
        %688 = vrot.lane.b32.xlu0 %v621, 64
        %v689 = vpop.permute.xlu0 %688
        %v690 = vsel %vm651, %v689, %v621
        %691 = vrot.lane.b32.xlu0 %v624, 64
        %v692 = vpop.permute.xlu0 %691
        %v693 = vsel %vm651, %v692, %v624
        %694 = vrot.lane.b32.xlu0 %v629, 64
        %v695 = vpop.permute.xlu0 %694
        %v696 = vsel %vm651, %v695, %v629
        %697 = vrot.lane.b32.xlu0 %v632, 64
        %v698 = vpop.permute.xlu0 %697
        %v699 = vsel %vm651, %v698, %v632
        %700 = vrot.lane.b32.xlu0 %v654, 64
        %v701 = vpop.permute.xlu0 %700
        %702 = vrot.lane.b32.xlu0 %v657, 64
        %v703 = vpop.permute.xlu0 %702
        %704 = vrot.lane.b32.xlu0 %v660, 64
        %v705 = vpop.permute.xlu0 %704
        %706 = vrot.lane.b32.xlu0 %v663, 64
        %v707 = vpop.permute.xlu0 %706
        %708 = vrot.lane.b32.xlu0 %v666, 64
        %v709 = vpop.permute.xlu0 %708
        %710 = vrot.lane.b32.xlu0 %v669, 64
        %v711 = vpop.permute.xlu0 %710
        %712 = vrot.lane.b32.xlu0 %v672, 64
        %v713 = vpop.permute.xlu0 %712
        %714 = vrot.lane.b32.xlu0 %v675, 64
        %v715 = vpop.permute.xlu0 %714
        %716 = vrot.lane.b32.xlu0 %v678, 64
        %v717 = vpop.permute.xlu0 %716
        %718 = vrot.lane.b32.xlu0 %v681, 64
        %v719 = vpop.permute.xlu0 %718
        %720 = vrot.lane.b32.xlu0 %v684, 64
        %v721 = vpop.permute.xlu0 %720
        %722 = vrot.lane.b32.xlu0 %v687, 64
        %v723 = vpop.permute.xlu0 %722
        %724 = vrot.lane.b32.xlu0 %v690, 64
        %v725 = vpop.permute.xlu0 %724
        %726 = vrot.lane.b32.xlu0 %v693, 64
        %v727 = vpop.permute.xlu0 %726
        %728 = vrot.lane.b32.xlu0 %v696, 64
        %v729 = vpop.permute.xlu0 %728
        %730 = vrot.lane.b32.xlu0 %v699, 64
        %v731 = vpop.permute.xlu0 %730
        %v732 = vsel %vm651, %v701, %v573
        %v733 = vsel %vm651, %v703, %v576
        %v734 = vsel %vm651, %v705, %v581
        %v735 = vsel %vm651, %v707, %v584
        %v736 = vsel %vm651, %v709, %v589
        %v737 = vsel %vm651, %v711, %v592
        %v738 = vsel %vm651, %v713, %v597
        %v739 = vsel %vm651, %v715, %v600
        %v740 = vsel %vm651, %v717, %v605
        %v741 = vsel %vm651, %v719, %v608
        %v742 = vsel %vm651, %v721, %v613
        %v743 = vsel %vm651, %v723, %v616
        %v744 = vsel %vm651, %v725, %v621
        %v745 = vsel %vm651, %v727, %v624
        %v746 = vsel %vm651, %v729, %v629
        %v747 = vsel %vm651, %v731, %v632
        %764 = vrot.lane.b32.xlu0 %v387, 96
        %v765 = vpop.permute.xlu0 %764
        %766 = vrot.lane.b32.xlu0 %v388, 96
        %v767 = vpop.permute.xlu0 %766
        %768 = vrot.lane.b32.xlu0 %v389, 96
        %v769 = vpop.permute.xlu0 %768
        %770 = vrot.lane.b32.xlu0 %v390, 96
        %v771 = vpop.permute.xlu0 %770
        %772 = vrot.lane.b32.xlu0 %v391, 96
        %v773 = vpop.permute.xlu0 %772
        %774 = vrot.lane.b32.xlu0 %v392, 96
        %v775 = vpop.permute.xlu0 %774
        %776 = vrot.lane.b32.xlu0 %v393, 96
        %v777 = vpop.permute.xlu0 %776
        %778 = vrot.lane.b32.xlu0 %v394, 96
        %v779 = vpop.permute.xlu0 %778
        %780 = vrot.lane.b32.xlu0 %v395, 96
        %v781 = vpop.permute.xlu0 %780
        %782 = vrot.lane.b32.xlu0 %v396, 96
        %v783 = vpop.permute.xlu0 %782
        %784 = vrot.lane.b32.xlu0 %v397, 96
        %v785 = vpop.permute.xlu0 %784
        %786 = vrot.lane.b32.xlu0 %v398, 96
        %v787 = vpop.permute.xlu0 %786
        %788 = vrot.lane.b32.xlu0 %v399, 96
        %v789 = vpop.permute.xlu0 %788
        %790 = vrot.lane.b32.xlu0 %v400, 96
        %v791 = vpop.permute.xlu0 %790
        %792 = vrot.lane.b32.xlu0 %v401, 96
        %v793 = vpop.permute.xlu0 %792
        %794 = vrot.lane.b32.xlu0 %v402, 96
        %v795 = vpop.permute.xlu0 %794
        %v812 = vmul.f32 %v732, %v765
        %v813 = vmul.f32 %v733, %v767
        %v814 = vmul.f32 %v734, %v769
        %v815 = vmul.f32 %v735, %v771
        %v816 = vmul.f32 %v736, %v773
        %v817 = vmul.f32 %v737, %v775
        %v818 = vmul.f32 %v738, %v777
        %v819 = vmul.f32 %v739, %v779
        %v820 = vmul.f32 %v740, %v781
        %v821 = vmul.f32 %v741, %v783
        %v822 = vmul.f32 %v742, %v785
        %v823 = vmul.f32 %v743, %v787
        %v824 = vmul.f32 %v744, %v789
        %v825 = vmul.f32 %v745, %v791
        %v826 = vmul.f32 %v746, %v793
        %v827 = vmul.f32 %v747, %v795
        %844 = vrot.lane.b32.xlu0 %v812, 96
        %v845 = vpop.permute.xlu0 %844
        %846 = vrot.lane.b32.xlu0 %v813, 96
        %v847 = vpop.permute.xlu0 %846
        %848 = vrot.lane.b32.xlu0 %v814, 96
        %v849 = vpop.permute.xlu0 %848
        %850 = vrot.lane.b32.xlu0 %v815, 96
        %v851 = vpop.permute.xlu0 %850
        %852 = vrot.lane.b32.xlu0 %v816, 96
        %v853 = vpop.permute.xlu0 %852
        %854 = vrot.lane.b32.xlu0 %v817, 96
        %v855 = vpop.permute.xlu0 %854
        %856 = vrot.lane.b32.xlu0 %v818, 96
        %v857 = vpop.permute.xlu0 %856
        %858 = vrot.lane.b32.xlu0 %v819, 96
        %v859 = vpop.permute.xlu0 %858
        %860 = vrot.lane.b32.xlu0 %v820, 96
        %v861 = vpop.permute.xlu0 %860
        %862 = vrot.lane.b32.xlu0 %v821, 96
        %v863 = vpop.permute.xlu0 %862
        %864 = vrot.lane.b32.xlu0 %v822, 96
        %v865 = vpop.permute.xlu0 %864
        %866 = vrot.lane.b32.xlu0 %v823, 96
        %v867 = vpop.permute.xlu0 %866
        %868 = vrot.lane.b32.xlu0 %v824, 96
        %v869 = vpop.permute.xlu0 %868
        %870 = vrot.lane.b32.xlu0 %v825, 96
        %v871 = vpop.permute.xlu0 %870
        %872 = vrot.lane.b32.xlu0 %v826, 96
        %v873 = vpop.permute.xlu0 %872
        %874 = vrot.lane.b32.xlu0 %v827, 96
        %v875 = vpop.permute.xlu0 %874
        %v892 = vadd.f32 %v635, %v845
        %v893 = vadd.f32 %v636, %v847
        %v894 = vadd.f32 %v637, %v849
        %v895 = vadd.f32 %v638, %v851
        %v896 = vadd.f32 %v639, %v853
        %v897 = vadd.f32 %v640, %v855
        %v898 = vadd.f32 %v641, %v857
        %v899 = vadd.f32 %v642, %v859
        %v900 = vadd.f32 %v643, %v861
        %v901 = vadd.f32 %v644, %v863
        %v902 = vadd.f32 %v645, %v865
        %v903 = vadd.f32 %v646, %v867
        %v904 = vadd.f32 %v647, %v869
        %v905 = vadd.f32 %v648, %v871
        %v906 = vadd.f32 %v649, %v873
        %v907 = vadd.f32 %v650, %v875
        %v908 = vpack.c.bf16 %v893, %v892
        %v909 = vpack.c.bf16 %v895, %v894
        %v910 = vpack.c.bf16 %v897, %v896
        %v911 = vpack.c.bf16 %v899, %v898
        %v912 = vpack.c.bf16 %v901, %v900
        %v913 = vpack.c.bf16 %v903, %v902
        %v914 = vpack.c.bf16 %v905, %v904
        %v915 = vpack.c.bf16 %v907, %v906
        %916 = vrot.lane.b32.xlu0 %v387, 64
        %v917 = vpop.permute.xlu0 %916
        %918 = vrot.lane.b32.xlu0 %v388, 64
        %v919 = vpop.permute.xlu0 %918
        %920 = vrot.lane.b32.xlu0 %v389, 64
        %v921 = vpop.permute.xlu0 %920
        %922 = vrot.lane.b32.xlu0 %v390, 64
        %v923 = vpop.permute.xlu0 %922
        %924 = vrot.lane.b32.xlu0 %v391, 64
        %v925 = vpop.permute.xlu0 %924
        %926 = vrot.lane.b32.xlu0 %v392, 64
        %v927 = vpop.permute.xlu0 %926
        %928 = vrot.lane.b32.xlu0 %v393, 64
        %v929 = vpop.permute.xlu0 %928
        %930 = vrot.lane.b32.xlu0 %v394, 64
        %v931 = vpop.permute.xlu0 %930
        %932 = vrot.lane.b32.xlu0 %v395, 64
        %v933 = vpop.permute.xlu0 %932
        %934 = vrot.lane.b32.xlu0 %v396, 64
        %v935 = vpop.permute.xlu0 %934
        %936 = vrot.lane.b32.xlu0 %v397, 64
        %v937 = vpop.permute.xlu0 %936
        %938 = vrot.lane.b32.xlu0 %v398, 64
        %v939 = vpop.permute.xlu0 %938
        %940 = vrot.lane.b32.xlu0 %v399, 64
        %v941 = vpop.permute.xlu0 %940
        %942 = vrot.lane.b32.xlu0 %v400, 64
        %v943 = vpop.permute.xlu0 %942
        %944 = vrot.lane.b32.xlu0 %v401, 64
        %v945 = vpop.permute.xlu0 %944
        %946 = vrot.lane.b32.xlu0 %v402, 64
        %v947 = vpop.permute.xlu0 %946
        %v964 = vmul.f32 %v573, %v917
        %v965 = vmul.f32 %v576, %v919
        %v966 = vmul.f32 %v581, %v921
        %v967 = vmul.f32 %v584, %v923
        %v968 = vmul.f32 %v589, %v925
        %v969 = vmul.f32 %v592, %v927
        %v970 = vmul.f32 %v597, %v929
        %v971 = vmul.f32 %v600, %v931
        %v972 = vmul.f32 %v605, %v933
        %v973 = vmul.f32 %v608, %v935
        %v974 = vmul.f32 %v613, %v937
        %v975 = vmul.f32 %v616, %v939
        %v976 = vmul.f32 %v621, %v941
        %v977 = vmul.f32 %v624, %v943
        %v978 = vmul.f32 %v629, %v945
        %v979 = vmul.f32 %v632, %v947
        %996 = vrot.lane.b32.xlu0 %v573, 64
        %v997 = vpop.permute.xlu0 %996
        %998 = vrot.lane.b32.xlu0 %v576, 64
        %v999 = vpop.permute.xlu0 %998
        %1000 = vrot.lane.b32.xlu0 %v581, 64
        %v1001 = vpop.permute.xlu0 %1000
        %1002 = vrot.lane.b32.xlu0 %v584, 64
        %v1003 = vpop.permute.xlu0 %1002
        %1004 = vrot.lane.b32.xlu0 %v589, 64
        %v1005 = vpop.permute.xlu0 %1004
        %1006 = vrot.lane.b32.xlu0 %v592, 64
        %v1007 = vpop.permute.xlu0 %1006
        %1008 = vrot.lane.b32.xlu0 %v597, 64
        %v1009 = vpop.permute.xlu0 %1008
        %1010 = vrot.lane.b32.xlu0 %v600, 64
        %v1011 = vpop.permute.xlu0 %1010
        %1012 = vrot.lane.b32.xlu0 %v605, 64
        %v1013 = vpop.permute.xlu0 %1012
        %1014 = vrot.lane.b32.xlu0 %v608, 64
        %v1015 = vpop.permute.xlu0 %1014
        %1016 = vrot.lane.b32.xlu0 %v613, 64
        %v1017 = vpop.permute.xlu0 %1016
        %1018 = vrot.lane.b32.xlu0 %v616, 64
        %v1019 = vpop.permute.xlu0 %1018
        %1020 = vrot.lane.b32.xlu0 %v621, 64
        %v1021 = vpop.permute.xlu0 %1020
        %1022 = vrot.lane.b32.xlu0 %v624, 64
        %v1023 = vpop.permute.xlu0 %1022
        %1024 = vrot.lane.b32.xlu0 %v629, 64
        %v1025 = vpop.permute.xlu0 %1024
        %1026 = vrot.lane.b32.xlu0 %v632, 64
        %v1027 = vpop.permute.xlu0 %1026
        %1044 = vrot.lane.b32.xlu0 %v997, 64
        %v1045 = vpop.permute.xlu0 %1044
        %v1046 = vsel %vm651, %v1045, %v997
        %1047 = vrot.lane.b32.xlu0 %v999, 64
        %v1048 = vpop.permute.xlu0 %1047
        %v1049 = vsel %vm651, %v1048, %v999
        %1050 = vrot.lane.b32.xlu0 %v1001, 64
        %v1051 = vpop.permute.xlu0 %1050
        %v1052 = vsel %vm651, %v1051, %v1001
        %1053 = vrot.lane.b32.xlu0 %v1003, 64
        %v1054 = vpop.permute.xlu0 %1053
        %v1055 = vsel %vm651, %v1054, %v1003
        %1056 = vrot.lane.b32.xlu0 %v1005, 64
        %v1057 = vpop.permute.xlu0 %1056
        %v1058 = vsel %vm651, %v1057, %v1005
        %1059 = vrot.lane.b32.xlu0 %v1007, 64
        %v1060 = vpop.permute.xlu0 %1059
        %v1061 = vsel %vm651, %v1060, %v1007
        %1062 = vrot.lane.b32.xlu0 %v1009, 64
        %v1063 = vpop.permute.xlu0 %1062
        %v1064 = vsel %vm651, %v1063, %v1009
        %1065 = vrot.lane.b32.xlu0 %v1011, 64
        %v1066 = vpop.permute.xlu0 %1065
        %v1067 = vsel %vm651, %v1066, %v1011
        %1068 = vrot.lane.b32.xlu0 %v1013, 64
        %v1069 = vpop.permute.xlu0 %1068
        %v1070 = vsel %vm651, %v1069, %v1013
        %1071 = vrot.lane.b32.xlu0 %v1015, 64
        %v1072 = vpop.permute.xlu0 %1071
        %v1073 = vsel %vm651, %v1072, %v1015
        %1074 = vrot.lane.b32.xlu0 %v1017, 64
        %v1075 = vpop.permute.xlu0 %1074
        %v1076 = vsel %vm651, %v1075, %v1017
        %1077 = vrot.lane.b32.xlu0 %v1019, 64
        %v1078 = vpop.permute.xlu0 %1077
        %v1079 = vsel %vm651, %v1078, %v1019
        %1080 = vrot.lane.b32.xlu0 %v1021, 64
        %v1081 = vpop.permute.xlu0 %1080
        %v1082 = vsel %vm651, %v1081, %v1021
        %1083 = vrot.lane.b32.xlu0 %v1023, 64
        %v1084 = vpop.permute.xlu0 %1083
        %v1085 = vsel %vm651, %v1084, %v1023
        %1086 = vrot.lane.b32.xlu0 %v1025, 64
        %v1087 = vpop.permute.xlu0 %1086
        %v1088 = vsel %vm651, %v1087, %v1025
        %1089 = vrot.lane.b32.xlu0 %v1027, 64
        %v1090 = vpop.permute.xlu0 %1089
        %v1091 = vsel %vm651, %v1090, %v1027
        %1092 = vrot.lane.b32.xlu0 %v1046, 64
        %v1093 = vpop.permute.xlu0 %1092
        %1094 = vrot.lane.b32.xlu0 %v1049, 64
        %v1095 = vpop.permute.xlu0 %1094
        %1096 = vrot.lane.b32.xlu0 %v1052, 64
        %v1097 = vpop.permute.xlu0 %1096
        %1098 = vrot.lane.b32.xlu0 %v1055, 64
        %v1099 = vpop.permute.xlu0 %1098
        %1100 = vrot.lane.b32.xlu0 %v1058, 64
        %v1101 = vpop.permute.xlu0 %1100
        %1102 = vrot.lane.b32.xlu0 %v1061, 64
        %v1103 = vpop.permute.xlu0 %1102
        %1104 = vrot.lane.b32.xlu0 %v1064, 64
        %v1105 = vpop.permute.xlu0 %1104
        %1106 = vrot.lane.b32.xlu0 %v1067, 64
        %v1107 = vpop.permute.xlu0 %1106
        %1108 = vrot.lane.b32.xlu0 %v1070, 64
        %v1109 = vpop.permute.xlu0 %1108
        %1110 = vrot.lane.b32.xlu0 %v1073, 64
        %v1111 = vpop.permute.xlu0 %1110
        %1112 = vrot.lane.b32.xlu0 %v1076, 64
        %v1113 = vpop.permute.xlu0 %1112
        %1114 = vrot.lane.b32.xlu0 %v1079, 64
        %v1115 = vpop.permute.xlu0 %1114
        %1116 = vrot.lane.b32.xlu0 %v1082, 64
        %v1117 = vpop.permute.xlu0 %1116
        %1118 = vrot.lane.b32.xlu0 %v1085, 64
        %v1119 = vpop.permute.xlu0 %1118
        %1120 = vrot.lane.b32.xlu0 %v1088, 64
        %v1121 = vpop.permute.xlu0 %1120
        %1122 = vrot.lane.b32.xlu0 %v1091, 64
        %v1123 = vpop.permute.xlu0 %1122
        %v1124 = vsel %vm651, %v1093, %v997
        %v1125 = vsel %vm651, %v1095, %v999
        %v1126 = vsel %vm651, %v1097, %v1001
        %v1127 = vsel %vm651, %v1099, %v1003
        %v1128 = vsel %vm651, %v1101, %v1005
        %v1129 = vsel %vm651, %v1103, %v1007
        %v1130 = vsel %vm651, %v1105, %v1009
        %v1131 = vsel %vm651, %v1107, %v1011
        %v1132 = vsel %vm651, %v1109, %v1013
        %v1133 = vsel %vm651, %v1111, %v1015
        %v1134 = vsel %vm651, %v1113, %v1017
        %v1135 = vsel %vm651, %v1115, %v1019
        %v1136 = vsel %vm651, %v1117, %v1021
        %v1137 = vsel %vm651, %v1119, %v1023
        %v1138 = vsel %vm651, %v1121, %v1025
        %v1139 = vsel %vm651, %v1123, %v1027
        %v1140 = vmul.f32 %v1124, %v765
        %v1141 = vmul.f32 %v1125, %v767
        %v1142 = vmul.f32 %v1126, %v769
        %v1143 = vmul.f32 %v1127, %v771
        %v1144 = vmul.f32 %v1128, %v773
        %v1145 = vmul.f32 %v1129, %v775
        %v1146 = vmul.f32 %v1130, %v777
        %v1147 = vmul.f32 %v1131, %v779
        %v1148 = vmul.f32 %v1132, %v781
        %v1149 = vmul.f32 %v1133, %v783
        %v1150 = vmul.f32 %v1134, %v785
        %v1151 = vmul.f32 %v1135, %v787
        %v1152 = vmul.f32 %v1136, %v789
        %v1153 = vmul.f32 %v1137, %v791
        %v1154 = vmul.f32 %v1138, %v793
        %v1155 = vmul.f32 %v1139, %v795
        %1172 = vrot.lane.b32.xlu0 %v1140, 32
        %v1173 = vpop.permute.xlu0 %1172
        %1174 = vrot.lane.b32.xlu0 %v1141, 32
        %v1175 = vpop.permute.xlu0 %1174
        %1176 = vrot.lane.b32.xlu0 %v1142, 32
        %v1177 = vpop.permute.xlu0 %1176
        %1178 = vrot.lane.b32.xlu0 %v1143, 32
        %v1179 = vpop.permute.xlu0 %1178
        %1180 = vrot.lane.b32.xlu0 %v1144, 32
        %v1181 = vpop.permute.xlu0 %1180
        %1182 = vrot.lane.b32.xlu0 %v1145, 32
        %v1183 = vpop.permute.xlu0 %1182
        %1184 = vrot.lane.b32.xlu0 %v1146, 32
        %v1185 = vpop.permute.xlu0 %1184
        %1186 = vrot.lane.b32.xlu0 %v1147, 32
        %v1187 = vpop.permute.xlu0 %1186
        %1188 = vrot.lane.b32.xlu0 %v1148, 32
        %v1189 = vpop.permute.xlu0 %1188
        %1190 = vrot.lane.b32.xlu0 %v1149, 32
        %v1191 = vpop.permute.xlu0 %1190
        %1192 = vrot.lane.b32.xlu0 %v1150, 32
        %v1193 = vpop.permute.xlu0 %1192
        %1194 = vrot.lane.b32.xlu0 %v1151, 32
        %v1195 = vpop.permute.xlu0 %1194
        %1196 = vrot.lane.b32.xlu0 %v1152, 32
        %v1197 = vpop.permute.xlu0 %1196
        %1198 = vrot.lane.b32.xlu0 %v1153, 32
        %v1199 = vpop.permute.xlu0 %1198
        %1200 = vrot.lane.b32.xlu0 %v1154, 32
        %v1201 = vpop.permute.xlu0 %1200
        %1202 = vrot.lane.b32.xlu0 %v1155, 32
        %v1203 = vpop.permute.xlu0 %1202
        %v1220 = vadd.f32 %v964, %v1173
        %v1221 = vadd.f32 %v965, %v1175
        %v1222 = vadd.f32 %v966, %v1177
        %v1223 = vadd.f32 %v967, %v1179
        %v1224 = vadd.f32 %v968, %v1181
        %v1225 = vadd.f32 %v969, %v1183
        %v1226 = vadd.f32 %v970, %v1185
        %v1227 = vadd.f32 %v971, %v1187
        %v1228 = vadd.f32 %v972, %v1189
        %v1229 = vadd.f32 %v973, %v1191
        %v1230 = vadd.f32 %v974, %v1193
        %v1231 = vadd.f32 %v975, %v1195
        %v1232 = vadd.f32 %v976, %v1197
        %v1233 = vadd.f32 %v977, %v1199
        %v1234 = vadd.f32 %v978, %v1201
        %v1235 = vadd.f32 %v979, %v1203
        %1237 = vset.pattern.permute.xlu0 0
        %1238 = vperm.xlu0 %1237, %v403
        %v1239 = vpop.permute.xlu0 %1238
        %1242 = vset.pattern.permute.xlu0 0
        %1243 = vperm.xlu0 %1242, %v404
        %v1244 = vpop.permute.xlu0 %1243
        %1247 = vset.pattern.permute.xlu0 0
        %1248 = vperm.xlu0 %1247, %v405
        %v1249 = vpop.permute.xlu0 %1248
        %1252 = vset.pattern.permute.xlu0 0
        %1253 = vperm.xlu0 %1252, %v406
        %v1254 = vpop.permute.xlu0 %1253
        %1257 = vset.pattern.permute.xlu0 0
        %1258 = vperm.xlu0 %1257, %v407
        %v1259 = vpop.permute.xlu0 %1258
        %1262 = vset.pattern.permute.xlu0 0
        %1263 = vperm.xlu0 %1262, %v408
        %v1264 = vpop.permute.xlu0 %1263
        %1267 = vset.pattern.permute.xlu0 0
        %1268 = vperm.xlu0 %1267, %v409
        %v1269 = vpop.permute.xlu0 %1268
        %1272 = vset.pattern.permute.xlu0 0
        %1273 = vperm.xlu0 %1272, %v410
        %v1274 = vpop.permute.xlu0 %1273
        %1277 = vset.pattern.permute.xlu0 0
        %1278 = vperm.xlu0 %1277, %v411
        %v1279 = vpop.permute.xlu0 %1278
        %1282 = vset.pattern.permute.xlu0 0
        %1283 = vperm.xlu0 %1282, %v412
        %v1284 = vpop.permute.xlu0 %1283
        %1287 = vset.pattern.permute.xlu0 0
        %1288 = vperm.xlu0 %1287, %v413
        %v1289 = vpop.permute.xlu0 %1288
        %1292 = vset.pattern.permute.xlu0 0
        %1293 = vperm.xlu0 %1292, %v414
        %v1294 = vpop.permute.xlu0 %1293
        %1297 = vset.pattern.permute.xlu0 0
        %1298 = vperm.xlu0 %1297, %v415
        %v1299 = vpop.permute.xlu0 %1298
        %1302 = vset.pattern.permute.xlu0 0
        %1303 = vperm.xlu0 %1302, %v416
        %v1304 = vpop.permute.xlu0 %1303
        %1307 = vset.pattern.permute.xlu0 0
        %1308 = vperm.xlu0 %1307, %v417
        %v1309 = vpop.permute.xlu0 %1308
        %1312 = vset.pattern.permute.xlu0 0
        %1313 = vperm.xlu0 %1312, %v418
        %v1314 = vpop.permute.xlu0 %1313
        %v1316 = vmul.f32 %v1220, %v1239
        %v1317 = vmul.f32 %v1221, %v1244
        %v1318 = vmul.f32 %v1222, %v1249
        %v1319 = vmul.f32 %v1223, %v1254
        %v1320 = vmul.f32 %v1224, %v1259
        %v1321 = vmul.f32 %v1225, %v1264
        %v1322 = vmul.f32 %v1226, %v1269
        %v1323 = vmul.f32 %v1227, %v1274
        %v1324 = vmul.f32 %v1228, %v1279
        %v1325 = vmul.f32 %v1229, %v1284
        %v1326 = vmul.f32 %v1230, %v1289
        %v1327 = vmul.f32 %v1231, %v1294
        %v1328 = vmul.f32 %v1232, %v1299
        %v1329 = vmul.f32 %v1233, %v1304
        %v1330 = vmul.f32 %v1234, %v1309
        %v1331 = vmul.f32 %v1235, %v1314
        %v1332 = vpack.c.bf16 %v1317, %v1316
        %v1333 = vpack.c.bf16 %v1319, %v1318
        %v1334 = vpack.c.bf16 %v1321, %v1320
        %v1335 = vpack.c.bf16 %v1323, %v1322
        %v1336 = vpack.c.bf16 %v1325, %v1324
        %v1337 = vpack.c.bf16 %v1327, %v1326
        %v1338 = vpack.c.bf16 %v1329, %v1328
        %v1339 = vpack.c.bf16 %v1331, %v1330
        %v1340 = vld [vmem:[%s368] sm:$0x1]
        %v1342 = vlaneseq
        %v1343 = vshrl.u32 %v1342, 7
        %v1344 = vsub.s32 0, %v1343
        %v1345 = vrot.slane %v1340, %v1344
        %1355 = vrot.lane.b32.xlu0 %v1332, 64
        %v1356 = vpop.permute.xlu0 %1355
        %1357 = vrot.lane.b32.xlu0 %v1333, 64
        %v1358 = vpop.permute.xlu0 %1357
        %1359 = vrot.lane.b32.xlu0 %v1334, 64
        %v1360 = vpop.permute.xlu0 %1359
        %1361 = vrot.lane.b32.xlu0 %v1335, 64
        %v1362 = vpop.permute.xlu0 %1361
        %1363 = vrot.lane.b32.xlu0 %v1336, 64
        %v1364 = vpop.permute.xlu0 %1363
        %1365 = vrot.lane.b32.xlu0 %v1337, 64
        %v1366 = vpop.permute.xlu0 %1365
        %1367 = vrot.lane.b32.xlu0 %v1338, 64
        %v1368 = vpop.permute.xlu0 %1367
        %1369 = vrot.lane.b32.xlu0 %v1339, 64
        %v1370 = vpop.permute.xlu0 %1369
        %vm1371 = vcmask 523264
        %v1373 = vsel %vm1371, %v908, 0
        %v1376 = vsel %vm1371, %v909, 0
        %v1379 = vsel %vm1371, %v910, 0
        %v1382 = vsel %vm1371, %v911, 0
        %v1385 = vsel %vm1371, %v912, 0
        %v1388 = vsel %vm1371, %v913, 0
        %v1391 = vsel %vm1371, %v914, 0
        %v1394 = vsel %vm1371, %v915, 0
        %v1397 = vsel %vm1371, %v1356, 0
        %v1400 = vsel %vm1371, %v1358, 0
        %v1403 = vsel %vm1371, %v1360, 0
        %v1406 = vsel %vm1371, %v1362, 0
        %v1409 = vsel %vm1371, %v1364, 0
        %v1412 = vsel %vm1371, %v1366, 0
        %v1415 = vsel %vm1371, %v1368, 0
        %v1418 = vsel %vm1371, %v1370, 0
        %1420 = vmatprep.subr.bf16.mxu0 0
        %1421 = vmatpush1.bf16.xpose.msra.mxu0 %v1397
        %1422 = vmatprep.subr.bf16.mxu0 0
        %1423 = vmatpush1.bf16.xpose.msra.mxu0 %v1400
        %1424 = vmatprep.subr.bf16.mxu0 0
        %1425 = vmatpush1.bf16.xpose.msra.mxu0 %v1403
        %1426 = vmatprep.subr.bf16.mxu0 0
        %1427 = vmatpush1.bf16.xpose.msra.mxu0 %v1406
        %1428 = vmatprep.subr.bf16.mxu0 0
        %1429 = vmatpush1.bf16.xpose.msra.mxu0 %v1409
        %1430 = vmatprep.subr.bf16.mxu0 0
        %1431 = vmatpush1.bf16.xpose.msra.mxu0 %v1412
        %1432 = vmatprep.subr.bf16.mxu0 0
        %1433 = vmatpush1.bf16.xpose.msra.mxu0 %v1415
        %1434 = vmatprep.subr.bf16.mxu0 0
        %1435 = vmatpush1.bf16.xpose.msra.mxu0 %v1418
        %1436 = vmatprep.subr.bf16.mxu0 0
        %1437 = vmatpush1.bf16.xpose.msra.mxu0 0
        %1438 = vmatprep.subr.bf16.mxu0 0
        %1439 = vmatpush1.bf16.xpose.msra.mxu0 0
        %1440 = vmatprep.subr.bf16.mxu0 0
        %1441 = vmatpush1.bf16.xpose.msra.mxu0 0
        %1442 = vmatprep.subr.bf16.mxu0 0
        %1443 = vmatpush1.bf16.xpose.msra.mxu0 0
        %1444 = vmatprep.subr.bf16.mxu0 0
        %1445 = vmatpush1.bf16.xpose.msra.mxu0 0
        %1446 = vmatprep.subr.bf16.mxu0 0
        %1447 = vmatpush1.bf16.xpose.msra.mxu0 0
        %1448 = vmatprep.subr.bf16.mxu0 0
        %1449 = vmatpush1.bf16.xpose.msra.mxu0 0
        %1450 = vmatprep.subr.bf16.mxu0 0
        %1451 = vmatpush1.bf16.xpose.msra.mxu0 0
        %1452 = vmatprep.mubr.bf16.mxu0 0
        %1453 = vmatmul.mubr.bf16.gmra.mrb[0].mxu0 %v1373
        %v1454 = vpop.f32.mrb[0].mxu0
        %v1455 = vadd.f32 %v1345, %v1454
        %v1456 = vpop.f32.mrb[0].mxu0
        %v1457 = vpop.f32.mrb[0].mxu0
        %v1458 = vadd.f32 %v1345, %v1457
        %v1459 = vpop.f32.mrb[0].mxu0
        %1460 = vmatprep.mubr.bf16.mxu0 0
        %1461 = vmatmul.mubr.bf16.gmra.mrb[0].mxu0 %v1376
        %v1462 = vpop.f32.mrb[0].mxu0
        %v1463 = vadd.f32 %v1345, %v1462
        %v1464 = vpop.f32.mrb[0].mxu0
        %v1465 = vpop.f32.mrb[0].mxu0
        %v1466 = vadd.f32 %v1345, %v1465
        %v1467 = vpop.f32.mrb[0].mxu0
        %1468 = vmatprep.mubr.bf16.mxu0 0
        %1469 = vmatmul.mubr.bf16.gmra.mrb[0].mxu0 %v1379
        %v1470 = vpop.f32.mrb[0].mxu0
        %v1471 = vadd.f32 %v1345, %v1470
        %v1472 = vpop.f32.mrb[0].mxu0
        %v1473 = vpop.f32.mrb[0].mxu0
        %v1474 = vadd.f32 %v1345, %v1473
        %v1475 = vpop.f32.mrb[0].mxu0
        %1476 = vmatprep.mubr.bf16.mxu0 0
        %1477 = vmatmul.mubr.bf16.gmra.mrb[0].mxu0 %v1382
        %v1478 = vpop.f32.mrb[0].mxu0
        %v1479 = vadd.f32 %v1345, %v1478
        %v1480 = vpop.f32.mrb[0].mxu0
        %v1481 = vpop.f32.mrb[0].mxu0
        %v1482 = vadd.f32 %v1345, %v1481
        %v1483 = vpop.f32.mrb[0].mxu0
        %1484 = vmatprep.mubr.bf16.mxu0 0
        %1485 = vmatmul.mubr.bf16.gmra.mrb[0].mxu0 %v1385
        %v1486 = vpop.f32.mrb[0].mxu0
        %v1487 = vadd.f32 %v1345, %v1486
        %v1488 = vpop.f32.mrb[0].mxu0
        %v1489 = vpop.f32.mrb[0].mxu0
        %v1490 = vadd.f32 %v1345, %v1489
        %v1491 = vpop.f32.mrb[0].mxu0
        %1492 = vmatprep.mubr.bf16.mxu0 0
        %1493 = vmatmul.mubr.bf16.gmra.mrb[0].mxu0 %v1388
        %v1494 = vpop.f32.mrb[0].mxu0
        %v1495 = vadd.f32 %v1345, %v1494
        %v1496 = vpop.f32.mrb[0].mxu0
        %v1497 = vpop.f32.mrb[0].mxu0
        %v1498 = vadd.f32 %v1345, %v1497
        %v1499 = vpop.f32.mrb[0].mxu0
        %1500 = vmatprep.mubr.bf16.mxu0 0
        %1501 = vmatmul.mubr.bf16.gmra.mrb[0].mxu0 %v1391
        %v1502 = vpop.f32.mrb[0].mxu0
        %v1503 = vadd.f32 %v1345, %v1502
        %v1504 = vpop.f32.mrb[0].mxu0
        %v1505 = vpop.f32.mrb[0].mxu0
        %v1506 = vadd.f32 %v1345, %v1505
        %v1507 = vpop.f32.mrb[0].mxu0
        %1508 = vmatprep.mubr.bf16.mxu0 0
        %1509 = vmatmul.mubr.bf16.gmra.mrb[0].mxu0 %v1394
        %v1510 = vpop.f32.mrb[0].mxu0
        %v1511 = vadd.f32 %v1345, %v1510
        %v1512 = vpop.f32.mrb[0].mxu0
        %v1513 = vpop.f32.mrb[0].mxu0
        %v1514 = vadd.f32 %v1345, %v1513
        %v1515 = vpop.f32.mrb[0].mxu0
        %1516 = vdwg.mxu0
        %v1517 = vld [vmem:[%s6] sm:$0xff]
        %v1518 = vld [vmem:[%s6 + $0x8] sm:$0xff]
        %v1519 = vld [vmem:[%s6 + $0x10] sm:$0xff]
        %v1520 = vld [vmem:[%s6 + $0x18] sm:$0xff]
        %v1521 = vld [vmem:[%s6 + $0x20] sm:$0xff]
        %v1522 = vld [vmem:[%s6 + $0x28] sm:$0xff]
        %v1523 = vld [vmem:[%s6 + $0x30] sm:$0xff]
        %v1524 = vld [vmem:[%s6 + $0x38] sm:$0xff]
        %v1525 = vld [vmem:[%s6 + $0x40] sm:$0xff]
        %v1526 = vld [vmem:[%s6 + $0x48] sm:$0xff]
        %v1527 = vld [vmem:[%s6 + $0x50] sm:$0xff]
        %v1528 = vld [vmem:[%s6 + $0x58] sm:$0xff]
        %v1529 = vld [vmem:[%s6 + $0x60] sm:$0xff]
        %v1530 = vld [vmem:[%s6 + $0x68] sm:$0xff]
        %v1531 = vld [vmem:[%s6 + $0x70] sm:$0xff]
        %v1532 = vld [vmem:[%s6 + $0x78] sm:$0xff]
        %v1533 = vsub.f32 %v1455, %v1517
        %v1534 = vsub.f32 %v1458, %v1518
        %v1535 = vsub.f32 %v1463, %v1519
        %v1536 = vsub.f32 %v1466, %v1520
        %v1537 = vsub.f32 %v1471, %v1521
        %v1538 = vsub.f32 %v1474, %v1522
        %v1539 = vsub.f32 %v1479, %v1523
        %v1540 = vsub.f32 %v1482, %v1524
        %v1541 = vsub.f32 %v1487, %v1525
        %v1542 = vsub.f32 %v1490, %v1526
        %v1543 = vsub.f32 %v1495, %v1527
        %v1544 = vsub.f32 %v1498, %v1528
        %v1545 = vsub.f32 %v1503, %v1529
        %v1546 = vsub.f32 %v1506, %v1530
        %v1547 = vsub.f32 %v1511, %v1531
        %v1548 = vsub.f32 %v1514, %v1532
        %1549 = vst [vmem:[%s343] sm:$0xff] %v1533
        %1550 = vst [vmem:[%s343 + $0x8] sm:$0xff] %v1534
        %1551 = vst [vmem:[%s343 + $0x10] sm:$0xff] %v1535
        %1552 = vst [vmem:[%s343 + $0x18] sm:$0xff] %v1536
        %1553 = vst [vmem:[%s343 + $0x20] sm:$0xff] %v1537
        %1554 = vst [vmem:[%s343 + $0x28] sm:$0xff] %v1538
        %1555 = vst [vmem:[%s343 + $0x30] sm:$0xff] %v1539
        %1556 = vst [vmem:[%s343 + $0x38] sm:$0xff] %v1540
        %1557 = vst [vmem:[%s343 + $0x40] sm:$0xff] %v1541
        %1558 = vst [vmem:[%s343 + $0x48] sm:$0xff] %v1542
        %1559 = vst [vmem:[%s343 + $0x50] sm:$0xff] %v1543
        %1560 = vst [vmem:[%s343 + $0x58] sm:$0xff] %v1544
        %1561 = vst [vmem:[%s343 + $0x60] sm:$0xff] %v1545
        %1562 = vst [vmem:[%s343 + $0x68] sm:$0xff] %v1546
        %1563 = vst [vmem:[%s343 + $0x70] sm:$0xff] %v1547
        %1564 = vst [vmem:[%s343 + $0x78] sm:$0xff] %v1548
        %s1565 = scalar_lea.vmem %s354, 64
        %v1566 = vld [vmem:[%s1565] sm:$0xf]
        %v1567 = vld [vmem:[%s1565 + $0x4] sm:$0xf]
        %v1568 = vld [vmem:[%s1565 + $0x8] sm:$0xf]
        %v1569 = vld [vmem:[%s1565 + $0xc] sm:$0xf]
        %v1570 = vld [vmem:[%s1565 + $0x10] sm:$0xf]
        %v1571 = vld [vmem:[%s1565 + $0x14] sm:$0xf]
        %v1572 = vld [vmem:[%s1565 + $0x18] sm:$0xf]
        %v1573 = vld [vmem:[%s1565 + $0x1c] sm:$0xf]
        %v1574 = vld [vmem:[%s1565 + $0x20] sm:$0xf]
        %v1575 = vld [vmem:[%s1565 + $0x24] sm:$0xf]
        %v1576 = vld [vmem:[%s1565 + $0x28] sm:$0xf]
        %v1577 = vld [vmem:[%s1565 + $0x2c] sm:$0xf]
        %v1578 = vld [vmem:[%s1565 + $0x30] sm:$0xf]
        %v1579 = vld [vmem:[%s1565 + $0x34] sm:$0xf]
        %v1580 = vld [vmem:[%s1565 + $0x38] sm:$0xf]
        %v1581 = vld [vmem:[%s1565 + $0x3c] sm:$0xf]
        %s1582 = scalar_lea.vmem %s359, 1
        %v1583 = vld [vmem:[%s1582] sm:$0x1]
        %v1585 = vlaneseq
        %v1586 = vshrl.u32 %v1585, 7
        %v1587 = vsub.s32 0, %v1586
        %v1588 = vrot.slane %v1583, %v1587
        %v1606 = vunpack.c.l.b16 %v1566
        %v1607 = vunpack.c.l.b16 %v1567
        %v1608 = vunpack.c.l.b16 %v1568
        %v1609 = vunpack.c.l.b16 %v1569
        %v1610 = vunpack.c.l.b16 %v1570
        %v1611 = vunpack.c.l.b16 %v1571
        %v1612 = vunpack.c.l.b16 %v1572
        %v1613 = vunpack.c.l.b16 %v1573
        %v1614 = vunpack.c.l.b16 %v1574
        %v1615 = vunpack.c.l.b16 %v1575
        %v1616 = vunpack.c.l.b16 %v1576
        %v1617 = vunpack.c.l.b16 %v1577
        %v1618 = vunpack.c.l.b16 %v1578
        %v1619 = vunpack.c.l.b16 %v1579
        %v1620 = vunpack.c.l.b16 %v1580
        %v1621 = vunpack.c.l.b16 %v1581
        %v1622 = vpack.c.b16 %v1607, %v1606
        %v1623 = vpack.c.b16 %v1609, %v1608
        %v1624 = vpack.c.b16 %v1611, %v1610
        %v1625 = vpack.c.b16 %v1613, %v1612
        %v1626 = vpack.c.b16 %v1615, %v1614
        %v1627 = vpack.c.b16 %v1617, %v1616
        %v1628 = vpack.c.b16 %v1619, %v1618
        %v1629 = vpack.c.b16 %v1621, %v1620
        %1638 = vmatprep.subr.bf16.mxu0 0
        %1639 = vmatpush1.bf16.msra.mxu0 %v1622
        %1640 = vmatprep.subr.bf16.mxu0 0
        %1641 = vmatpush1.bf16.msra.mxu0 %v1623
        %1642 = vmatprep.subr.bf16.mxu0 0
        %1643 = vmatpush1.bf16.msra.mxu0 %v1624
        %1644 = vmatprep.subr.bf16.mxu0 0
        %1645 = vmatpush1.bf16.msra.mxu0 %v1625
        %1646 = vmatprep.subr.bf16.mxu0 0
        %1647 = vmatpush1.bf16.msra.mxu0 %v1626
        %1648 = vmatprep.subr.bf16.mxu0 0
        %1649 = vmatpush1.bf16.msra.mxu0 %v1627
        %1650 = vmatprep.subr.bf16.mxu0 0
        %1651 = vmatpush1.bf16.msra.mxu0 %v1628
        %1652 = vmatprep.subr.bf16.mxu0 0
        %1653 = vmatpush1.bf16.msra.mxu0 %v1629
        %1654 = vmatprep.subr.bf16.mxu0 0
        %1655 = vmatpush1.bf16.msra.mxu0 0
        %1656 = vmatprep.subr.bf16.mxu0 0
        %1657 = vmatpush1.bf16.msra.mxu0 0
        %1658 = vmatprep.subr.bf16.mxu0 0
        %1659 = vmatpush1.bf16.msra.mxu0 0
        %1660 = vmatprep.subr.bf16.mxu0 0
        %1661 = vmatpush1.bf16.msra.mxu0 0
        %1662 = vmatprep.subr.bf16.mxu0 0
        %1663 = vmatpush1.bf16.msra.mxu0 0
        %1664 = vmatprep.subr.bf16.mxu0 0
        %1665 = vmatpush1.bf16.msra.mxu0 0
        %1666 = vmatprep.subr.bf16.mxu0 0
        %1667 = vmatpush1.bf16.msra.mxu0 0
        %1668 = vmatprep.subr.bf16.mxu0 0
        %1669 = vmatpush1.bf16.msra.mxu0 0
        %1670 = vmatprep.mubr.bf16.mxu0 0
        %1671 = vmatmul.mubr.bf16.gmra.mrb[0].mxu0 %v474
        %v1672 = vpop.f32.mrb[0].mxu0
        %v1673 = vadd.f32 %v1588, %v1672
        %v1674 = vpop.f32.mrb[0].mxu0
        %v1675 = vpop.f32.mrb[0].mxu0
        %v1676 = vadd.f32 %v1588, %v1675
        %v1677 = vpop.f32.mrb[0].mxu0
        %1678 = vmatprep.mubr.bf16.mxu0 0
        %1679 = vmatmul.mubr.bf16.gmra.mrb[0].mxu0 %v475
        %v1680 = vpop.f32.mrb[0].mxu0
        %v1681 = vadd.f32 %v1588, %v1680
        %v1682 = vpop.f32.mrb[0].mxu0
        %v1683 = vpop.f32.mrb[0].mxu0
        %v1684 = vadd.f32 %v1588, %v1683
        %v1685 = vpop.f32.mrb[0].mxu0
        %1686 = vmatprep.mubr.bf16.mxu0 0
        %1687 = vmatmul.mubr.bf16.gmra.mrb[0].mxu0 %v476
        %v1688 = vpop.f32.mrb[0].mxu0
        %v1689 = vadd.f32 %v1588, %v1688
        %v1690 = vpop.f32.mrb[0].mxu0
        %v1691 = vpop.f32.mrb[0].mxu0
        %v1692 = vadd.f32 %v1588, %v1691
        %v1693 = vpop.f32.mrb[0].mxu0
        %1694 = vmatprep.mubr.bf16.mxu0 0
        %1695 = vmatmul.mubr.bf16.gmra.mrb[0].mxu0 %v477
        %v1696 = vpop.f32.mrb[0].mxu0
        %v1697 = vadd.f32 %v1588, %v1696
        %v1698 = vpop.f32.mrb[0].mxu0
        %v1699 = vpop.f32.mrb[0].mxu0
        %v1700 = vadd.f32 %v1588, %v1699
        %v1701 = vpop.f32.mrb[0].mxu0
        %1702 = vmatprep.mubr.bf16.mxu0 0
        %1703 = vmatmul.mubr.bf16.gmra.mrb[0].mxu0 %v478
        %v1704 = vpop.f32.mrb[0].mxu0
        %v1705 = vadd.f32 %v1588, %v1704
        %v1706 = vpop.f32.mrb[0].mxu0
        %v1707 = vpop.f32.mrb[0].mxu0
        %v1708 = vadd.f32 %v1588, %v1707
        %v1709 = vpop.f32.mrb[0].mxu0
        %1710 = vmatprep.mubr.bf16.mxu0 0
        %1711 = vmatmul.mubr.bf16.gmra.mrb[0].mxu0 %v479
        %v1712 = vpop.f32.mrb[0].mxu0
        %v1713 = vadd.f32 %v1588, %v1712
        %v1714 = vpop.f32.mrb[0].mxu0
        %v1715 = vpop.f32.mrb[0].mxu0
        %v1716 = vadd.f32 %v1588, %v1715
        %v1717 = vpop.f32.mrb[0].mxu0
        %1718 = vmatprep.mubr.bf16.mxu0 0
        %1719 = vmatmul.mubr.bf16.gmra.mrb[0].mxu0 %v480
        %v1720 = vpop.f32.mrb[0].mxu0
        %v1721 = vadd.f32 %v1588, %v1720
        %v1722 = vpop.f32.mrb[0].mxu0
        %v1723 = vpop.f32.mrb[0].mxu0
        %v1724 = vadd.f32 %v1588, %v1723
        %v1725 = vpop.f32.mrb[0].mxu0
        %1726 = vmatprep.mubr.bf16.mxu0 0
        %1727 = vmatmul.mubr.bf16.gmra.mrb[0].mxu0 %v481
        %v1728 = vpop.f32.mrb[0].mxu0
        %v1729 = vadd.f32 %v1588, %v1728
        %v1730 = vpop.f32.mrb[0].mxu0
        %v1731 = vpop.f32.mrb[0].mxu0
        %v1732 = vadd.f32 %v1588, %v1731
        %v1733 = vpop.f32.mrb[0].mxu0
        %1734 = vdwg.mxu0
        %v1735 = vmul.f32 %v1673, %v387
        %v1736 = vmul.f32 %v1676, %v388
        %v1737 = vmul.f32 %v1681, %v389
        %v1738 = vmul.f32 %v1684, %v390
        %v1739 = vmul.f32 %v1689, %v391
        %v1740 = vmul.f32 %v1692, %v392
        %v1741 = vmul.f32 %v1697, %v393
        %v1742 = vmul.f32 %v1700, %v394
        %v1743 = vmul.f32 %v1705, %v395
        %v1744 = vmul.f32 %v1708, %v396
        %v1745 = vmul.f32 %v1713, %v397
        %v1746 = vmul.f32 %v1716, %v398
        %v1747 = vmul.f32 %v1721, %v399
        %v1748 = vmul.f32 %v1724, %v400
        %v1749 = vmul.f32 %v1729, %v401
        %v1750 = vmul.f32 %v1732, %v402
        %1751 = vrot.lane.b32.xlu0 %v1673, 64
        %v1752 = vpop.permute.xlu0 %1751
        %v1753 = vsel %vm651, %v1752, %v1673
        %1754 = vrot.lane.b32.xlu0 %v1676, 64
        %v1755 = vpop.permute.xlu0 %1754
        %v1756 = vsel %vm651, %v1755, %v1676
        %1757 = vrot.lane.b32.xlu0 %v1681, 64
        %v1758 = vpop.permute.xlu0 %1757
        %v1759 = vsel %vm651, %v1758, %v1681
        %1760 = vrot.lane.b32.xlu0 %v1684, 64
        %v1761 = vpop.permute.xlu0 %1760
        %v1762 = vsel %vm651, %v1761, %v1684
        %1763 = vrot.lane.b32.xlu0 %v1689, 64
        %v1764 = vpop.permute.xlu0 %1763
        %v1765 = vsel %vm651, %v1764, %v1689
        %1766 = vrot.lane.b32.xlu0 %v1692, 64
        %v1767 = vpop.permute.xlu0 %1766
        %v1768 = vsel %vm651, %v1767, %v1692
        %1769 = vrot.lane.b32.xlu0 %v1697, 64
        %v1770 = vpop.permute.xlu0 %1769
        %v1771 = vsel %vm651, %v1770, %v1697
        %1772 = vrot.lane.b32.xlu0 %v1700, 64
        %v1773 = vpop.permute.xlu0 %1772
        %v1774 = vsel %vm651, %v1773, %v1700
        %1775 = vrot.lane.b32.xlu0 %v1705, 64
        %v1776 = vpop.permute.xlu0 %1775
        %v1777 = vsel %vm651, %v1776, %v1705
        %1778 = vrot.lane.b32.xlu0 %v1708, 64
        %v1779 = vpop.permute.xlu0 %1778
        %v1780 = vsel %vm651, %v1779, %v1708
        %1781 = vrot.lane.b32.xlu0 %v1713, 64
        %v1782 = vpop.permute.xlu0 %1781
        %v1783 = vsel %vm651, %v1782, %v1713
        %1784 = vrot.lane.b32.xlu0 %v1716, 64
        %v1785 = vpop.permute.xlu0 %1784
        %v1786 = vsel %vm651, %v1785, %v1716
        %1787 = vrot.lane.b32.xlu0 %v1721, 64
        %v1788 = vpop.permute.xlu0 %1787
        %v1789 = vsel %vm651, %v1788, %v1721
        %1790 = vrot.lane.b32.xlu0 %v1724, 64
        %v1791 = vpop.permute.xlu0 %1790
        %v1792 = vsel %vm651, %v1791, %v1724
        %1793 = vrot.lane.b32.xlu0 %v1729, 64
        %v1794 = vpop.permute.xlu0 %1793
        %v1795 = vsel %vm651, %v1794, %v1729
        %1796 = vrot.lane.b32.xlu0 %v1732, 64
        %v1797 = vpop.permute.xlu0 %1796
        %v1798 = vsel %vm651, %v1797, %v1732
        %1799 = vrot.lane.b32.xlu0 %v1753, 64
        %v1800 = vpop.permute.xlu0 %1799
        %1801 = vrot.lane.b32.xlu0 %v1756, 64
        %v1802 = vpop.permute.xlu0 %1801
        %1803 = vrot.lane.b32.xlu0 %v1759, 64
        %v1804 = vpop.permute.xlu0 %1803
        %1805 = vrot.lane.b32.xlu0 %v1762, 64
        %v1806 = vpop.permute.xlu0 %1805
        %1807 = vrot.lane.b32.xlu0 %v1765, 64
        %v1808 = vpop.permute.xlu0 %1807
        %1809 = vrot.lane.b32.xlu0 %v1768, 64
        %v1810 = vpop.permute.xlu0 %1809
        %1811 = vrot.lane.b32.xlu0 %v1771, 64
        %v1812 = vpop.permute.xlu0 %1811
        %1813 = vrot.lane.b32.xlu0 %v1774, 64
        %v1814 = vpop.permute.xlu0 %1813
        %1815 = vrot.lane.b32.xlu0 %v1777, 64
        %v1816 = vpop.permute.xlu0 %1815
        %1817 = vrot.lane.b32.xlu0 %v1780, 64
        %v1818 = vpop.permute.xlu0 %1817
        %1819 = vrot.lane.b32.xlu0 %v1783, 64
        %v1820 = vpop.permute.xlu0 %1819
        %1821 = vrot.lane.b32.xlu0 %v1786, 64
        %v1822 = vpop.permute.xlu0 %1821
        %1823 = vrot.lane.b32.xlu0 %v1789, 64
        %v1824 = vpop.permute.xlu0 %1823
        %1825 = vrot.lane.b32.xlu0 %v1792, 64
        %v1826 = vpop.permute.xlu0 %1825
        %1827 = vrot.lane.b32.xlu0 %v1795, 64
        %v1828 = vpop.permute.xlu0 %1827
        %1829 = vrot.lane.b32.xlu0 %v1798, 64
        %v1830 = vpop.permute.xlu0 %1829
        %v1831 = vsel %vm651, %v1800, %v1673
        %v1832 = vsel %vm651, %v1802, %v1676
        %v1833 = vsel %vm651, %v1804, %v1681
        %v1834 = vsel %vm651, %v1806, %v1684
        %v1835 = vsel %vm651, %v1808, %v1689
        %v1836 = vsel %vm651, %v1810, %v1692
        %v1837 = vsel %vm651, %v1812, %v1697
        %v1838 = vsel %vm651, %v1814, %v1700
        %v1839 = vsel %vm651, %v1816, %v1705
        %v1840 = vsel %vm651, %v1818, %v1708
        %v1841 = vsel %vm651, %v1820, %v1713
        %v1842 = vsel %vm651, %v1822, %v1716
        %v1843 = vsel %vm651, %v1824, %v1721
        %v1844 = vsel %vm651, %v1826, %v1724
        %v1845 = vsel %vm651, %v1828, %v1729
        %v1846 = vsel %vm651, %v1830, %v1732
        %v1847 = vmul.f32 %v1831, %v765
        %v1848 = vmul.f32 %v1832, %v767
        %v1849 = vmul.f32 %v1833, %v769
        %v1850 = vmul.f32 %v1834, %v771
        %v1851 = vmul.f32 %v1835, %v773
        %v1852 = vmul.f32 %v1836, %v775
        %v1853 = vmul.f32 %v1837, %v777
        %v1854 = vmul.f32 %v1838, %v779
        %v1855 = vmul.f32 %v1839, %v781
        %v1856 = vmul.f32 %v1840, %v783
        %v1857 = vmul.f32 %v1841, %v785
        %v1858 = vmul.f32 %v1842, %v787
        %v1859 = vmul.f32 %v1843, %v789
        %v1860 = vmul.f32 %v1844, %v791
        %v1861 = vmul.f32 %v1845, %v793
        %v1862 = vmul.f32 %v1846, %v795
        %1879 = vrot.lane.b32.xlu0 %v1847, 96
        %v1880 = vpop.permute.xlu0 %1879
        %1881 = vrot.lane.b32.xlu0 %v1848, 96
        %v1882 = vpop.permute.xlu0 %1881
        %1883 = vrot.lane.b32.xlu0 %v1849, 96
        %v1884 = vpop.permute.xlu0 %1883
        %1885 = vrot.lane.b32.xlu0 %v1850, 96
        %v1886 = vpop.permute.xlu0 %1885
        %1887 = vrot.lane.b32.xlu0 %v1851, 96
        %v1888 = vpop.permute.xlu0 %1887
        %1889 = vrot.lane.b32.xlu0 %v1852, 96
        %v1890 = vpop.permute.xlu0 %1889
        %1891 = vrot.lane.b32.xlu0 %v1853, 96
        %v1892 = vpop.permute.xlu0 %1891
        %1893 = vrot.lane.b32.xlu0 %v1854, 96
        %v1894 = vpop.permute.xlu0 %1893
        %1895 = vrot.lane.b32.xlu0 %v1855, 96
        %v1896 = vpop.permute.xlu0 %1895
        %1897 = vrot.lane.b32.xlu0 %v1856, 96
        %v1898 = vpop.permute.xlu0 %1897
        %1899 = vrot.lane.b32.xlu0 %v1857, 96
        %v1900 = vpop.permute.xlu0 %1899
        %1901 = vrot.lane.b32.xlu0 %v1858, 96
        %v1902 = vpop.permute.xlu0 %1901
        %1903 = vrot.lane.b32.xlu0 %v1859, 96
        %v1904 = vpop.permute.xlu0 %1903
        %1905 = vrot.lane.b32.xlu0 %v1860, 96
        %v1906 = vpop.permute.xlu0 %1905
        %1907 = vrot.lane.b32.xlu0 %v1861, 96
        %v1908 = vpop.permute.xlu0 %1907
        %1909 = vrot.lane.b32.xlu0 %v1862, 96
        %v1910 = vpop.permute.xlu0 %1909
        %v1927 = vadd.f32 %v1735, %v1880
        %v1928 = vadd.f32 %v1736, %v1882
        %v1929 = vadd.f32 %v1737, %v1884
        %v1930 = vadd.f32 %v1738, %v1886
        %v1931 = vadd.f32 %v1739, %v1888
        %v1932 = vadd.f32 %v1740, %v1890
        %v1933 = vadd.f32 %v1741, %v1892
        %v1934 = vadd.f32 %v1742, %v1894
        %v1935 = vadd.f32 %v1743, %v1896
        %v1936 = vadd.f32 %v1744, %v1898
        %v1937 = vadd.f32 %v1745, %v1900
        %v1938 = vadd.f32 %v1746, %v1902
        %v1939 = vadd.f32 %v1747, %v1904
        %v1940 = vadd.f32 %v1748, %v1906
        %v1941 = vadd.f32 %v1749, %v1908
        %v1942 = vadd.f32 %v1750, %v1910
        %v1943 = vpack.c.bf16 %v1928, %v1927
        %v1944 = vpack.c.bf16 %v1930, %v1929
        %v1945 = vpack.c.bf16 %v1932, %v1931
        %v1946 = vpack.c.bf16 %v1934, %v1933
        %v1947 = vpack.c.bf16 %v1936, %v1935
        %v1948 = vpack.c.bf16 %v1938, %v1937
        %v1949 = vpack.c.bf16 %v1940, %v1939
        %v1950 = vpack.c.bf16 %v1942, %v1941
        %v1951 = vmul.f32 %v1673, %v917
        %v1952 = vmul.f32 %v1676, %v919
        %v1953 = vmul.f32 %v1681, %v921
        %v1954 = vmul.f32 %v1684, %v923
        %v1955 = vmul.f32 %v1689, %v925
        %v1956 = vmul.f32 %v1692, %v927
        %v1957 = vmul.f32 %v1697, %v929
        %v1958 = vmul.f32 %v1700, %v931
        %v1959 = vmul.f32 %v1705, %v933
        %v1960 = vmul.f32 %v1708, %v935
        %v1961 = vmul.f32 %v1713, %v937
        %v1962 = vmul.f32 %v1716, %v939
        %v1963 = vmul.f32 %v1721, %v941
        %v1964 = vmul.f32 %v1724, %v943
        %v1965 = vmul.f32 %v1729, %v945
        %v1966 = vmul.f32 %v1732, %v947
        %1983 = vrot.lane.b32.xlu0 %v1673, 64
        %v1984 = vpop.permute.xlu0 %1983
        %1985 = vrot.lane.b32.xlu0 %v1676, 64
        %v1986 = vpop.permute.xlu0 %1985
        %1987 = vrot.lane.b32.xlu0 %v1681, 64
        %v1988 = vpop.permute.xlu0 %1987
        %1989 = vrot.lane.b32.xlu0 %v1684, 64
        %v1990 = vpop.permute.xlu0 %1989
        %1991 = vrot.lane.b32.xlu0 %v1689, 64
        %v1992 = vpop.permute.xlu0 %1991
        %1993 = vrot.lane.b32.xlu0 %v1692, 64
        %v1994 = vpop.permute.xlu0 %1993
        %1995 = vrot.lane.b32.xlu0 %v1697, 64
        %v1996 = vpop.permute.xlu0 %1995
        %1997 = vrot.lane.b32.xlu0 %v1700, 64
        %v1998 = vpop.permute.xlu0 %1997
        %1999 = vrot.lane.b32.xlu0 %v1705, 64
        %v2000 = vpop.permute.xlu0 %1999
        %2001 = vrot.lane.b32.xlu0 %v1708, 64
        %v2002 = vpop.permute.xlu0 %2001
        %2003 = vrot.lane.b32.xlu0 %v1713, 64
        %v2004 = vpop.permute.xlu0 %2003
        %2005 = vrot.lane.b32.xlu0 %v1716, 64
        %v2006 = vpop.permute.xlu0 %2005
        %2007 = vrot.lane.b32.xlu0 %v1721, 64
        %v2008 = vpop.permute.xlu0 %2007
        %2009 = vrot.lane.b32.xlu0 %v1724, 64
        %v2010 = vpop.permute.xlu0 %2009
        %2011 = vrot.lane.b32.xlu0 %v1729, 64
        %v2012 = vpop.permute.xlu0 %2011
        %2013 = vrot.lane.b32.xlu0 %v1732, 64
        %v2014 = vpop.permute.xlu0 %2013
        %2031 = vrot.lane.b32.xlu0 %v1984, 64
        %v2032 = vpop.permute.xlu0 %2031
        %v2033 = vsel %vm651, %v2032, %v1984
        %2034 = vrot.lane.b32.xlu0 %v1986, 64
        %v2035 = vpop.permute.xlu0 %2034
        %v2036 = vsel %vm651, %v2035, %v1986
        %2037 = vrot.lane.b32.xlu0 %v1988, 64
        %v2038 = vpop.permute.xlu0 %2037
        %v2039 = vsel %vm651, %v2038, %v1988
        %2040 = vrot.lane.b32.xlu0 %v1990, 64
        %v2041 = vpop.permute.xlu0 %2040
        %v2042 = vsel %vm651, %v2041, %v1990
        %2043 = vrot.lane.b32.xlu0 %v1992, 64
        %v2044 = vpop.permute.xlu0 %2043
        %v2045 = vsel %vm651, %v2044, %v1992
        %2046 = vrot.lane.b32.xlu0 %v1994, 64
        %v2047 = vpop.permute.xlu0 %2046
        %v2048 = vsel %vm651, %v2047, %v1994
        %2049 = vrot.lane.b32.xlu0 %v1996, 64
        %v2050 = vpop.permute.xlu0 %2049
        %v2051 = vsel %vm651, %v2050, %v1996
        %2052 = vrot.lane.b32.xlu0 %v1998, 64
        %v2053 = vpop.permute.xlu0 %2052
        %v2054 = vsel %vm651, %v2053, %v1998
        %2055 = vrot.lane.b32.xlu0 %v2000, 64
        %v2056 = vpop.permute.xlu0 %2055
        %v2057 = vsel %vm651, %v2056, %v2000
        %2058 = vrot.lane.b32.xlu0 %v2002, 64
        %v2059 = vpop.permute.xlu0 %2058
        %v2060 = vsel %vm651, %v2059, %v2002
        %2061 = vrot.lane.b32.xlu0 %v2004, 64
        %v2062 = vpop.permute.xlu0 %2061
        %v2063 = vsel %vm651, %v2062, %v2004
        %2064 = vrot.lane.b32.xlu0 %v2006, 64
        %v2065 = vpop.permute.xlu0 %2064
        %v2066 = vsel %vm651, %v2065, %v2006
        %2067 = vrot.lane.b32.xlu0 %v2008, 64
        %v2068 = vpop.permute.xlu0 %2067
        %v2069 = vsel %vm651, %v2068, %v2008
        %2070 = vrot.lane.b32.xlu0 %v2010, 64
        %v2071 = vpop.permute.xlu0 %2070
        %v2072 = vsel %vm651, %v2071, %v2010
        %2073 = vrot.lane.b32.xlu0 %v2012, 64
        %v2074 = vpop.permute.xlu0 %2073
        %v2075 = vsel %vm651, %v2074, %v2012
        %2076 = vrot.lane.b32.xlu0 %v2014, 64
        %v2077 = vpop.permute.xlu0 %2076
        %v2078 = vsel %vm651, %v2077, %v2014
        %2079 = vrot.lane.b32.xlu0 %v2033, 64
        %v2080 = vpop.permute.xlu0 %2079
        %2081 = vrot.lane.b32.xlu0 %v2036, 64
        %v2082 = vpop.permute.xlu0 %2081
        %2083 = vrot.lane.b32.xlu0 %v2039, 64
        %v2084 = vpop.permute.xlu0 %2083
        %2085 = vrot.lane.b32.xlu0 %v2042, 64
        %v2086 = vpop.permute.xlu0 %2085
        %2087 = vrot.lane.b32.xlu0 %v2045, 64
        %v2088 = vpop.permute.xlu0 %2087
        %2089 = vrot.lane.b32.xlu0 %v2048, 64
        %v2090 = vpop.permute.xlu0 %2089
        %2091 = vrot.lane.b32.xlu0 %v2051, 64
        %v2092 = vpop.permute.xlu0 %2091
        %2093 = vrot.lane.b32.xlu0 %v2054, 64
        %v2094 = vpop.permute.xlu0 %2093
        %2095 = vrot.lane.b32.xlu0 %v2057, 64
        %v2096 = vpop.permute.xlu0 %2095
        %2097 = vrot.lane.b32.xlu0 %v2060, 64
        %v2098 = vpop.permute.xlu0 %2097
        %2099 = vrot.lane.b32.xlu0 %v2063, 64
        %v2100 = vpop.permute.xlu0 %2099
        %2101 = vrot.lane.b32.xlu0 %v2066, 64
        %v2102 = vpop.permute.xlu0 %2101
        %2103 = vrot.lane.b32.xlu0 %v2069, 64
        %v2104 = vpop.permute.xlu0 %2103
        %2105 = vrot.lane.b32.xlu0 %v2072, 64
        %v2106 = vpop.permute.xlu0 %2105
        %2107 = vrot.lane.b32.xlu0 %v2075, 64
        %v2108 = vpop.permute.xlu0 %2107
        %2109 = vrot.lane.b32.xlu0 %v2078, 64
        %v2110 = vpop.permute.xlu0 %2109
        %v2111 = vsel %vm651, %v2080, %v1984
        %v2112 = vsel %vm651, %v2082, %v1986
        %v2113 = vsel %vm651, %v2084, %v1988
        %v2114 = vsel %vm651, %v2086, %v1990
        %v2115 = vsel %vm651, %v2088, %v1992
        %v2116 = vsel %vm651, %v2090, %v1994
        %v2117 = vsel %vm651, %v2092, %v1996
        %v2118 = vsel %vm651, %v2094, %v1998
        %v2119 = vsel %vm651, %v2096, %v2000
        %v2120 = vsel %vm651, %v2098, %v2002
        %v2121 = vsel %vm651, %v2100, %v2004
        %v2122 = vsel %vm651, %v2102, %v2006
        %v2123 = vsel %vm651, %v2104, %v2008
        %v2124 = vsel %vm651, %v2106, %v2010
        %v2125 = vsel %vm651, %v2108, %v2012
        %v2126 = vsel %vm651, %v2110, %v2014
        %v2127 = vmul.f32 %v2111, %v765
        %v2128 = vmul.f32 %v2112, %v767
        %v2129 = vmul.f32 %v2113, %v769
        %v2130 = vmul.f32 %v2114, %v771
        %v2131 = vmul.f32 %v2115, %v773
        %v2132 = vmul.f32 %v2116, %v775
        %v2133 = vmul.f32 %v2117, %v777
        %v2134 = vmul.f32 %v2118, %v779
        %v2135 = vmul.f32 %v2119, %v781
        %v2136 = vmul.f32 %v2120, %v783
        %v2137 = vmul.f32 %v2121, %v785
        %v2138 = vmul.f32 %v2122, %v787
        %v2139 = vmul.f32 %v2123, %v789
        %v2140 = vmul.f32 %v2124, %v791
        %v2141 = vmul.f32 %v2125, %v793
        %v2142 = vmul.f32 %v2126, %v795
        %2159 = vrot.lane.b32.xlu0 %v2127, 32
        %v2160 = vpop.permute.xlu0 %2159
        %2161 = vrot.lane.b32.xlu0 %v2128, 32
        %v2162 = vpop.permute.xlu0 %2161
        %2163 = vrot.lane.b32.xlu0 %v2129, 32
        %v2164 = vpop.permute.xlu0 %2163
        %2165 = vrot.lane.b32.xlu0 %v2130, 32
        %v2166 = vpop.permute.xlu0 %2165
        %2167 = vrot.lane.b32.xlu0 %v2131, 32
        %v2168 = vpop.permute.xlu0 %2167
        %2169 = vrot.lane.b32.xlu0 %v2132, 32
        %v2170 = vpop.permute.xlu0 %2169
        %2171 = vrot.lane.b32.xlu0 %v2133, 32
        %v2172 = vpop.permute.xlu0 %2171
        %2173 = vrot.lane.b32.xlu0 %v2134, 32
        %v2174 = vpop.permute.xlu0 %2173
        %2175 = vrot.lane.b32.xlu0 %v2135, 32
        %v2176 = vpop.permute.xlu0 %2175
        %2177 = vrot.lane.b32.xlu0 %v2136, 32
        %v2178 = vpop.permute.xlu0 %2177
        %2179 = vrot.lane.b32.xlu0 %v2137, 32
        %v2180 = vpop.permute.xlu0 %2179
        %2181 = vrot.lane.b32.xlu0 %v2138, 32
        %v2182 = vpop.permute.xlu0 %2181
        %2183 = vrot.lane.b32.xlu0 %v2139, 32
        %v2184 = vpop.permute.xlu0 %2183
        %2185 = vrot.lane.b32.xlu0 %v2140, 32
        %v2186 = vpop.permute.xlu0 %2185
        %2187 = vrot.lane.b32.xlu0 %v2141, 32
        %v2188 = vpop.permute.xlu0 %2187
        %2189 = vrot.lane.b32.xlu0 %v2142, 32
        %v2190 = vpop.permute.xlu0 %2189
        %v2207 = vadd.f32 %v1951, %v2160
        %v2208 = vadd.f32 %v1952, %v2162
        %v2209 = vadd.f32 %v1953, %v2164
        %v2210 = vadd.f32 %v1954, %v2166
        %v2211 = vadd.f32 %v1955, %v2168
        %v2212 = vadd.f32 %v1956, %v2170
        %v2213 = vadd.f32 %v1957, %v2172
        %v2214 = vadd.f32 %v1958, %v2174
        %v2215 = vadd.f32 %v1959, %v2176
        %v2216 = vadd.f32 %v1960, %v2178
        %v2217 = vadd.f32 %v1961, %v2180
        %v2218 = vadd.f32 %v1962, %v2182
        %v2219 = vadd.f32 %v1963, %v2184
        %v2220 = vadd.f32 %v1964, %v2186
        %v2221 = vadd.f32 %v1965, %v2188
        %v2222 = vadd.f32 %v1966, %v2190
        %v2223 = vmul.f32 %v2207, %v1239
        %v2224 = vmul.f32 %v2208, %v1244
        %v2225 = vmul.f32 %v2209, %v1249
        %v2226 = vmul.f32 %v2210, %v1254
        %v2227 = vmul.f32 %v2211, %v1259
        %v2228 = vmul.f32 %v2212, %v1264
        %v2229 = vmul.f32 %v2213, %v1269
        %v2230 = vmul.f32 %v2214, %v1274
        %v2231 = vmul.f32 %v2215, %v1279
        %v2232 = vmul.f32 %v2216, %v1284
        %v2233 = vmul.f32 %v2217, %v1289
        %v2234 = vmul.f32 %v2218, %v1294
        %v2235 = vmul.f32 %v2219, %v1299
        %v2236 = vmul.f32 %v2220, %v1304
        %v2237 = vmul.f32 %v2221, %v1309
        %v2238 = vmul.f32 %v2222, %v1314
        %v2239 = vpack.c.bf16 %v2224, %v2223
        %v2240 = vpack.c.bf16 %v2226, %v2225
        %v2241 = vpack.c.bf16 %v2228, %v2227
        %v2242 = vpack.c.bf16 %v2230, %v2229
        %v2243 = vpack.c.bf16 %v2232, %v2231
        %v2244 = vpack.c.bf16 %v2234, %v2233
        %v2245 = vpack.c.bf16 %v2236, %v2235
        %v2246 = vpack.c.bf16 %v2238, %v2237
        %v2247 = vld [vmem:[%s368] sm:$0x1]
        %v2249 = vlaneseq
        %v2250 = vshrl.u32 %v2249, 7
        %v2251 = vsub.s32 0, %v2250
        %v2252 = vrot.slane %v2247, %v2251
        %2262 = vrot.lane.b32.xlu0 %v2239, 64
        %v2263 = vpop.permute.xlu0 %2262
        %2264 = vrot.lane.b32.xlu0 %v2240, 64
        %v2265 = vpop.permute.xlu0 %2264
        %2266 = vrot.lane.b32.xlu0 %v2241, 64
        %v2267 = vpop.permute.xlu0 %2266
        %2268 = vrot.lane.b32.xlu0 %v2242, 64
        %v2269 = vpop.permute.xlu0 %2268
        %2270 = vrot.lane.b32.xlu0 %v2243, 64
        %v2271 = vpop.permute.xlu0 %2270
        %2272 = vrot.lane.b32.xlu0 %v2244, 64
        %v2273 = vpop.permute.xlu0 %2272
        %2274 = vrot.lane.b32.xlu0 %v2245, 64
        %v2275 = vpop.permute.xlu0 %2274
        %2276 = vrot.lane.b32.xlu0 %v2246, 64
        %v2277 = vpop.permute.xlu0 %2276
        %v2279 = vsel %vm1371, %v1943, 0
        %v2282 = vsel %vm1371, %v1944, 0
        %v2285 = vsel %vm1371, %v1945, 0
        %v2288 = vsel %vm1371, %v1946, 0
        %v2291 = vsel %vm1371, %v1947, 0
        %v2294 = vsel %vm1371, %v1948, 0
        %v2297 = vsel %vm1371, %v1949, 0
        %v2300 = vsel %vm1371, %v1950, 0
        %v2303 = vsel %vm1371, %v2263, 0
        %v2306 = vsel %vm1371, %v2265, 0
        %v2309 = vsel %vm1371, %v2267, 0
        %v2312 = vsel %vm1371, %v2269, 0
        %v2315 = vsel %vm1371, %v2271, 0
        %v2318 = vsel %vm1371, %v2273, 0
        %v2321 = vsel %vm1371, %v2275, 0
        %v2324 = vsel %vm1371, %v2277, 0
        %2326 = vmatprep.subr.bf16.mxu0 0
        %2327 = vmatpush1.bf16.xpose.msra.mxu0 %v2303
        %2328 = vmatprep.subr.bf16.mxu0 0
        %2329 = vmatpush1.bf16.xpose.msra.mxu0 %v2306
        %2330 = vmatprep.subr.bf16.mxu0 0
        %2331 = vmatpush1.bf16.xpose.msra.mxu0 %v2309
        %2332 = vmatprep.subr.bf16.mxu0 0
        %2333 = vmatpush1.bf16.xpose.msra.mxu0 %v2312
        %2334 = vmatprep.subr.bf16.mxu0 0
        %2335 = vmatpush1.bf16.xpose.msra.mxu0 %v2315
        %2336 = vmatprep.subr.bf16.mxu0 0
        %2337 = vmatpush1.bf16.xpose.msra.mxu0 %v2318
        %2338 = vmatprep.subr.bf16.mxu0 0
        %2339 = vmatpush1.bf16.xpose.msra.mxu0 %v2321
        %2340 = vmatprep.subr.bf16.mxu0 0
        %2341 = vmatpush1.bf16.xpose.msra.mxu0 %v2324
        %2342 = vmatprep.subr.bf16.mxu0 0
        %2343 = vmatpush1.bf16.xpose.msra.mxu0 0
        %2344 = vmatprep.subr.bf16.mxu0 0
        %2345 = vmatpush1.bf16.xpose.msra.mxu0 0
        %2346 = vmatprep.subr.bf16.mxu0 0
        %2347 = vmatpush1.bf16.xpose.msra.mxu0 0
        %2348 = vmatprep.subr.bf16.mxu0 0
        %2349 = vmatpush1.bf16.xpose.msra.mxu0 0
        %2350 = vmatprep.subr.bf16.mxu0 0
        %2351 = vmatpush1.bf16.xpose.msra.mxu0 0
        %2352 = vmatprep.subr.bf16.mxu0 0
        %2353 = vmatpush1.bf16.xpose.msra.mxu0 0
        %2354 = vmatprep.subr.bf16.mxu0 0
        %2355 = vmatpush1.bf16.xpose.msra.mxu0 0
        %2356 = vmatprep.subr.bf16.mxu0 0
        %2357 = vmatpush1.bf16.xpose.msra.mxu0 0
        %2358 = vmatprep.mubr.bf16.mxu0 0
        %2359 = vmatmul.mubr.bf16.gmra.mrb[0].mxu0 %v2279
        %v2360 = vpop.f32.mrb[0].mxu0
        %v2361 = vadd.f32 %v2252, %v2360
        %v2362 = vpop.f32.mrb[0].mxu0
        %v2363 = vpop.f32.mrb[0].mxu0
        %v2364 = vadd.f32 %v2252, %v2363
        %v2365 = vpop.f32.mrb[0].mxu0
        %2366 = vmatprep.mubr.bf16.mxu0 0
        %2367 = vmatmul.mubr.bf16.gmra.mrb[0].mxu0 %v2282
        %v2368 = vpop.f32.mrb[0].mxu0
        %v2369 = vadd.f32 %v2252, %v2368
        %v2370 = vpop.f32.mrb[0].mxu0
        %v2371 = vpop.f32.mrb[0].mxu0
        %v2372 = vadd.f32 %v2252, %v2371
        %v2373 = vpop.f32.mrb[0].mxu0
        %2374 = vmatprep.mubr.bf16.mxu0 0
        %2375 = vmatmul.mubr.bf16.gmra.mrb[0].mxu0 %v2285
        %v2376 = vpop.f32.mrb[0].mxu0
        %v2377 = vadd.f32 %v2252, %v2376
        %v2378 = vpop.f32.mrb[0].mxu0
        %v2379 = vpop.f32.mrb[0].mxu0
        %v2380 = vadd.f32 %v2252, %v2379
        %v2381 = vpop.f32.mrb[0].mxu0
        %2382 = vmatprep.mubr.bf16.mxu0 0
        %2383 = vmatmul.mubr.bf16.gmra.mrb[0].mxu0 %v2288
        %v2384 = vpop.f32.mrb[0].mxu0
        %v2385 = vadd.f32 %v2252, %v2384
        %v2386 = vpop.f32.mrb[0].mxu0
        %v2387 = vpop.f32.mrb[0].mxu0
        %v2388 = vadd.f32 %v2252, %v2387
        %v2389 = vpop.f32.mrb[0].mxu0
        %2390 = vmatprep.mubr.bf16.mxu0 0
        %2391 = vmatmul.mubr.bf16.gmra.mrb[0].mxu0 %v2291
        %v2392 = vpop.f32.mrb[0].mxu0
        %v2393 = vadd.f32 %v2252, %v2392
        %v2394 = vpop.f32.mrb[0].mxu0
        %v2395 = vpop.f32.mrb[0].mxu0
        %v2396 = vadd.f32 %v2252, %v2395
        %v2397 = vpop.f32.mrb[0].mxu0
        %2398 = vmatprep.mubr.bf16.mxu0 0
        %2399 = vmatmul.mubr.bf16.gmra.mrb[0].mxu0 %v2294
        %v2400 = vpop.f32.mrb[0].mxu0
        %v2401 = vadd.f32 %v2252, %v2400
        %v2402 = vpop.f32.mrb[0].mxu0
        %v2403 = vpop.f32.mrb[0].mxu0
        %v2404 = vadd.f32 %v2252, %v2403
        %v2405 = vpop.f32.mrb[0].mxu0
        %2406 = vmatprep.mubr.bf16.mxu0 0
        %2407 = vmatmul.mubr.bf16.gmra.mrb[0].mxu0 %v2297
        %v2408 = vpop.f32.mrb[0].mxu0
        %v2409 = vadd.f32 %v2252, %v2408
        %v2410 = vpop.f32.mrb[0].mxu0
        %v2411 = vpop.f32.mrb[0].mxu0
        %v2412 = vadd.f32 %v2252, %v2411
        %v2413 = vpop.f32.mrb[0].mxu0
        %2414 = vmatprep.mubr.bf16.mxu0 0
        %2415 = vmatmul.mubr.bf16.gmra.mrb[0].mxu0 %v2300
        %v2416 = vpop.f32.mrb[0].mxu0
        %v2417 = vadd.f32 %v2252, %v2416
        %v2418 = vpop.f32.mrb[0].mxu0
        %v2419 = vpop.f32.mrb[0].mxu0
        %v2420 = vadd.f32 %v2252, %v2419
        %v2421 = vpop.f32.mrb[0].mxu0
        %2422 = vdwg.mxu0
        %v2423 = vld [vmem:[%s6] sm:$0xff]
        %v2424 = vld [vmem:[%s6 + $0x8] sm:$0xff]
        %v2425 = vld [vmem:[%s6 + $0x10] sm:$0xff]
        %v2426 = vld [vmem:[%s6 + $0x18] sm:$0xff]
        %v2427 = vld [vmem:[%s6 + $0x20] sm:$0xff]
        %v2428 = vld [vmem:[%s6 + $0x28] sm:$0xff]
        %v2429 = vld [vmem:[%s6 + $0x30] sm:$0xff]
        %v2430 = vld [vmem:[%s6 + $0x38] sm:$0xff]
        %v2431 = vld [vmem:[%s6 + $0x40] sm:$0xff]
        %v2432 = vld [vmem:[%s6 + $0x48] sm:$0xff]
        %v2433 = vld [vmem:[%s6 + $0x50] sm:$0xff]
        %v2434 = vld [vmem:[%s6 + $0x58] sm:$0xff]
        %v2435 = vld [vmem:[%s6 + $0x60] sm:$0xff]
        %v2436 = vld [vmem:[%s6 + $0x68] sm:$0xff]
        %v2437 = vld [vmem:[%s6 + $0x70] sm:$0xff]
        %v2438 = vld [vmem:[%s6 + $0x78] sm:$0xff]
        %v2439 = vsub.f32 %v2361, %v2423
        %v2440 = vsub.f32 %v2364, %v2424
        %v2441 = vsub.f32 %v2369, %v2425
        %v2442 = vsub.f32 %v2372, %v2426
        %v2443 = vsub.f32 %v2377, %v2427
        %v2444 = vsub.f32 %v2380, %v2428
        %v2445 = vsub.f32 %v2385, %v2429
        %v2446 = vsub.f32 %v2388, %v2430
        %v2447 = vsub.f32 %v2393, %v2431
        %v2448 = vsub.f32 %v2396, %v2432
        %v2449 = vsub.f32 %v2401, %v2433
        %v2450 = vsub.f32 %v2404, %v2434
        %v2451 = vsub.f32 %v2409, %v2435
        %v2452 = vsub.f32 %v2412, %v2436
        %v2453 = vsub.f32 %v2417, %v2437
        %v2454 = vsub.f32 %v2420, %v2438
        %s2455 = scalar_lea.vmem %s343, 128 [#allocation2]
        %2456 = vst [vmem:[%s2455] sm:$0xff] %v2439
        %2457 = vst [vmem:[%s2455 + $0x8] sm:$0xff] %v2440
        %2458 = vst [vmem:[%s2455 + $0x10] sm:$0xff] %v2441
        %2459 = vst [vmem:[%s2455 + $0x18] sm:$0xff] %v2442
        %2460 = vst [vmem:[%s2455 + $0x20] sm:$0xff] %v2443
        %2461 = vst [vmem:[%s2455 + $0x28] sm:$0xff] %v2444
        %2462 = vst [vmem:[%s2455 + $0x30] sm:$0xff] %v2445
        %2463 = vst [vmem:[%s2455 + $0x38] sm:$0xff] %v2446
        %2464 = vst [vmem:[%s2455 + $0x40] sm:$0xff] %v2447
        %2465 = vst [vmem:[%s2455 + $0x48] sm:$0xff] %v2448
        %2466 = vst [vmem:[%s2455 + $0x50] sm:$0xff] %v2449
        %2467 = vst [vmem:[%s2455 + $0x58] sm:$0xff] %v2450
        %2468 = vst [vmem:[%s2455 + $0x60] sm:$0xff] %v2451
        %2469 = vst [vmem:[%s2455 + $0x68] sm:$0xff] %v2452
        %2470 = vst [vmem:[%s2455 + $0x70] sm:$0xff] %v2453
        %2471 = vst [vmem:[%s2455 + $0x78] sm:$0xff] %v2454
        %s2472 = scalar_lea.vmem %s354, 128
        %v2473 = vld [vmem:[%s2472] sm:$0xf]
        %v2474 = vld [vmem:[%s2472 + $0x4] sm:$0xf]
        %v2475 = vld [vmem:[%s2472 + $0x8] sm:$0xf]
        %v2476 = vld [vmem:[%s2472 + $0xc] sm:$0xf]
        %v2477 = vld [vmem:[%s2472 + $0x10] sm:$0xf]
        %v2478 = vld [vmem:[%s2472 + $0x14] sm:$0xf]
        %v2479 = vld [vmem:[%s2472 + $0x18] sm:$0xf]
        %v2480 = vld [vmem:[%s2472 + $0x1c] sm:$0xf]
        %v2481 = vld [vmem:[%s2472 + $0x20] sm:$0xf]
        %v2482 = vld [vmem:[%s2472 + $0x24] sm:$0xf]
        %v2483 = vld [vmem:[%s2472 + $0x28] sm:$0xf]
        %v2484 = vld [vmem:[%s2472 + $0x2c] sm:$0xf]
        %v2485 = vld [vmem:[%s2472 + $0x30] sm:$0xf]
        %v2486 = vld [vmem:[%s2472 + $0x34] sm:$0xf]
        %v2487 = vld [vmem:[%s2472 + $0x38] sm:$0xf]
        %v2488 = vld [vmem:[%s2472 + $0x3c] sm:$0xf]
        %s2489 = scalar_lea.vmem %s359, 2
        %v2490 = vld [vmem:[%s2489] sm:$0x1]
        %v2492 = vlaneseq
        %v2493 = vshrl.u32 %v2492, 7
        %v2494 = vsub.s32 0, %v2493
        %v2495 = vrot.slane %v2490, %v2494
        %v2513 = vunpack.c.l.b16 %v2473
        %v2514 = vunpack.c.l.b16 %v2474
        %v2515 = vunpack.c.l.b16 %v2475
        %v2516 = vunpack.c.l.b16 %v2476
        %v2517 = vunpack.c.l.b16 %v2477
        %v2518 = vunpack.c.l.b16 %v2478
        %v2519 = vunpack.c.l.b16 %v2479
        %v2520 = vunpack.c.l.b16 %v2480
        %v2521 = vunpack.c.l.b16 %v2481
        %v2522 = vunpack.c.l.b16 %v2482
        %v2523 = vunpack.c.l.b16 %v2483
        %v2524 = vunpack.c.l.b16 %v2484
        %v2525 = vunpack.c.l.b16 %v2485
        %v2526 = vunpack.c.l.b16 %v2486
        %v2527 = vunpack.c.l.b16 %v2487
        %v2528 = vunpack.c.l.b16 %v2488
        %v2529 = vpack.c.b16 %v2514, %v2513
        %v2530 = vpack.c.b16 %v2516, %v2515
        %v2531 = vpack.c.b16 %v2518, %v2517
        %v2532 = vpack.c.b16 %v2520, %v2519
        %v2533 = vpack.c.b16 %v2522, %v2521
        %v2534 = vpack.c.b16 %v2524, %v2523
        %v2535 = vpack.c.b16 %v2526, %v2525
        %v2536 = vpack.c.b16 %v2528, %v2527
        %2545 = vmatprep.subr.bf16.mxu0 0
        %2546 = vmatpush1.bf16.msra.mxu0 %v2529
        %2547 = vmatprep.subr.bf16.mxu0 0
        %2548 = vmatpush1.bf16.msra.mxu0 %v2530
        %2549 = vmatprep.subr.bf16.mxu0 0
        %2550 = vmatpush1.bf16.msra.mxu0 %v2531
        %2551 = vmatprep.subr.bf16.mxu0 0
        %2552 = vmatpush1.bf16.msra.mxu0 %v2532
        %2553 = vmatprep.subr.bf16.mxu0 0
        %2554 = vmatpush1.bf16.msra.mxu0 %v2533
        %2555 = vmatprep.subr.bf16.mxu0 0
        %2556 = vmatpush1.bf16.msra.mxu0 %v2534
        %2557 = vmatprep.subr.bf16.mxu0 0
        %2558 = vmatpush1.bf16.msra.mxu0 %v2535
        %2559 = vmatprep.subr.bf16.mxu0 0
        %2560 = vmatpush1.bf16.msra.mxu0 %v2536
        %2561 = vmatprep.subr.bf16.mxu0 0
        %2562 = vmatpush1.bf16.msra.mxu0 0
        %2563 = vmatprep.subr.bf16.mxu0 0
        %2564 = vmatpush1.bf16.msra.mxu0 0
        %2565 = vmatprep.subr.bf16.mxu0 0
        %2566 = vmatpush1.bf16.msra.mxu0 0
        %2567 = vmatprep.subr.bf16.mxu0 0
        %2568 = vmatpush1.bf16.msra.mxu0 0
        %2569 = vmatprep.subr.bf16.mxu0 0
        %2570 = vmatpush1.bf16.msra.mxu0 0
        %2571 = vmatprep.subr.bf16.mxu0 0
        %2572 = vmatpush1.bf16.msra.mxu0 0
        %2573 = vmatprep.subr.bf16.mxu0 0
        %2574 = vmatpush1.bf16.msra.mxu0 0
        %2575 = vmatprep.subr.bf16.mxu0 0
        %2576 = vmatpush1.bf16.msra.mxu0 0
        %2577 = vmatprep.mubr.bf16.mxu0 0
        %2578 = vmatmul.mubr.bf16.gmra.mrb[0].mxu0 %v474
        %v2579 = vpop.f32.mrb[0].mxu0
        %v2580 = vadd.f32 %v2495, %v2579
        %v2581 = vpop.f32.mrb[0].mxu0
        %v2582 = vpop.f32.mrb[0].mxu0
        %v2583 = vadd.f32 %v2495, %v2582
        %v2584 = vpop.f32.mrb[0].mxu0
        %2585 = vmatprep.mubr.bf16.mxu0 0
        %2586 = vmatmul.mubr.bf16.gmra.mrb[0].mxu0 %v475
        %v2587 = vpop.f32.mrb[0].mxu0
        %v2588 = vadd.f32 %v2495, %v2587
        %v2589 = vpop.f32.mrb[0].mxu0
        %v2590 = vpop.f32.mrb[0].mxu0
        %v2591 = vadd.f32 %v2495, %v2590
        %v2592 = vpop.f32.mrb[0].mxu0
        %2593 = vmatprep.mubr.bf16.mxu0 0
        %2594 = vmatmul.mubr.bf16.gmra.mrb[0].mxu0 %v476
        %v2595 = vpop.f32.mrb[0].mxu0
        %v2596 = vadd.f32 %v2495, %v2595
        %v2597 = vpop.f32.mrb[0].mxu0
        %v2598 = vpop.f32.mrb[0].mxu0
        %v2599 = vadd.f32 %v2495, %v2598
        %v2600 = vpop.f32.mrb[0].mxu0
        %2601 = vmatprep.mubr.bf16.mxu0 0
        %2602 = vmatmul.mubr.bf16.gmra.mrb[0].mxu0 %v477
        %v2603 = vpop.f32.mrb[0].mxu0
        %v2604 = vadd.f32 %v2495, %v2603
        %v2605 = vpop.f32.mrb[0].mxu0
        %v2606 = vpop.f32.mrb[0].mxu0
        %v2607 = vadd.f32 %v2495, %v2606
        %v2608 = vpop.f32.mrb[0].mxu0
        %2609 = vmatprep.mubr.bf16.mxu0 0
        %2610 = vmatmul.mubr.bf16.gmra.mrb[0].mxu0 %v478
        %v2611 = vpop.f32.mrb[0].mxu0
        %v2612 = vadd.f32 %v2495, %v2611
        %v2613 = vpop.f32.mrb[0].mxu0
        %v2614 = vpop.f32.mrb[0].mxu0
        %v2615 = vadd.f32 %v2495, %v2614
        %v2616 = vpop.f32.mrb[0].mxu0
        %2617 = vmatprep.mubr.bf16.mxu0 0
        %2618 = vmatmul.mubr.bf16.gmra.mrb[0].mxu0 %v479
        %v2619 = vpop.f32.mrb[0].mxu0
        %v2620 = vadd.f32 %v2495, %v2619
        %v2621 = vpop.f32.mrb[0].mxu0
        %v2622 = vpop.f32.mrb[0].mxu0
        %v2623 = vadd.f32 %v2495, %v2622
        %v2624 = vpop.f32.mrb[0].mxu0
        %2625 = vmatprep.mubr.bf16.mxu0 0
        %2626 = vmatmul.mubr.bf16.gmra.mrb[0].mxu0 %v480
        %v2627 = vpop.f32.mrb[0].mxu0
        %v2628 = vadd.f32 %v2495, %v2627
        %v2629 = vpop.f32.mrb[0].mxu0
        %v2630 = vpop.f32.mrb[0].mxu0
        %v2631 = vadd.f32 %v2495, %v2630
        %v2632 = vpop.f32.mrb[0].mxu0
        %2633 = vmatprep.mubr.bf16.mxu0 0
        %2634 = vmatmul.mubr.bf16.gmra.mrb[0].mxu0 %v481
        %v2635 = vpop.f32.mrb[0].mxu0
        %v2636 = vadd.f32 %v2495, %v2635
        %v2637 = vpop.f32.mrb[0].mxu0
        %v2638 = vpop.f32.mrb[0].mxu0
        %v2639 = vadd.f32 %v2495, %v2638
        %v2640 = vpop.f32.mrb[0].mxu0
        %2641 = vdwg.mxu0
        %v2642 = vmul.f32 %v2580, %v387
        %v2643 = vmul.f32 %v2583, %v388
        %v2644 = vmul.f32 %v2588, %v389
        %v2645 = vmul.f32 %v2591, %v390
        %v2646 = vmul.f32 %v2596, %v391
        %v2647 = vmul.f32 %v2599, %v392
        %v2648 = vmul.f32 %v2604, %v393
        %v2649 = vmul.f32 %v2607, %v394
        %v2650 = vmul.f32 %v2612, %v395
        %v2651 = vmul.f32 %v2615, %v396
        %v2652 = vmul.f32 %v2620, %v397
        %v2653 = vmul.f32 %v2623, %v398
        %v2654 = vmul.f32 %v2628, %v399
        %v2655 = vmul.f32 %v2631, %v400
        %v2656 = vmul.f32 %v2636, %v401
        %v2657 = vmul.f32 %v2639, %v402
        %2658 = vrot.lane.b32.xlu0 %v2580, 64
        %v2659 = vpop.permute.xlu0 %2658
        %v2660 = vsel %vm651, %v2659, %v2580
        %2661 = vrot.lane.b32.xlu0 %v2583, 64
        %v2662 = vpop.permute.xlu0 %2661
        %v2663 = vsel %vm651, %v2662, %v2583
        %2664 = vrot.lane.b32.xlu0 %v2588, 64
        %v2665 = vpop.permute.xlu0 %2664
        %v2666 = vsel %vm651, %v2665, %v2588
        %2667 = vrot.lane.b32.xlu0 %v2591, 64
        %v2668 = vpop.permute.xlu0 %2667
        %v2669 = vsel %vm651, %v2668, %v2591
        %2670 = vrot.lane.b32.xlu0 %v2596, 64
        %v2671 = vpop.permute.xlu0 %2670
        %v2672 = vsel %vm651, %v2671, %v2596
        %2673 = vrot.lane.b32.xlu0 %v2599, 64
        %v2674 = vpop.permute.xlu0 %2673
        %v2675 = vsel %vm651, %v2674, %v2599
        %2676 = vrot.lane.b32.xlu0 %v2604, 64
        %v2677 = vpop.permute.xlu0 %2676
        %v2678 = vsel %vm651, %v2677, %v2604
        %2679 = vrot.lane.b32.xlu0 %v2607, 64
        %v2680 = vpop.permute.xlu0 %2679
        %v2681 = vsel %vm651, %v2680, %v2607
        %2682 = vrot.lane.b32.xlu0 %v2612, 64
        %v2683 = vpop.permute.xlu0 %2682
        %v2684 = vsel %vm651, %v2683, %v2612
        %2685 = vrot.lane.b32.xlu0 %v2615, 64
        %v2686 = vpop.permute.xlu0 %2685
        %v2687 = vsel %vm651, %v2686, %v2615
        %2688 = vrot.lane.b32.xlu0 %v2620, 64
        %v2689 = vpop.permute.xlu0 %2688
        %v2690 = vsel %vm651, %v2689, %v2620
        %2691 = vrot.lane.b32.xlu0 %v2623, 64
        %v2692 = vpop.permute.xlu0 %2691
        %v2693 = vsel %vm651, %v2692, %v2623
        %2694 = vrot.lane.b32.xlu0 %v2628, 64
        %v2695 = vpop.permute.xlu0 %2694
        %v2696 = vsel %vm651, %v2695, %v2628
        %2697 = vrot.lane.b32.xlu0 %v2631, 64
        %v2698 = vpop.permute.xlu0 %2697
        %v2699 = vsel %vm651, %v2698, %v2631
        %2700 = vrot.lane.b32.xlu0 %v2636, 64
        %v2701 = vpop.permute.xlu0 %2700
        %v2702 = vsel %vm651, %v2701, %v2636
        %2703 = vrot.lane.b32.xlu0 %v2639, 64
        %v2704 = vpop.permute.xlu0 %2703
        %v2705 = vsel %vm651, %v2704, %v2639
        %2706 = vrot.lane.b32.xlu0 %v2660, 64
        %v2707 = vpop.permute.xlu0 %2706
        %2708 = vrot.lane.b32.xlu0 %v2663, 64
        %v2709 = vpop.permute.xlu0 %2708
        %2710 = vrot.lane.b32.xlu0 %v2666, 64
        %v2711 = vpop.permute.xlu0 %2710
        %2712 = vrot.lane.b32.xlu0 %v2669, 64
        %v2713 = vpop.permute.xlu0 %2712
        %2714 = vrot.lane.b32.xlu0 %v2672, 64
        %v2715 = vpop.permute.xlu0 %2714
        %2716 = vrot.lane.b32.xlu0 %v2675, 64
        %v2717 = vpop.permute.xlu0 %2716
        %2718 = vrot.lane.b32.xlu0 %v2678, 64
        %v2719 = vpop.permute.xlu0 %2718
        %2720 = vrot.lane.b32.xlu0 %v2681, 64
        %v2721 = vpop.permute.xlu0 %2720
        %2722 = vrot.lane.b32.xlu0 %v2684, 64
        %v2723 = vpop.permute.xlu0 %2722
        %2724 = vrot.lane.b32.xlu0 %v2687, 64
        %v2725 = vpop.permute.xlu0 %2724
        %2726 = vrot.lane.b32.xlu0 %v2690, 64
        %v2727 = vpop.permute.xlu0 %2726
        %2728 = vrot.lane.b32.xlu0 %v2693, 64
        %v2729 = vpop.permute.xlu0 %2728
        %2730 = vrot.lane.b32.xlu0 %v2696, 64
        %v2731 = vpop.permute.xlu0 %2730
        %2732 = vrot.lane.b32.xlu0 %v2699, 64
        %v2733 = vpop.permute.xlu0 %2732
        %2734 = vrot.lane.b32.xlu0 %v2702, 64
        %v2735 = vpop.permute.xlu0 %2734
        %2736 = vrot.lane.b32.xlu0 %v2705, 64
        %v2737 = vpop.permute.xlu0 %2736
        %v2738 = vsel %vm651, %v2707, %v2580
        %v2739 = vsel %vm651, %v2709, %v2583
        %v2740 = vsel %vm651, %v2711, %v2588
        %v2741 = vsel %vm651, %v2713, %v2591
        %v2742 = vsel %vm651, %v2715, %v2596
        %v2743 = vsel %vm651, %v2717, %v2599
        %v2744 = vsel %vm651, %v2719, %v2604
        %v2745 = vsel %vm651, %v2721, %v2607
        %v2746 = vsel %vm651, %v2723, %v2612
        %v2747 = vsel %vm651, %v2725, %v2615
        %v2748 = vsel %vm651, %v2727, %v2620
        %v2749 = vsel %vm651, %v2729, %v2623
        %v2750 = vsel %vm651, %v2731, %v2628
        %v2751 = vsel %vm651, %v2733, %v2631
        %v2752 = vsel %vm651, %v2735, %v2636
        %v2753 = vsel %vm651, %v2737, %v2639
        %v2754 = vmul.f32 %v2738, %v765
        %v2755 = vmul.f32 %v2739, %v767
        %v2756 = vmul.f32 %v2740, %v769
        %v2757 = vmul.f32 %v2741, %v771
        %v2758 = vmul.f32 %v2742, %v773
        %v2759 = vmul.f32 %v2743, %v775
        %v2760 = vmul.f32 %v2744, %v777
        %v2761 = vmul.f32 %v2745, %v779
        %v2762 = vmul.f32 %v2746, %v781
        %v2763 = vmul.f32 %v2747, %v783
        %v2764 = vmul.f32 %v2748, %v785
        %v2765 = vmul.f32 %v2749, %v787
        %v2766 = vmul.f32 %v2750, %v789
        %v2767 = vmul.f32 %v2751, %v791
        %v2768 = vmul.f32 %v2752, %v793
        %v2769 = vmul.f32 %v2753, %v795
        %2786 = vrot.lane.b32.xlu0 %v2754, 96
        %v2787 = vpop.permute.xlu0 %2786
        %2788 = vrot.lane.b32.xlu0 %v2755, 96
        %v2789 = vpop.permute.xlu0 %2788
        %2790 = vrot.lane.b32.xlu0 %v2756, 96
        %v2791 = vpop.permute.xlu0 %2790
        %2792 = vrot.lane.b32.xlu0 %v2757, 96
        %v2793 = vpop.permute.xlu0 %2792
        %2794 = vrot.lane.b32.xlu0 %v2758, 96
        %v2795 = vpop.permute.xlu0 %2794
        %2796 = vrot.lane.b32.xlu0 %v2759, 96
        %v2797 = vpop.permute.xlu0 %2796
        %2798 = vrot.lane.b32.xlu0 %v2760, 96
        %v2799 = vpop.permute.xlu0 %2798
        %2800 = vrot.lane.b32.xlu0 %v2761, 96
        %v2801 = vpop.permute.xlu0 %2800
        %2802 = vrot.lane.b32.xlu0 %v2762, 96
        %v2803 = vpop.permute.xlu0 %2802
        %2804 = vrot.lane.b32.xlu0 %v2763, 96
        %v2805 = vpop.permute.xlu0 %2804
        %2806 = vrot.lane.b32.xlu0 %v2764, 96
        %v2807 = vpop.permute.xlu0 %2806
        %2808 = vrot.lane.b32.xlu0 %v2765, 96
        %v2809 = vpop.permute.xlu0 %2808
        %2810 = vrot.lane.b32.xlu0 %v2766, 96
        %v2811 = vpop.permute.xlu0 %2810
        %2812 = vrot.lane.b32.xlu0 %v2767, 96
        %v2813 = vpop.permute.xlu0 %2812
        %2814 = vrot.lane.b32.xlu0 %v2768, 96
        %v2815 = vpop.permute.xlu0 %2814
        %2816 = vrot.lane.b32.xlu0 %v2769, 96
        %v2817 = vpop.permute.xlu0 %2816
        %v2834 = vadd.f32 %v2642, %v2787
        %v2835 = vadd.f32 %v2643, %v2789
        %v2836 = vadd.f32 %v2644, %v2791
        %v2837 = vadd.f32 %v2645, %v2793
        %v2838 = vadd.f32 %v2646, %v2795
        %v2839 = vadd.f32 %v2647, %v2797
        %v2840 = vadd.f32 %v2648, %v2799
        %v2841 = vadd.f32 %v2649, %v2801
        %v2842 = vadd.f32 %v2650, %v2803
        %v2843 = vadd.f32 %v2651, %v2805
        %v2844 = vadd.f32 %v2652, %v2807
        %v2845 = vadd.f32 %v2653, %v2809
        %v2846 = vadd.f32 %v2654, %v2811
        %v2847 = vadd.f32 %v2655, %v2813
        %v2848 = vadd.f32 %v2656, %v2815
        %v2849 = vadd.f32 %v2657, %v2817
        %v2850 = vpack.c.bf16 %v2835, %v2834
        %v2851 = vpack.c.bf16 %v2837, %v2836
        %v2852 = vpack.c.bf16 %v2839, %v2838
        %v2853 = vpack.c.bf16 %v2841, %v2840
        %v2854 = vpack.c.bf16 %v2843, %v2842
        %v2855 = vpack.c.bf16 %v2845, %v2844
        %v2856 = vpack.c.bf16 %v2847, %v2846
        %v2857 = vpack.c.bf16 %v2849, %v2848
        %v2858 = vmul.f32 %v2580, %v917
        %v2859 = vmul.f32 %v2583, %v919
        %v2860 = vmul.f32 %v2588, %v921
        %v2861 = vmul.f32 %v2591, %v923
        %v2862 = vmul.f32 %v2596, %v925
        %v2863 = vmul.f32 %v2599, %v927
        %v2864 = vmul.f32 %v2604, %v929
        %v2865 = vmul.f32 %v2607, %v931
        %v2866 = vmul.f32 %v2612, %v933
        %v2867 = vmul.f32 %v2615, %v935
        %v2868 = vmul.f32 %v2620, %v937
        %v2869 = vmul.f32 %v2623, %v939
        %v2870 = vmul.f32 %v2628, %v941
        %v2871 = vmul.f32 %v2631, %v943
        %v2872 = vmul.f32 %v2636, %v945
        %v2873 = vmul.f32 %v2639, %v947
        %2890 = vrot.lane.b32.xlu0 %v2580, 64
        %v2891 = vpop.permute.xlu0 %2890
        %2892 = vrot.lane.b32.xlu0 %v2583, 64
        %v2893 = vpop.permute.xlu0 %2892
        %2894 = vrot.lane.b32.xlu0 %v2588, 64
        %v2895 = vpop.permute.xlu0 %2894
        %2896 = vrot.lane.b32.xlu0 %v2591, 64
        %v2897 = vpop.permute.xlu0 %2896
        %2898 = vrot.lane.b32.xlu0 %v2596, 64
        %v2899 = vpop.permute.xlu0 %2898
        %2900 = vrot.lane.b32.xlu0 %v2599, 64
        %v2901 = vpop.permute.xlu0 %2900
        %2902 = vrot.lane.b32.xlu0 %v2604, 64
        %v2903 = vpop.permute.xlu0 %2902
        %2904 = vrot.lane.b32.xlu0 %v2607, 64
        %v2905 = vpop.permute.xlu0 %2904
        %2906 = vrot.lane.b32.xlu0 %v2612, 64
        %v2907 = vpop.permute.xlu0 %2906
        %2908 = vrot.lane.b32.xlu0 %v2615, 64
        %v2909 = vpop.permute.xlu0 %2908
        %2910 = vrot.lane.b32.xlu0 %v2620, 64
        %v2911 = vpop.permute.xlu0 %2910
        %2912 = vrot.lane.b32.xlu0 %v2623, 64
        %v2913 = vpop.permute.xlu0 %2912
        %2914 = vrot.lane.b32.xlu0 %v2628, 64
        %v2915 = vpop.permute.xlu0 %2914
        %2916 = vrot.lane.b32.xlu0 %v2631, 64
        %v2917 = vpop.permute.xlu0 %2916
        %2918 = vrot.lane.b32.xlu0 %v2636, 64
        %v2919 = vpop.permute.xlu0 %2918
        %2920 = vrot.lane.b32.xlu0 %v2639, 64
        %v2921 = vpop.permute.xlu0 %2920
        %2938 = vrot.lane.b32.xlu0 %v2891, 64
        %v2939 = vpop.permute.xlu0 %2938
        %v2940 = vsel %vm651, %v2939, %v2891
        %2941 = vrot.lane.b32.xlu0 %v2893, 64
        %v2942 = vpop.permute.xlu0 %2941
        %v2943 = vsel %vm651, %v2942, %v2893
        %2944 = vrot.lane.b32.xlu0 %v2895, 64
        %v2945 = vpop.permute.xlu0 %2944
        %v2946 = vsel %vm651, %v2945, %v2895
        %2947 = vrot.lane.b32.xlu0 %v2897, 64
        %v2948 = vpop.permute.xlu0 %2947
        %v2949 = vsel %vm651, %v2948, %v2897
        %2950 = vrot.lane.b32.xlu0 %v2899, 64
        %v2951 = vpop.permute.xlu0 %2950
        %v2952 = vsel %vm651, %v2951, %v2899
        %2953 = vrot.lane.b32.xlu0 %v2901, 64
        %v2954 = vpop.permute.xlu0 %2953
        %v2955 = vsel %vm651, %v2954, %v2901
        %2956 = vrot.lane.b32.xlu0 %v2903, 64
        %v2957 = vpop.permute.xlu0 %2956
        %v2958 = vsel %vm651, %v2957, %v2903
        %2959 = vrot.lane.b32.xlu0 %v2905, 64
        %v2960 = vpop.permute.xlu0 %2959
        %v2961 = vsel %vm651, %v2960, %v2905
        %2962 = vrot.lane.b32.xlu0 %v2907, 64
        %v2963 = vpop.permute.xlu0 %2962
        %v2964 = vsel %vm651, %v2963, %v2907
        %2965 = vrot.lane.b32.xlu0 %v2909, 64
        %v2966 = vpop.permute.xlu0 %2965
        %v2967 = vsel %vm651, %v2966, %v2909
        %2968 = vrot.lane.b32.xlu0 %v2911, 64
        %v2969 = vpop.permute.xlu0 %2968
        %v2970 = vsel %vm651, %v2969, %v2911
        %2971 = vrot.lane.b32.xlu0 %v2913, 64
        %v2972 = vpop.permute.xlu0 %2971
        %v2973 = vsel %vm651, %v2972, %v2913
        %2974 = vrot.lane.b32.xlu0 %v2915, 64
        %v2975 = vpop.permute.xlu0 %2974
        %v2976 = vsel %vm651, %v2975, %v2915
        %2977 = vrot.lane.b32.xlu0 %v2917, 64
        %v2978 = vpop.permute.xlu0 %2977
        %v2979 = vsel %vm651, %v2978, %v2917
        %2980 = vrot.lane.b32.xlu0 %v2919, 64
        %v2981 = vpop.permute.xlu0 %2980
        %v2982 = vsel %vm651, %v2981, %v2919
        %2983 = vrot.lane.b32.xlu0 %v2921, 64
        %v2984 = vpop.permute.xlu0 %2983
        %v2985 = vsel %vm651, %v2984, %v2921
        %2986 = vrot.lane.b32.xlu0 %v2940, 64
        %v2987 = vpop.permute.xlu0 %2986
        %2988 = vrot.lane.b32.xlu0 %v2943, 64
        %v2989 = vpop.permute.xlu0 %2988
        %2990 = vrot.lane.b32.xlu0 %v2946, 64
        %v2991 = vpop.permute.xlu0 %2990
        %2992 = vrot.lane.b32.xlu0 %v2949, 64
        %v2993 = vpop.permute.xlu0 %2992
        %2994 = vrot.lane.b32.xlu0 %v2952, 64
        %v2995 = vpop.permute.xlu0 %2994
        %2996 = vrot.lane.b32.xlu0 %v2955, 64
        %v2997 = vpop.permute.xlu0 %2996
        %2998 = vrot.lane.b32.xlu0 %v2958, 64
        %v2999 = vpop.permute.xlu0 %2998
        %3000 = vrot.lane.b32.xlu0 %v2961, 64
        %v3001 = vpop.permute.xlu0 %3000
        %3002 = vrot.lane.b32.xlu0 %v2964, 64
        %v3003 = vpop.permute.xlu0 %3002
        %3004 = vrot.lane.b32.xlu0 %v2967, 64
        %v3005 = vpop.permute.xlu0 %3004
        %3006 = vrot.lane.b32.xlu0 %v2970, 64
        %v3007 = vpop.permute.xlu0 %3006
        %3008 = vrot.lane.b32.xlu0 %v2973, 64
        %v3009 = vpop.permute.xlu0 %3008
        %3010 = vrot.lane.b32.xlu0 %v2976, 64
        %v3011 = vpop.permute.xlu0 %3010
        %3012 = vrot.lane.b32.xlu0 %v2979, 64
        %v3013 = vpop.permute.xlu0 %3012
        %3014 = vrot.lane.b32.xlu0 %v2982, 64
        %v3015 = vpop.permute.xlu0 %3014
        %3016 = vrot.lane.b32.xlu0 %v2985, 64
        %v3017 = vpop.permute.xlu0 %3016
        %v3018 = vsel %vm651, %v2987, %v2891
        %v3019 = vsel %vm651, %v2989, %v2893
        %v3020 = vsel %vm651, %v2991, %v2895
        %v3021 = vsel %vm651, %v2993, %v2897
        %v3022 = vsel %vm651, %v2995, %v2899
        %v3023 = vsel %vm651, %v2997, %v2901
        %v3024 = vsel %vm651, %v2999, %v2903
        %v3025 = vsel %vm651, %v3001, %v2905
        %v3026 = vsel %vm651, %v3003, %v2907
        %v3027 = vsel %vm651, %v3005, %v2909
        %v3028 = vsel %vm651, %v3007, %v2911
        %v3029 = vsel %vm651, %v3009, %v2913
        %v3030 = vsel %vm651, %v3011, %v2915
        %v3031 = vsel %vm651, %v3013, %v2917
        %v3032 = vsel %vm651, %v3015, %v2919
        %v3033 = vsel %vm651, %v3017, %v2921
        %v3034 = vmul.f32 %v3018, %v765
        %v3035 = vmul.f32 %v3019, %v767
        %v3036 = vmul.f32 %v3020, %v769
        %v3037 = vmul.f32 %v3021, %v771
        %v3038 = vmul.f32 %v3022, %v773
        %v3039 = vmul.f32 %v3023, %v775
        %v3040 = vmul.f32 %v3024, %v777
        %v3041 = vmul.f32 %v3025, %v779
        %v3042 = vmul.f32 %v3026, %v781
        %v3043 = vmul.f32 %v3027, %v783
        %v3044 = vmul.f32 %v3028, %v785
        %v3045 = vmul.f32 %v3029, %v787
        %v3046 = vmul.f32 %v3030, %v789
        %v3047 = vmul.f32 %v3031, %v791
        %v3048 = vmul.f32 %v3032, %v793
        %v3049 = vmul.f32 %v3033, %v795
        %3066 = vrot.lane.b32.xlu0 %v3034, 32
        %v3067 = vpop.permute.xlu0 %3066
        %3068 = vrot.lane.b32.xlu0 %v3035, 32
        %v3069 = vpop.permute.xlu0 %3068
        %3070 = vrot.lane.b32.xlu0 %v3036, 32
        %v3071 = vpop.permute.xlu0 %3070
        %3072 = vrot.lane.b32.xlu0 %v3037, 32
        %v3073 = vpop.permute.xlu0 %3072
        %3074 = vrot.lane.b32.xlu0 %v3038, 32
        %v3075 = vpop.permute.xlu0 %3074
        %3076 = vrot.lane.b32.xlu0 %v3039, 32
        %v3077 = vpop.permute.xlu0 %3076
        %3078 = vrot.lane.b32.xlu0 %v3040, 32
        %v3079 = vpop.permute.xlu0 %3078
        %3080 = vrot.lane.b32.xlu0 %v3041, 32
        %v3081 = vpop.permute.xlu0 %3080
        %3082 = vrot.lane.b32.xlu0 %v3042, 32
        %v3083 = vpop.permute.xlu0 %3082
        %3084 = vrot.lane.b32.xlu0 %v3043, 32
        %v3085 = vpop.permute.xlu0 %3084
        %3086 = vrot.lane.b32.xlu0 %v3044, 32
        %v3087 = vpop.permute.xlu0 %3086
        %3088 = vrot.lane.b32.xlu0 %v3045, 32
        %v3089 = vpop.permute.xlu0 %3088
        %3090 = vrot.lane.b32.xlu0 %v3046, 32
        %v3091 = vpop.permute.xlu0 %3090
        %3092 = vrot.lane.b32.xlu0 %v3047, 32
        %v3093 = vpop.permute.xlu0 %3092
        %3094 = vrot.lane.b32.xlu0 %v3048, 32
        %v3095 = vpop.permute.xlu0 %3094
        %3096 = vrot.lane.b32.xlu0 %v3049, 32
        %v3097 = vpop.permute.xlu0 %3096
        %v3114 = vadd.f32 %v2858, %v3067
        %v3115 = vadd.f32 %v2859, %v3069
        %v3116 = vadd.f32 %v2860, %v3071
        %v3117 = vadd.f32 %v2861, %v3073
        %v3118 = vadd.f32 %v2862, %v3075
        %v3119 = vadd.f32 %v2863, %v3077
        %v3120 = vadd.f32 %v2864, %v3079
        %v3121 = vadd.f32 %v2865, %v3081
        %v3122 = vadd.f32 %v2866, %v3083
        %v3123 = vadd.f32 %v2867, %v3085
        %v3124 = vadd.f32 %v2868, %v3087
        %v3125 = vadd.f32 %v2869, %v3089
        %v3126 = vadd.f32 %v2870, %v3091
        %v3127 = vadd.f32 %v2871, %v3093
        %v3128 = vadd.f32 %v2872, %v3095
        %v3129 = vadd.f32 %v2873, %v3097
        %v3130 = vmul.f32 %v3114, %v1239
        %v3131 = vmul.f32 %v3115, %v1244
        %v3132 = vmul.f32 %v3116, %v1249
        %v3133 = vmul.f32 %v3117, %v1254
        %v3134 = vmul.f32 %v3118, %v1259
        %v3135 = vmul.f32 %v3119, %v1264
        %v3136 = vmul.f32 %v3120, %v1269
        %v3137 = vmul.f32 %v3121, %v1274
        %v3138 = vmul.f32 %v3122, %v1279
        %v3139 = vmul.f32 %v3123, %v1284
        %v3140 = vmul.f32 %v3124, %v1289
        %v3141 = vmul.f32 %v3125, %v1294
        %v3142 = vmul.f32 %v3126, %v1299
        %v3143 = vmul.f32 %v3127, %v1304
        %v3144 = vmul.f32 %v3128, %v1309
        %v3145 = vmul.f32 %v3129, %v1314
        %v3146 = vpack.c.bf16 %v3131, %v3130
        %v3147 = vpack.c.bf16 %v3133, %v3132
        %v3148 = vpack.c.bf16 %v3135, %v3134
        %v3149 = vpack.c.bf16 %v3137, %v3136
        %v3150 = vpack.c.bf16 %v3139, %v3138
        %v3151 = vpack.c.bf16 %v3141, %v3140
        %v3152 = vpack.c.bf16 %v3143, %v3142
        %v3153 = vpack.c.bf16 %v3145, %v3144
        %v3154 = vld [vmem:[%s368] sm:$0x1]
        %v3156 = vlaneseq
        %v3157 = vshrl.u32 %v3156, 7
        %v3158 = vsub.s32 0, %v3157
        %v3159 = vrot.slane %v3154, %v3158
        %3169 = vrot.lane.b32.xlu0 %v3146, 64
        %v3170 = vpop.permute.xlu0 %3169
        %3171 = vrot.lane.b32.xlu0 %v3147, 64
        %v3172 = vpop.permute.xlu0 %3171
        %3173 = vrot.lane.b32.xlu0 %v3148, 64
        %v3174 = vpop.permute.xlu0 %3173
        %3175 = vrot.lane.b32.xlu0 %v3149, 64
        %v3176 = vpop.permute.xlu0 %3175
        %3177 = vrot.lane.b32.xlu0 %v3150, 64
        %v3178 = vpop.permute.xlu0 %3177
        %3179 = vrot.lane.b32.xlu0 %v3151, 64
        %v3180 = vpop.permute.xlu0 %3179
        %3181 = vrot.lane.b32.xlu0 %v3152, 64
        %v3182 = vpop.permute.xlu0 %3181
        %3183 = vrot.lane.b32.xlu0 %v3153, 64
        %v3184 = vpop.permute.xlu0 %3183
        %v3186 = vsel %vm1371, %v2850, 0
        %v3189 = vsel %vm1371, %v2851, 0
        %v3192 = vsel %vm1371, %v2852, 0
        %v3195 = vsel %vm1371, %v2853, 0
        %v3198 = vsel %vm1371, %v2854, 0
        %v3201 = vsel %vm1371, %v2855, 0
        %v3204 = vsel %vm1371, %v2856, 0
        %v3207 = vsel %vm1371, %v2857, 0
        %v3210 = vsel %vm1371, %v3170, 0
        %v3213 = vsel %vm1371, %v3172, 0
        %v3216 = vsel %vm1371, %v3174, 0
        %v3219 = vsel %vm1371, %v3176, 0
        %v3222 = vsel %vm1371, %v3178, 0
        %v3225 = vsel %vm1371, %v3180, 0
        %v3228 = vsel %vm1371, %v3182, 0
        %v3231 = vsel %vm1371, %v3184, 0
        %3233 = vmatprep.subr.bf16.mxu0 0
        %3234 = vmatpush1.bf16.xpose.msra.mxu0 %v3210
        %3235 = vmatprep.subr.bf16.mxu0 0
        %3236 = vmatpush1.bf16.xpose.msra.mxu0 %v3213
        %3237 = vmatprep.subr.bf16.mxu0 0
        %3238 = vmatpush1.bf16.xpose.msra.mxu0 %v3216
        %3239 = vmatprep.subr.bf16.mxu0 0
        %3240 = vmatpush1.bf16.xpose.msra.mxu0 %v3219
        %3241 = vmatprep.subr.bf16.mxu0 0
        %3242 = vmatpush1.bf16.xpose.msra.mxu0 %v3222
        %3243 = vmatprep.subr.bf16.mxu0 0
        %3244 = vmatpush1.bf16.xpose.msra.mxu0 %v3225
        %3245 = vmatprep.subr.bf16.mxu0 0
        %3246 = vmatpush1.bf16.xpose.msra.mxu0 %v3228
        %3247 = vmatprep.subr.bf16.mxu0 0
        %3248 = vmatpush1.bf16.xpose.msra.mxu0 %v3231
        %3249 = vmatprep.subr.bf16.mxu0 0
        %3250 = vmatpush1.bf16.xpose.msra.mxu0 0
        %3251 = vmatprep.subr.bf16.mxu0 0
        %3252 = vmatpush1.bf16.xpose.msra.mxu0 0
        %3253 = vmatprep.subr.bf16.mxu0 0
        %3254 = vmatpush1.bf16.xpose.msra.mxu0 0
        %3255 = vmatprep.subr.bf16.mxu0 0
        %3256 = vmatpush1.bf16.xpose.msra.mxu0 0
        %3257 = vmatprep.subr.bf16.mxu0 0
        %3258 = vmatpush1.bf16.xpose.msra.mxu0 0
        %3259 = vmatprep.subr.bf16.mxu0 0
        %3260 = vmatpush1.bf16.xpose.msra.mxu0 0
        %3261 = vmatprep.subr.bf16.mxu0 0
        %3262 = vmatpush1.bf16.xpose.msra.mxu0 0
        %3263 = vmatprep.subr.bf16.mxu0 0
        %3264 = vmatpush1.bf16.xpose.msra.mxu0 0
        %3265 = vmatprep.mubr.bf16.mxu0 0
        %3266 = vmatmul.mubr.bf16.gmra.mrb[0].mxu0 %v3186
        %v3267 = vpop.f32.mrb[0].mxu0
        %v3268 = vadd.f32 %v3159, %v3267
        %v3269 = vpop.f32.mrb[0].mxu0
        %v3270 = vpop.f32.mrb[0].mxu0
        %v3271 = vadd.f32 %v3159, %v3270
        %v3272 = vpop.f32.mrb[0].mxu0
        %3273 = vmatprep.mubr.bf16.mxu0 0
        %3274 = vmatmul.mubr.bf16.gmra.mrb[0].mxu0 %v3189
        %v3275 = vpop.f32.mrb[0].mxu0
        %v3276 = vadd.f32 %v3159, %v3275
        %v3277 = vpop.f32.mrb[0].mxu0
        %v3278 = vpop.f32.mrb[0].mxu0
        %v3279 = vadd.f32 %v3159, %v3278
        %v3280 = vpop.f32.mrb[0].mxu0
        %3281 = vmatprep.mubr.bf16.mxu0 0
        %3282 = vmatmul.mubr.bf16.gmra.mrb[0].mxu0 %v3192
        %v3283 = vpop.f32.mrb[0].mxu0
        %v3284 = vadd.f32 %v3159, %v3283
        %v3285 = vpop.f32.mrb[0].mxu0
        %v3286 = vpop.f32.mrb[0].mxu0
        %v3287 = vadd.f32 %v3159, %v3286
        %v3288 = vpop.f32.mrb[0].mxu0
        %3289 = vmatprep.mubr.bf16.mxu0 0
        %3290 = vmatmul.mubr.bf16.gmra.mrb[0].mxu0 %v3195
        %v3291 = vpop.f32.mrb[0].mxu0
        %v3292 = vadd.f32 %v3159, %v3291
        %v3293 = vpop.f32.mrb[0].mxu0
        %v3294 = vpop.f32.mrb[0].mxu0
        %v3295 = vadd.f32 %v3159, %v3294
        %v3296 = vpop.f32.mrb[0].mxu0
        %3297 = vmatprep.mubr.bf16.mxu0 0
        %3298 = vmatmul.mubr.bf16.gmra.mrb[0].mxu0 %v3198
        %v3299 = vpop.f32.mrb[0].mxu0
        %v3300 = vadd.f32 %v3159, %v3299
        %v3301 = vpop.f32.mrb[0].mxu0
        %v3302 = vpop.f32.mrb[0].mxu0
        %v3303 = vadd.f32 %v3159, %v3302
        %v3304 = vpop.f32.mrb[0].mxu0
        %3305 = vmatprep.mubr.bf16.mxu0 0
        %3306 = vmatmul.mubr.bf16.gmra.mrb[0].mxu0 %v3201
        %v3307 = vpop.f32.mrb[0].mxu0
        %v3308 = vadd.f32 %v3159, %v3307
        %v3309 = vpop.f32.mrb[0].mxu0
        %v3310 = vpop.f32.mrb[0].mxu0
        %v3311 = vadd.f32 %v3159, %v3310
        %v3312 = vpop.f32.mrb[0].mxu0
        %3313 = vmatprep.mubr.bf16.mxu0 0
        %3314 = vmatmul.mubr.bf16.gmra.mrb[0].mxu0 %v3204
        %v3315 = vpop.f32.mrb[0].mxu0
        %v3316 = vadd.f32 %v3159, %v3315
        %v3317 = vpop.f32.mrb[0].mxu0
        %v3318 = vpop.f32.mrb[0].mxu0
        %v3319 = vadd.f32 %v3159, %v3318
        %v3320 = vpop.f32.mrb[0].mxu0
        %3321 = vmatprep.mubr.bf16.mxu0 0
        %3322 = vmatmul.mubr.bf16.gmra.mrb[0].mxu0 %v3207
        %v3323 = vpop.f32.mrb[0].mxu0
        %v3324 = vadd.f32 %v3159, %v3323
        %v3325 = vpop.f32.mrb[0].mxu0
        %v3326 = vpop.f32.mrb[0].mxu0
        %v3327 = vadd.f32 %v3159, %v3326
        %v3328 = vpop.f32.mrb[0].mxu0
        %3329 = vdwg.mxu0
        %v3330 = vld [vmem:[%s6] sm:$0xff]
        %v3331 = vld [vmem:[%s6 + $0x8] sm:$0xff]
        %v3332 = vld [vmem:[%s6 + $0x10] sm:$0xff]
        %v3333 = vld [vmem:[%s6 + $0x18] sm:$0xff]
        %v3334 = vld [vmem:[%s6 + $0x20] sm:$0xff]
        %v3335 = vld [vmem:[%s6 + $0x28] sm:$0xff]
        %v3336 = vld [vmem:[%s6 + $0x30] sm:$0xff]
        %v3337 = vld [vmem:[%s6 + $0x38] sm:$0xff]
        %v3338 = vld [vmem:[%s6 + $0x40] sm:$0xff]
        %v3339 = vld [vmem:[%s6 + $0x48] sm:$0xff]
        %v3340 = vld [vmem:[%s6 + $0x50] sm:$0xff]
        %v3341 = vld [vmem:[%s6 + $0x58] sm:$0xff]
        %v3342 = vld [vmem:[%s6 + $0x60] sm:$0xff]
        %v3343 = vld [vmem:[%s6 + $0x68] sm:$0xff]
        %v3344 = vld [vmem:[%s6 + $0x70] sm:$0xff]
        %v3345 = vld [vmem:[%s6 + $0x78] sm:$0xff]
        %v3346 = vsub.f32 %v3268, %v3330
        %v3347 = vsub.f32 %v3271, %v3331
        %v3348 = vsub.f32 %v3276, %v3332
        %v3349 = vsub.f32 %v3279, %v3333
        %v3350 = vsub.f32 %v3284, %v3334
        %v3351 = vsub.f32 %v3287, %v3335
        %v3352 = vsub.f32 %v3292, %v3336
        %v3353 = vsub.f32 %v3295, %v3337
        %v3354 = vsub.f32 %v3300, %v3338
        %v3355 = vsub.f32 %v3303, %v3339
        %v3356 = vsub.f32 %v3308, %v3340
        %v3357 = vsub.f32 %v3311, %v3341
        %v3358 = vsub.f32 %v3316, %v3342
        %v3359 = vsub.f32 %v3319, %v3343
        %v3360 = vsub.f32 %v3324, %v3344
        %v3361 = vsub.f32 %v3327, %v3345
        %s3362 = scalar_lea.vmem %s343, 256 [#allocation2]
        %3363 = vst [vmem:[%s3362] sm:$0xff] %v3346
        %3364 = vst [vmem:[%s3362 + $0x8] sm:$0xff] %v3347
        %3365 = vst [vmem:[%s3362 + $0x10] sm:$0xff] %v3348
        %3366 = vst [vmem:[%s3362 + $0x18] sm:$0xff] %v3349
        %3367 = vst [vmem:[%s3362 + $0x20] sm:$0xff] %v3350
        %3368 = vst [vmem:[%s3362 + $0x28] sm:$0xff] %v3351
        %3369 = vst [vmem:[%s3362 + $0x30] sm:$0xff] %v3352
        %3370 = vst [vmem:[%s3362 + $0x38] sm:$0xff] %v3353
        %3371 = vst [vmem:[%s3362 + $0x40] sm:$0xff] %v3354
        %3372 = vst [vmem:[%s3362 + $0x48] sm:$0xff] %v3355
        %3373 = vst [vmem:[%s3362 + $0x50] sm:$0xff] %v3356
        %3374 = vst [vmem:[%s3362 + $0x58] sm:$0xff] %v3357
        %3375 = vst [vmem:[%s3362 + $0x60] sm:$0xff] %v3358
        %3376 = vst [vmem:[%s3362 + $0x68] sm:$0xff] %v3359
        %3377 = vst [vmem:[%s3362 + $0x70] sm:$0xff] %v3360
        %3378 = vst [vmem:[%s3362 + $0x78] sm:$0xff] %v3361
        %s3379 = scalar_lea.vmem %s354, 192
        %v3380 = vld [vmem:[%s3379] sm:$0xf]
        %v3381 = vld [vmem:[%s3379 + $0x4] sm:$0xf]
        %v3382 = vld [vmem:[%s3379 + $0x8] sm:$0xf]
        %v3383 = vld [vmem:[%s3379 + $0xc] sm:$0xf]
        %v3384 = vld [vmem:[%s3379 + $0x10] sm:$0xf]
        %v3385 = vld [vmem:[%s3379 + $0x14] sm:$0xf]
        %v3386 = vld [vmem:[%s3379 + $0x18] sm:$0xf]
        %v3387 = vld [vmem:[%s3379 + $0x1c] sm:$0xf]
        %v3388 = vld [vmem:[%s3379 + $0x20] sm:$0xf]
        %v3389 = vld [vmem:[%s3379 + $0x24] sm:$0xf]
        %v3390 = vld [vmem:[%s3379 + $0x28] sm:$0xf]
        %v3391 = vld [vmem:[%s3379 + $0x2c] sm:$0xf]
        %v3392 = vld [vmem:[%s3379 + $0x30] sm:$0xf]
        %v3393 = vld [vmem:[%s3379 + $0x34] sm:$0xf]
        %v3394 = vld [vmem:[%s3379 + $0x38] sm:$0xf]
        %v3395 = vld [vmem:[%s3379 + $0x3c] sm:$0xf]
        %s3396 = scalar_lea.vmem %s359, 3
        %v3397 = vld [vmem:[%s3396] sm:$0x1]
        %v3399 = vlaneseq
        %v3400 = vshrl.u32 %v3399, 7
        %v3401 = vsub.s32 0, %v3400
        %v3402 = vrot.slane %v3397, %v3401
        %v3420 = vunpack.c.l.b16 %v3380
        %v3421 = vunpack.c.l.b16 %v3381
        %v3422 = vunpack.c.l.b16 %v3382
        %v3423 = vunpack.c.l.b16 %v3383
        %v3424 = vunpack.c.l.b16 %v3384
        %v3425 = vunpack.c.l.b16 %v3385
        %v3426 = vunpack.c.l.b16 %v3386
        %v3427 = vunpack.c.l.b16 %v3387
        %v3428 = vunpack.c.l.b16 %v3388
        %v3429 = vunpack.c.l.b16 %v3389
        %v3430 = vunpack.c.l.b16 %v3390
        %v3431 = vunpack.c.l.b16 %v3391
        %v3432 = vunpack.c.l.b16 %v3392
        %v3433 = vunpack.c.l.b16 %v3393
        %v3434 = vunpack.c.l.b16 %v3394
        %v3435 = vunpack.c.l.b16 %v3395
        %v3436 = vpack.c.b16 %v3421, %v3420
        %v3437 = vpack.c.b16 %v3423, %v3422
        %v3438 = vpack.c.b16 %v3425, %v3424
        %v3439 = vpack.c.b16 %v3427, %v3426
        %v3440 = vpack.c.b16 %v3429, %v3428
        %v3441 = vpack.c.b16 %v3431, %v3430
        %v3442 = vpack.c.b16 %v3433, %v3432
        %v3443 = vpack.c.b16 %v3435, %v3434
        %3452 = vmatprep.subr.bf16.mxu0 0
        %3453 = vmatpush1.bf16.msra.mxu0 %v3436
        %3454 = vmatprep.subr.bf16.mxu0 0
        %3455 = vmatpush1.bf16.msra.mxu0 %v3437
        %3456 = vmatprep.subr.bf16.mxu0 0
        %3457 = vmatpush1.bf16.msra.mxu0 %v3438
        %3458 = vmatprep.subr.bf16.mxu0 0
        %3459 = vmatpush1.bf16.msra.mxu0 %v3439
        %3460 = vmatprep.subr.bf16.mxu0 0
        %3461 = vmatpush1.bf16.msra.mxu0 %v3440
        %3462 = vmatprep.subr.bf16.mxu0 0
        %3463 = vmatpush1.bf16.msra.mxu0 %v3441
        %3464 = vmatprep.subr.bf16.mxu0 0
        %3465 = vmatpush1.bf16.msra.mxu0 %v3442
        %3466 = vmatprep.subr.bf16.mxu0 0
        %3467 = vmatpush1.bf16.msra.mxu0 %v3443
        %3468 = vmatprep.subr.bf16.mxu0 0
        %3469 = vmatpush1.bf16.msra.mxu0 0
        %3470 = vmatprep.subr.bf16.mxu0 0
        %3471 = vmatpush1.bf16.msra.mxu0 0
        %3472 = vmatprep.subr.bf16.mxu0 0
        %3473 = vmatpush1.bf16.msra.mxu0 0
        %3474 = vmatprep.subr.bf16.mxu0 0
        %3475 = vmatpush1.bf16.msra.mxu0 0
        %3476 = vmatprep.subr.bf16.mxu0 0
        %3477 = vmatpush1.bf16.msra.mxu0 0
        %3478 = vmatprep.subr.bf16.mxu0 0
        %3479 = vmatpush1.bf16.msra.mxu0 0
        %3480 = vmatprep.subr.bf16.mxu0 0
        %3481 = vmatpush1.bf16.msra.mxu0 0
        %3482 = vmatprep.subr.bf16.mxu0 0
        %3483 = vmatpush1.bf16.msra.mxu0 0
        %3484 = vmatprep.mubr.bf16.mxu0 0
        %3485 = vmatmul.mubr.bf16.gmra.mrb[0].mxu0 %v474
        %v3486 = vpop.f32.mrb[0].mxu0
        %v3487 = vadd.f32 %v3402, %v3486
        %v3488 = vpop.f32.mrb[0].mxu0
        %v3489 = vpop.f32.mrb[0].mxu0
        %v3490 = vadd.f32 %v3402, %v3489
        %v3491 = vpop.f32.mrb[0].mxu0
        %3492 = vmatprep.mubr.bf16.mxu0 0
        %3493 = vmatmul.mubr.bf16.gmra.mrb[0].mxu0 %v475
        %v3494 = vpop.f32.mrb[0].mxu0
        %v3495 = vadd.f32 %v3402, %v3494
        %v3496 = vpop.f32.mrb[0].mxu0
        %v3497 = vpop.f32.mrb[0].mxu0
        %v3498 = vadd.f32 %v3402, %v3497
        %v3499 = vpop.f32.mrb[0].mxu0
        %3500 = vmatprep.mubr.bf16.mxu0 0
        %3501 = vmatmul.mubr.bf16.gmra.mrb[0].mxu0 %v476
        %v3502 = vpop.f32.mrb[0].mxu0
        %v3503 = vadd.f32 %v3402, %v3502
        %v3504 = vpop.f32.mrb[0].mxu0
        %v3505 = vpop.f32.mrb[0].mxu0
        %v3506 = vadd.f32 %v3402, %v3505
        %v3507 = vpop.f32.mrb[0].mxu0
        %3508 = vmatprep.mubr.bf16.mxu0 0
        %3509 = vmatmul.mubr.bf16.gmra.mrb[0].mxu0 %v477
        %v3510 = vpop.f32.mrb[0].mxu0
        %v3511 = vadd.f32 %v3402, %v3510
        %v3512 = vpop.f32.mrb[0].mxu0
        %v3513 = vpop.f32.mrb[0].mxu0
        %v3514 = vadd.f32 %v3402, %v3513
        %v3515 = vpop.f32.mrb[0].mxu0
        %3516 = vmatprep.mubr.bf16.mxu0 0
        %3517 = vmatmul.mubr.bf16.gmra.mrb[0].mxu0 %v478
        %v3518 = vpop.f32.mrb[0].mxu0
        %v3519 = vadd.f32 %v3402, %v3518
        %v3520 = vpop.f32.mrb[0].mxu0
        %v3521 = vpop.f32.mrb[0].mxu0
        %v3522 = vadd.f32 %v3402, %v3521
        %v3523 = vpop.f32.mrb[0].mxu0
        %3524 = vmatprep.mubr.bf16.mxu0 0
        %3525 = vmatmul.mubr.bf16.gmra.mrb[0].mxu0 %v479
        %v3526 = vpop.f32.mrb[0].mxu0
        %v3527 = vadd.f32 %v3402, %v3526
        %v3528 = vpop.f32.mrb[0].mxu0
        %v3529 = vpop.f32.mrb[0].mxu0
        %v3530 = vadd.f32 %v3402, %v3529
        %v3531 = vpop.f32.mrb[0].mxu0
        %3532 = vmatprep.mubr.bf16.mxu0 0
        %3533 = vmatmul.mubr.bf16.gmra.mrb[0].mxu0 %v480
        %v3534 = vpop.f32.mrb[0].mxu0
        %v3535 = vadd.f32 %v3402, %v3534
        %v3536 = vpop.f32.mrb[0].mxu0
        %v3537 = vpop.f32.mrb[0].mxu0
        %v3538 = vadd.f32 %v3402, %v3537
        %v3539 = vpop.f32.mrb[0].mxu0
        %3540 = vmatprep.mubr.bf16.mxu0 0
        %3541 = vmatmul.mubr.bf16.gmra.mrb[0].mxu0 %v481
        %v3542 = vpop.f32.mrb[0].mxu0
        %v3543 = vadd.f32 %v3402, %v3542
        %v3544 = vpop.f32.mrb[0].mxu0
        %v3545 = vpop.f32.mrb[0].mxu0
        %v3546 = vadd.f32 %v3402, %v3545
        %v3547 = vpop.f32.mrb[0].mxu0
        %3548 = vdwg.mxu0
        %v3549 = vmul.f32 %v3487, %v387
        %v3550 = vmul.f32 %v3490, %v388
        %v3551 = vmul.f32 %v3495, %v389
        %v3552 = vmul.f32 %v3498, %v390
        %v3553 = vmul.f32 %v3503, %v391
        %v3554 = vmul.f32 %v3506, %v392
        %v3555 = vmul.f32 %v3511, %v393
        %v3556 = vmul.f32 %v3514, %v394
        %v3557 = vmul.f32 %v3519, %v395
        %v3558 = vmul.f32 %v3522, %v396
        %v3559 = vmul.f32 %v3527, %v397
        %v3560 = vmul.f32 %v3530, %v398
        %v3561 = vmul.f32 %v3535, %v399
        %v3562 = vmul.f32 %v3538, %v400
        %v3563 = vmul.f32 %v3543, %v401
        %v3564 = vmul.f32 %v3546, %v402
        %3565 = vrot.lane.b32.xlu0 %v3487, 64
        %v3566 = vpop.permute.xlu0 %3565
        %v3567 = vsel %vm651, %v3566, %v3487
        %3568 = vrot.lane.b32.xlu0 %v3490, 64
        %v3569 = vpop.permute.xlu0 %3568
        %v3570 = vsel %vm651, %v3569, %v3490
        %3571 = vrot.lane.b32.xlu0 %v3495, 64
        %v3572 = vpop.permute.xlu0 %3571
        %v3573 = vsel %vm651, %v3572, %v3495
        %3574 = vrot.lane.b32.xlu0 %v3498, 64
        %v3575 = vpop.permute.xlu0 %3574
        %v3576 = vsel %vm651, %v3575, %v3498
        %3577 = vrot.lane.b32.xlu0 %v3503, 64
        %v3578 = vpop.permute.xlu0 %3577
        %v3579 = vsel %vm651, %v3578, %v3503
        %3580 = vrot.lane.b32.xlu0 %v3506, 64
        %v3581 = vpop.permute.xlu0 %3580
        %v3582 = vsel %vm651, %v3581, %v3506
        %3583 = vrot.lane.b32.xlu0 %v3511, 64
        %v3584 = vpop.permute.xlu0 %3583
        %v3585 = vsel %vm651, %v3584, %v3511
        %3586 = vrot.lane.b32.xlu0 %v3514, 64
        %v3587 = vpop.permute.xlu0 %3586
        %v3588 = vsel %vm651, %v3587, %v3514
        %3589 = vrot.lane.b32.xlu0 %v3519, 64
        %v3590 = vpop.permute.xlu0 %3589
        %v3591 = vsel %vm651, %v3590, %v3519
        %3592 = vrot.lane.b32.xlu0 %v3522, 64
        %v3593 = vpop.permute.xlu0 %3592
        %v3594 = vsel %vm651, %v3593, %v3522
        %3595 = vrot.lane.b32.xlu0 %v3527, 64
        %v3596 = vpop.permute.xlu0 %3595
        %v3597 = vsel %vm651, %v3596, %v3527
        %3598 = vrot.lane.b32.xlu0 %v3530, 64
        %v3599 = vpop.permute.xlu0 %3598
        %v3600 = vsel %vm651, %v3599, %v3530
        %3601 = vrot.lane.b32.xlu0 %v3535, 64
        %v3602 = vpop.permute.xlu0 %3601
        %v3603 = vsel %vm651, %v3602, %v3535
        %3604 = vrot.lane.b32.xlu0 %v3538, 64
        %v3605 = vpop.permute.xlu0 %3604
        %v3606 = vsel %vm651, %v3605, %v3538
        %3607 = vrot.lane.b32.xlu0 %v3543, 64
        %v3608 = vpop.permute.xlu0 %3607
        %v3609 = vsel %vm651, %v3608, %v3543
        %3610 = vrot.lane.b32.xlu0 %v3546, 64
        %v3611 = vpop.permute.xlu0 %3610
        %v3612 = vsel %vm651, %v3611, %v3546
        %3613 = vrot.lane.b32.xlu0 %v3567, 64
        %v3614 = vpop.permute.xlu0 %3613
        %3615 = vrot.lane.b32.xlu0 %v3570, 64
        %v3616 = vpop.permute.xlu0 %3615
        %3617 = vrot.lane.b32.xlu0 %v3573, 64
        %v3618 = vpop.permute.xlu0 %3617
        %3619 = vrot.lane.b32.xlu0 %v3576, 64
        %v3620 = vpop.permute.xlu0 %3619
        %3621 = vrot.lane.b32.xlu0 %v3579, 64
        %v3622 = vpop.permute.xlu0 %3621
        %3623 = vrot.lane.b32.xlu0 %v3582, 64
        %v3624 = vpop.permute.xlu0 %3623
        %3625 = vrot.lane.b32.xlu0 %v3585, 64
        %v3626 = vpop.permute.xlu0 %3625
        %3627 = vrot.lane.b32.xlu0 %v3588, 64
        %v3628 = vpop.permute.xlu0 %3627
        %3629 = vrot.lane.b32.xlu0 %v3591, 64
        %v3630 = vpop.permute.xlu0 %3629
        %3631 = vrot.lane.b32.xlu0 %v3594, 64
        %v3632 = vpop.permute.xlu0 %3631
        %3633 = vrot.lane.b32.xlu0 %v3597, 64
        %v3634 = vpop.permute.xlu0 %3633
        %3635 = vrot.lane.b32.xlu0 %v3600, 64
        %v3636 = vpop.permute.xlu0 %3635
        %3637 = vrot.lane.b32.xlu0 %v3603, 64
        %v3638 = vpop.permute.xlu0 %3637
        %3639 = vrot.lane.b32.xlu0 %v3606, 64
        %v3640 = vpop.permute.xlu0 %3639
        %3641 = vrot.lane.b32.xlu0 %v3609, 64
        %v3642 = vpop.permute.xlu0 %3641
        %3643 = vrot.lane.b32.xlu0 %v3612, 64
        %v3644 = vpop.permute.xlu0 %3643
        %v3645 = vsel %vm651, %v3614, %v3487
        %v3646 = vsel %vm651, %v3616, %v3490
        %v3647 = vsel %vm651, %v3618, %v3495
        %v3648 = vsel %vm651, %v3620, %v3498
        %v3649 = vsel %vm651, %v3622, %v3503
        %v3650 = vsel %vm651, %v3624, %v3506
        %v3651 = vsel %vm651, %v3626, %v3511
        %v3652 = vsel %vm651, %v3628, %v3514
        %v3653 = vsel %vm651, %v3630, %v3519
        %v3654 = vsel %vm651, %v3632, %v3522
        %v3655 = vsel %vm651, %v3634, %v3527
        %v3656 = vsel %vm651, %v3636, %v3530
        %v3657 = vsel %vm651, %v3638, %v3535
        %v3658 = vsel %vm651, %v3640, %v3538
        %v3659 = vsel %vm651, %v3642, %v3543
        %v3660 = vsel %vm651, %v3644, %v3546
        %v3661 = vmul.f32 %v3645, %v765
        %v3662 = vmul.f32 %v3646, %v767
        %v3663 = vmul.f32 %v3647, %v769
        %v3664 = vmul.f32 %v3648, %v771
        %v3665 = vmul.f32 %v3649, %v773
        %v3666 = vmul.f32 %v3650, %v775
        %v3667 = vmul.f32 %v3651, %v777
        %v3668 = vmul.f32 %v3652, %v779
        %v3669 = vmul.f32 %v3653, %v781
        %v3670 = vmul.f32 %v3654, %v783
        %v3671 = vmul.f32 %v3655, %v785
        %v3672 = vmul.f32 %v3656, %v787
        %v3673 = vmul.f32 %v3657, %v789
        %v3674 = vmul.f32 %v3658, %v791
        %v3675 = vmul.f32 %v3659, %v793
        %v3676 = vmul.f32 %v3660, %v795
        %3693 = vrot.lane.b32.xlu0 %v3661, 96
        %v3694 = vpop.permute.xlu0 %3693
        %3695 = vrot.lane.b32.xlu0 %v3662, 96
        %v3696 = vpop.permute.xlu0 %3695
        %3697 = vrot.lane.b32.xlu0 %v3663, 96
        %v3698 = vpop.permute.xlu0 %3697
        %3699 = vrot.lane.b32.xlu0 %v3664, 96
        %v3700 = vpop.permute.xlu0 %3699
        %3701 = vrot.lane.b32.xlu0 %v3665, 96
        %v3702 = vpop.permute.xlu0 %3701
        %3703 = vrot.lane.b32.xlu0 %v3666, 96
        %v3704 = vpop.permute.xlu0 %3703
        %3705 = vrot.lane.b32.xlu0 %v3667, 96
        %v3706 = vpop.permute.xlu0 %3705
        %3707 = vrot.lane.b32.xlu0 %v3668, 96
        %v3708 = vpop.permute.xlu0 %3707
        %3709 = vrot.lane.b32.xlu0 %v3669, 96
        %v3710 = vpop.permute.xlu0 %3709
        %3711 = vrot.lane.b32.xlu0 %v3670, 96
        %v3712 = vpop.permute.xlu0 %3711
        %3713 = vrot.lane.b32.xlu0 %v3671, 96
        %v3714 = vpop.permute.xlu0 %3713
        %3715 = vrot.lane.b32.xlu0 %v3672, 96
        %v3716 = vpop.permute.xlu0 %3715
        %3717 = vrot.lane.b32.xlu0 %v3673, 96
        %v3718 = vpop.permute.xlu0 %3717
        %3719 = vrot.lane.b32.xlu0 %v3674, 96
        %v3720 = vpop.permute.xlu0 %3719
        %3721 = vrot.lane.b32.xlu0 %v3675, 96
        %v3722 = vpop.permute.xlu0 %3721
        %3723 = vrot.lane.b32.xlu0 %v3676, 96
        %v3724 = vpop.permute.xlu0 %3723
        %v3741 = vadd.f32 %v3549, %v3694
        %v3742 = vadd.f32 %v3550, %v3696
        %v3743 = vadd.f32 %v3551, %v3698
        %v3744 = vadd.f32 %v3552, %v3700
        %v3745 = vadd.f32 %v3553, %v3702
        %v3746 = vadd.f32 %v3554, %v3704
        %v3747 = vadd.f32 %v3555, %v3706
        %v3748 = vadd.f32 %v3556, %v3708
        %v3749 = vadd.f32 %v3557, %v3710
        %v3750 = vadd.f32 %v3558, %v3712
        %v3751 = vadd.f32 %v3559, %v3714
        %v3752 = vadd.f32 %v3560, %v3716
        %v3753 = vadd.f32 %v3561, %v3718
        %v3754 = vadd.f32 %v3562, %v3720
        %v3755 = vadd.f32 %v3563, %v3722
        %v3756 = vadd.f32 %v3564, %v3724
        %v3757 = vpack.c.bf16 %v3742, %v3741
        %v3758 = vpack.c.bf16 %v3744, %v3743
        %v3759 = vpack.c.bf16 %v3746, %v3745
        %v3760 = vpack.c.bf16 %v3748, %v3747
        %v3761 = vpack.c.bf16 %v3750, %v3749
        %v3762 = vpack.c.bf16 %v3752, %v3751
        %v3763 = vpack.c.bf16 %v3754, %v3753
        %v3764 = vpack.c.bf16 %v3756, %v3755
        %v3765 = vmul.f32 %v3487, %v917
        %v3766 = vmul.f32 %v3490, %v919
        %v3767 = vmul.f32 %v3495, %v921
        %v3768 = vmul.f32 %v3498, %v923
        %v3769 = vmul.f32 %v3503, %v925
        %v3770 = vmul.f32 %v3506, %v927
        %v3771 = vmul.f32 %v3511, %v929
        %v3772 = vmul.f32 %v3514, %v931
        %v3773 = vmul.f32 %v3519, %v933
        %v3774 = vmul.f32 %v3522, %v935
        %v3775 = vmul.f32 %v3527, %v937
        %v3776 = vmul.f32 %v3530, %v939
        %v3777 = vmul.f32 %v3535, %v941
        %v3778 = vmul.f32 %v3538, %v943
        %v3779 = vmul.f32 %v3543, %v945
        %v3780 = vmul.f32 %v3546, %v947
        %3797 = vrot.lane.b32.xlu0 %v3487, 64
        %v3798 = vpop.permute.xlu0 %3797
        %3799 = vrot.lane.b32.xlu0 %v3490, 64
        %v3800 = vpop.permute.xlu0 %3799
        %3801 = vrot.lane.b32.xlu0 %v3495, 64
        %v3802 = vpop.permute.xlu0 %3801
        %3803 = vrot.lane.b32.xlu0 %v3498, 64
        %v3804 = vpop.permute.xlu0 %3803
        %3805 = vrot.lane.b32.xlu0 %v3503, 64
        %v3806 = vpop.permute.xlu0 %3805
        %3807 = vrot.lane.b32.xlu0 %v3506, 64
        %v3808 = vpop.permute.xlu0 %3807
        %3809 = vrot.lane.b32.xlu0 %v3511, 64
        %v3810 = vpop.permute.xlu0 %3809
        %3811 = vrot.lane.b32.xlu0 %v3514, 64
        %v3812 = vpop.permute.xlu0 %3811
        %3813 = vrot.lane.b32.xlu0 %v3519, 64
        %v3814 = vpop.permute.xlu0 %3813
        %3815 = vrot.lane.b32.xlu0 %v3522, 64
        %v3816 = vpop.permute.xlu0 %3815
        %3817 = vrot.lane.b32.xlu0 %v3527, 64
        %v3818 = vpop.permute.xlu0 %3817
        %3819 = vrot.lane.b32.xlu0 %v3530, 64
        %v3820 = vpop.permute.xlu0 %3819
        %3821 = vrot.lane.b32.xlu0 %v3535, 64
        %v3822 = vpop.permute.xlu0 %3821
        %3823 = vrot.lane.b32.xlu0 %v3538, 64
        %v3824 = vpop.permute.xlu0 %3823
        %3825 = vrot.lane.b32.xlu0 %v3543, 64
        %v3826 = vpop.permute.xlu0 %3825
        %3827 = vrot.lane.b32.xlu0 %v3546, 64
        %v3828 = vpop.permute.xlu0 %3827
        %3845 = vrot.lane.b32.xlu0 %v3798, 64
        %v3846 = vpop.permute.xlu0 %3845
        %v3847 = vsel %vm651, %v3846, %v3798
        %3848 = vrot.lane.b32.xlu0 %v3800, 64
        %v3849 = vpop.permute.xlu0 %3848
        %v3850 = vsel %vm651, %v3849, %v3800
        %3851 = vrot.lane.b32.xlu0 %v3802, 64
        %v3852 = vpop.permute.xlu0 %3851
        %v3853 = vsel %vm651, %v3852, %v3802
        %3854 = vrot.lane.b32.xlu0 %v3804, 64
        %v3855 = vpop.permute.xlu0 %3854
        %v3856 = vsel %vm651, %v3855, %v3804
        %3857 = vrot.lane.b32.xlu0 %v3806, 64
        %v3858 = vpop.permute.xlu0 %3857
        %v3859 = vsel %vm651, %v3858, %v3806
        %3860 = vrot.lane.b32.xlu0 %v3808, 64
        %v3861 = vpop.permute.xlu0 %3860
        %v3862 = vsel %vm651, %v3861, %v3808
        %3863 = vrot.lane.b32.xlu0 %v3810, 64
        %v3864 = vpop.permute.xlu0 %3863
        %v3865 = vsel %vm651, %v3864, %v3810
        %3866 = vrot.lane.b32.xlu0 %v3812, 64
        %v3867 = vpop.permute.xlu0 %3866
        %v3868 = vsel %vm651, %v3867, %v3812
        %3869 = vrot.lane.b32.xlu0 %v3814, 64
        %v3870 = vpop.permute.xlu0 %3869
        %v3871 = vsel %vm651, %v3870, %v3814
        %3872 = vrot.lane.b32.xlu0 %v3816, 64
        %v3873 = vpop.permute.xlu0 %3872
        %v3874 = vsel %vm651, %v3873, %v3816
        %3875 = vrot.lane.b32.xlu0 %v3818, 64
        %v3876 = vpop.permute.xlu0 %3875
        %v3877 = vsel %vm651, %v3876, %v3818
        %3878 = vrot.lane.b32.xlu0 %v3820, 64
        %v3879 = vpop.permute.xlu0 %3878
        %v3880 = vsel %vm651, %v3879, %v3820
        %3881 = vrot.lane.b32.xlu0 %v3822, 64
        %v3882 = vpop.permute.xlu0 %3881
        %v3883 = vsel %vm651, %v3882, %v3822
        %3884 = vrot.lane.b32.xlu0 %v3824, 64
        %v3885 = vpop.permute.xlu0 %3884
        %v3886 = vsel %vm651, %v3885, %v3824
        %3887 = vrot.lane.b32.xlu0 %v3826, 64
        %v3888 = vpop.permute.xlu0 %3887
        %v3889 = vsel %vm651, %v3888, %v3826
        %3890 = vrot.lane.b32.xlu0 %v3828, 64
        %v3891 = vpop.permute.xlu0 %3890
        %v3892 = vsel %vm651, %v3891, %v3828
        %3893 = vrot.lane.b32.xlu0 %v3847, 64
        %v3894 = vpop.permute.xlu0 %3893
        %3895 = vrot.lane.b32.xlu0 %v3850, 64
        %v3896 = vpop.permute.xlu0 %3895
        %3897 = vrot.lane.b32.xlu0 %v3853, 64
        %v3898 = vpop.permute.xlu0 %3897
        %3899 = vrot.lane.b32.xlu0 %v3856, 64
        %v3900 = vpop.permute.xlu0 %3899
        %3901 = vrot.lane.b32.xlu0 %v3859, 64
        %v3902 = vpop.permute.xlu0 %3901
        %3903 = vrot.lane.b32.xlu0 %v3862, 64
        %v3904 = vpop.permute.xlu0 %3903
        %3905 = vrot.lane.b32.xlu0 %v3865, 64
        %v3906 = vpop.permute.xlu0 %3905
        %3907 = vrot.lane.b32.xlu0 %v3868, 64
        %v3908 = vpop.permute.xlu0 %3907
        %3909 = vrot.lane.b32.xlu0 %v3871, 64
        %v3910 = vpop.permute.xlu0 %3909
        %3911 = vrot.lane.b32.xlu0 %v3874, 64
        %v3912 = vpop.permute.xlu0 %3911
        %3913 = vrot.lane.b32.xlu0 %v3877, 64
        %v3914 = vpop.permute.xlu0 %3913
        %3915 = vrot.lane.b32.xlu0 %v3880, 64
        %v3916 = vpop.permute.xlu0 %3915
        %3917 = vrot.lane.b32.xlu0 %v3883, 64
        %v3918 = vpop.permute.xlu0 %3917
        %3919 = vrot.lane.b32.xlu0 %v3886, 64
        %v3920 = vpop.permute.xlu0 %3919
        %3921 = vrot.lane.b32.xlu0 %v3889, 64
        %v3922 = vpop.permute.xlu0 %3921
        %3923 = vrot.lane.b32.xlu0 %v3892, 64
        %v3924 = vpop.permute.xlu0 %3923
        %v3925 = vsel %vm651, %v3894, %v3798
        %v3926 = vsel %vm651, %v3896, %v3800
        %v3927 = vsel %vm651, %v3898, %v3802
        %v3928 = vsel %vm651, %v3900, %v3804
        %v3929 = vsel %vm651, %v3902, %v3806
        %v3930 = vsel %vm651, %v3904, %v3808
        %v3931 = vsel %vm651, %v3906, %v3810
        %v3932 = vsel %vm651, %v3908, %v3812
        %v3933 = vsel %vm651, %v3910, %v3814
        %v3934 = vsel %vm651, %v3912, %v3816
        %v3935 = vsel %vm651, %v3914, %v3818
        %v3936 = vsel %vm651, %v3916, %v3820
        %v3937 = vsel %vm651, %v3918, %v3822
        %v3938 = vsel %vm651, %v3920, %v3824
        %v3939 = vsel %vm651, %v3922, %v3826
        %v3940 = vsel %vm651, %v3924, %v3828
        %v3941 = vmul.f32 %v3925, %v765
        %v3942 = vmul.f32 %v3926, %v767
        %v3943 = vmul.f32 %v3927, %v769
        %v3944 = vmul.f32 %v3928, %v771
        %v3945 = vmul.f32 %v3929, %v773
        %v3946 = vmul.f32 %v3930, %v775
        %v3947 = vmul.f32 %v3931, %v777
        %v3948 = vmul.f32 %v3932, %v779
        %v3949 = vmul.f32 %v3933, %v781
        %v3950 = vmul.f32 %v3934, %v783
        %v3951 = vmul.f32 %v3935, %v785
        %v3952 = vmul.f32 %v3936, %v787
        %v3953 = vmul.f32 %v3937, %v789
        %v3954 = vmul.f32 %v3938, %v791
        %v3955 = vmul.f32 %v3939, %v793
        %v3956 = vmul.f32 %v3940, %v795
        %3973 = vrot.lane.b32.xlu0 %v3941, 32
        %v3974 = vpop.permute.xlu0 %3973
        %3975 = vrot.lane.b32.xlu0 %v3942, 32
        %v3976 = vpop.permute.xlu0 %3975
        %3977 = vrot.lane.b32.xlu0 %v3943, 32
        %v3978 = vpop.permute.xlu0 %3977
        %3979 = vrot.lane.b32.xlu0 %v3944, 32
        %v3980 = vpop.permute.xlu0 %3979
        %3981 = vrot.lane.b32.xlu0 %v3945, 32
        %v3982 = vpop.permute.xlu0 %3981
        %3983 = vrot.lane.b32.xlu0 %v3946, 32
        %v3984 = vpop.permute.xlu0 %3983
        %3985 = vrot.lane.b32.xlu0 %v3947, 32
        %v3986 = vpop.permute.xlu0 %3985
        %3987 = vrot.lane.b32.xlu0 %v3948, 32
        %v3988 = vpop.permute.xlu0 %3987
        %3989 = vrot.lane.b32.xlu0 %v3949, 32
        %v3990 = vpop.permute.xlu0 %3989
        %3991 = vrot.lane.b32.xlu0 %v3950, 32
        %v3992 = vpop.permute.xlu0 %3991
        %3993 = vrot.lane.b32.xlu0 %v3951, 32
        %v3994 = vpop.permute.xlu0 %3993
        %3995 = vrot.lane.b32.xlu0 %v3952, 32
        %v3996 = vpop.permute.xlu0 %3995
        %3997 = vrot.lane.b32.xlu0 %v3953, 32
        %v3998 = vpop.permute.xlu0 %3997
        %3999 = vrot.lane.b32.xlu0 %v3954, 32
        %v4000 = vpop.permute.xlu0 %3999
        %4001 = vrot.lane.b32.xlu0 %v3955, 32
        %v4002 = vpop.permute.xlu0 %4001
        %4003 = vrot.lane.b32.xlu0 %v3956, 32
        %v4004 = vpop.permute.xlu0 %4003
        %v4021 = vadd.f32 %v3765, %v3974
        %v4022 = vadd.f32 %v3766, %v3976
        %v4023 = vadd.f32 %v3767, %v3978
        %v4024 = vadd.f32 %v3768, %v3980
        %v4025 = vadd.f32 %v3769, %v3982
        %v4026 = vadd.f32 %v3770, %v3984
        %v4027 = vadd.f32 %v3771, %v3986
        %v4028 = vadd.f32 %v3772, %v3988
        %v4029 = vadd.f32 %v3773, %v3990
        %v4030 = vadd.f32 %v3774, %v3992
        %v4031 = vadd.f32 %v3775, %v3994
        %v4032 = vadd.f32 %v3776, %v3996
        %v4033 = vadd.f32 %v3777, %v3998
        %v4034 = vadd.f32 %v3778, %v4000
        %v4035 = vadd.f32 %v3779, %v4002
        %v4036 = vadd.f32 %v3780, %v4004
        %v4037 = vmul.f32 %v4021, %v1239
        %v4038 = vmul.f32 %v4022, %v1244
        %v4039 = vmul.f32 %v4023, %v1249
        %v4040 = vmul.f32 %v4024, %v1254
        %v4041 = vmul.f32 %v4025, %v1259
        %v4042 = vmul.f32 %v4026, %v1264
        %v4043 = vmul.f32 %v4027, %v1269
        %v4044 = vmul.f32 %v4028, %v1274
        %v4045 = vmul.f32 %v4029, %v1279
        %v4046 = vmul.f32 %v4030, %v1284
        %v4047 = vmul.f32 %v4031, %v1289
        %v4048 = vmul.f32 %v4032, %v1294
        %v4049 = vmul.f32 %v4033, %v1299
        %v4050 = vmul.f32 %v4034, %v1304
        %v4051 = vmul.f32 %v4035, %v1309
        %v4052 = vmul.f32 %v4036, %v1314
        %v4053 = vpack.c.bf16 %v4038, %v4037
        %v4054 = vpack.c.bf16 %v4040, %v4039
        %v4055 = vpack.c.bf16 %v4042, %v4041
        %v4056 = vpack.c.bf16 %v4044, %v4043
        %v4057 = vpack.c.bf16 %v4046, %v4045
        %v4058 = vpack.c.bf16 %v4048, %v4047
        %v4059 = vpack.c.bf16 %v4050, %v4049
        %v4060 = vpack.c.bf16 %v4052, %v4051
        %v4061 = vld [vmem:[%s368] sm:$0x1]
        %v4063 = vlaneseq
        %v4064 = vshrl.u32 %v4063, 7
        %v4065 = vsub.s32 0, %v4064
        %v4066 = vrot.slane %v4061, %v4065
        %4076 = vrot.lane.b32.xlu0 %v4053, 64
        %v4077 = vpop.permute.xlu0 %4076
        %4078 = vrot.lane.b32.xlu0 %v4054, 64
        %v4079 = vpop.permute.xlu0 %4078
        %4080 = vrot.lane.b32.xlu0 %v4055, 64
        %v4081 = vpop.permute.xlu0 %4080
        %4082 = vrot.lane.b32.xlu0 %v4056, 64
        %v4083 = vpop.permute.xlu0 %4082
        %4084 = vrot.lane.b32.xlu0 %v4057, 64
        %v4085 = vpop.permute.xlu0 %4084
        %4086 = vrot.lane.b32.xlu0 %v4058, 64
        %v4087 = vpop.permute.xlu0 %4086
        %4088 = vrot.lane.b32.xlu0 %v4059, 64
        %v4089 = vpop.permute.xlu0 %4088
        %4090 = vrot.lane.b32.xlu0 %v4060, 64
        %v4091 = vpop.permute.xlu0 %4090
        %v4093 = vsel %vm1371, %v3757, 0
        %v4096 = vsel %vm1371, %v3758, 0
        %v4099 = vsel %vm1371, %v3759, 0
        %v4102 = vsel %vm1371, %v3760, 0
        %v4105 = vsel %vm1371, %v3761, 0
        %v4108 = vsel %vm1371, %v3762, 0
        %v4111 = vsel %vm1371, %v3763, 0
        %v4114 = vsel %vm1371, %v3764, 0
        %v4117 = vsel %vm1371, %v4077, 0
        %v4120 = vsel %vm1371, %v4079, 0
        %v4123 = vsel %vm1371, %v4081, 0
        %v4126 = vsel %vm1371, %v4083, 0
        %v4129 = vsel %vm1371, %v4085, 0
        %v4132 = vsel %vm1371, %v4087, 0
        %v4135 = vsel %vm1371, %v4089, 0
        %v4138 = vsel %vm1371, %v4091, 0
        %4140 = vmatprep.subr.bf16.mxu0 0
        %4141 = vmatpush1.bf16.xpose.msra.mxu0 %v4117
        %4142 = vmatprep.subr.bf16.mxu0 0
        %4143 = vmatpush1.bf16.xpose.msra.mxu0 %v4120
        %4144 = vmatprep.subr.bf16.mxu0 0
        %4145 = vmatpush1.bf16.xpose.msra.mxu0 %v4123
        %4146 = vmatprep.subr.bf16.mxu0 0
        %4147 = vmatpush1.bf16.xpose.msra.mxu0 %v4126
        %4148 = vmatprep.subr.bf16.mxu0 0
        %4149 = vmatpush1.bf16.xpose.msra.mxu0 %v4129
        %4150 = vmatprep.subr.bf16.mxu0 0
        %4151 = vmatpush1.bf16.xpose.msra.mxu0 %v4132
        %4152 = vmatprep.subr.bf16.mxu0 0
        %4153 = vmatpush1.bf16.xpose.msra.mxu0 %v4135
        %4154 = vmatprep.subr.bf16.mxu0 0
        %4155 = vmatpush1.bf16.xpose.msra.mxu0 %v4138
        %4156 = vmatprep.subr.bf16.mxu0 0
        %4157 = vmatpush1.bf16.xpose.msra.mxu0 0
        %4158 = vmatprep.subr.bf16.mxu0 0
        %4159 = vmatpush1.bf16.xpose.msra.mxu0 0
        %4160 = vmatprep.subr.bf16.mxu0 0
        %4161 = vmatpush1.bf16.xpose.msra.mxu0 0
        %4162 = vmatprep.subr.bf16.mxu0 0
        %4163 = vmatpush1.bf16.xpose.msra.mxu0 0
        %4164 = vmatprep.subr.bf16.mxu0 0
        %4165 = vmatpush1.bf16.xpose.msra.mxu0 0
        %4166 = vmatprep.subr.bf16.mxu0 0
        %4167 = vmatpush1.bf16.xpose.msra.mxu0 0
        %4168 = vmatprep.subr.bf16.mxu0 0
        %4169 = vmatpush1.bf16.xpose.msra.mxu0 0
        %4170 = vmatprep.subr.bf16.mxu0 0
        %4171 = vmatpush1.bf16.xpose.msra.mxu0 0
        %4172 = vmatprep.mubr.bf16.mxu0 0
        %4173 = vmatmul.mubr.bf16.gmra.mrb[0].mxu0 %v4093
        %v4174 = vpop.f32.mrb[0].mxu0
        %v4175 = vadd.f32 %v4066, %v4174
        %v4176 = vpop.f32.mrb[0].mxu0
        %v4177 = vpop.f32.mrb[0].mxu0
        %v4178 = vadd.f32 %v4066, %v4177
        %v4179 = vpop.f32.mrb[0].mxu0
        %4180 = vmatprep.mubr.bf16.mxu0 0
        %4181 = vmatmul.mubr.bf16.gmra.mrb[0].mxu0 %v4096
        %v4182 = vpop.f32.mrb[0].mxu0
        %v4183 = vadd.f32 %v4066, %v4182
        %v4184 = vpop.f32.mrb[0].mxu0
        %v4185 = vpop.f32.mrb[0].mxu0
        %v4186 = vadd.f32 %v4066, %v4185
        %v4187 = vpop.f32.mrb[0].mxu0
        %4188 = vmatprep.mubr.bf16.mxu0 0
        %4189 = vmatmul.mubr.bf16.gmra.mrb[0].mxu0 %v4099
        %v4190 = vpop.f32.mrb[0].mxu0
        %v4191 = vadd.f32 %v4066, %v4190
        %v4192 = vpop.f32.mrb[0].mxu0
        %v4193 = vpop.f32.mrb[0].mxu0
        %v4194 = vadd.f32 %v4066, %v4193
        %v4195 = vpop.f32.mrb[0].mxu0
        %4196 = vmatprep.mubr.bf16.mxu0 0
        %4197 = vmatmul.mubr.bf16.gmra.mrb[0].mxu0 %v4102
        %v4198 = vpop.f32.mrb[0].mxu0
        %v4199 = vadd.f32 %v4066, %v4198
        %v4200 = vpop.f32.mrb[0].mxu0
        %v4201 = vpop.f32.mrb[0].mxu0
        %v4202 = vadd.f32 %v4066, %v4201
        %v4203 = vpop.f32.mrb[0].mxu0
        %4204 = vmatprep.mubr.bf16.mxu0 0
        %4205 = vmatmul.mubr.bf16.gmra.mrb[0].mxu0 %v4105
        %v4206 = vpop.f32.mrb[0].mxu0
        %v4207 = vadd.f32 %v4066, %v4206
        %v4208 = vpop.f32.mrb[0].mxu0
        %v4209 = vpop.f32.mrb[0].mxu0
        %v4210 = vadd.f32 %v4066, %v4209
        %v4211 = vpop.f32.mrb[0].mxu0
        %4212 = vmatprep.mubr.bf16.mxu0 0
        %4213 = vmatmul.mubr.bf16.gmra.mrb[0].mxu0 %v4108
        %v4214 = vpop.f32.mrb[0].mxu0
        %v4215 = vadd.f32 %v4066, %v4214
        %v4216 = vpop.f32.mrb[0].mxu0
        %v4217 = vpop.f32.mrb[0].mxu0
        %v4218 = vadd.f32 %v4066, %v4217
        %v4219 = vpop.f32.mrb[0].mxu0
        %4220 = vmatprep.mubr.bf16.mxu0 0
        %4221 = vmatmul.mubr.bf16.gmra.mrb[0].mxu0 %v4111
        %v4222 = vpop.f32.mrb[0].mxu0
        %v4223 = vadd.f32 %v4066, %v4222
        %v4224 = vpop.f32.mrb[0].mxu0
        %v4225 = vpop.f32.mrb[0].mxu0
        %v4226 = vadd.f32 %v4066, %v4225
        %v4227 = vpop.f32.mrb[0].mxu0
        %4228 = vmatprep.mubr.bf16.mxu0 0
        %4229 = vmatmul.mubr.bf16.gmra.mrb[0].mxu0 %v4114
        %v4230 = vpop.f32.mrb[0].mxu0
        %v4231 = vadd.f32 %v4066, %v4230
        %v4232 = vpop.f32.mrb[0].mxu0
        %v4233 = vpop.f32.mrb[0].mxu0
        %v4234 = vadd.f32 %v4066, %v4233
        %v4235 = vpop.f32.mrb[0].mxu0
        %4236 = vdwg.mxu0
        %v4237 = vld [vmem:[%s6] sm:$0xff]
        %v4238 = vld [vmem:[%s6 + $0x8] sm:$0xff]
        %v4239 = vld [vmem:[%s6 + $0x10] sm:$0xff]
        %v4240 = vld [vmem:[%s6 + $0x18] sm:$0xff]
        %v4241 = vld [vmem:[%s6 + $0x20] sm:$0xff]
        %v4242 = vld [vmem:[%s6 + $0x28] sm:$0xff]
        %v4243 = vld [vmem:[%s6 + $0x30] sm:$0xff]
        %v4244 = vld [vmem:[%s6 + $0x38] sm:$0xff]
        %v4245 = vld [vmem:[%s6 + $0x40] sm:$0xff]
        %v4246 = vld [vmem:[%s6 + $0x48] sm:$0xff]
        %v4247 = vld [vmem:[%s6 + $0x50] sm:$0xff]
        %v4248 = vld [vmem:[%s6 + $0x58] sm:$0xff]
        %v4249 = vld [vmem:[%s6 + $0x60] sm:$0xff]
        %v4250 = vld [vmem:[%s6 + $0x68] sm:$0xff]
        %v4251 = vld [vmem:[%s6 + $0x70] sm:$0xff]
        %v4252 = vld [vmem:[%s6 + $0x78] sm:$0xff]
        %v4253 = vsub.f32 %v4175, %v4237
        %v4254 = vsub.f32 %v4178, %v4238
        %v4255 = vsub.f32 %v4183, %v4239
        %v4256 = vsub.f32 %v4186, %v4240
        %v4257 = vsub.f32 %v4191, %v4241
        %v4258 = vsub.f32 %v4194, %v4242
        %v4259 = vsub.f32 %v4199, %v4243
        %v4260 = vsub.f32 %v4202, %v4244
        %v4261 = vsub.f32 %v4207, %v4245
        %v4262 = vsub.f32 %v4210, %v4246
        %v4263 = vsub.f32 %v4215, %v4247
        %v4264 = vsub.f32 %v4218, %v4248
        %v4265 = vsub.f32 %v4223, %v4249
        %v4266 = vsub.f32 %v4226, %v4250
        %v4267 = vsub.f32 %v4231, %v4251
        %v4268 = vsub.f32 %v4234, %v4252
        %s4269 = scalar_lea.vmem %s343, 384 [#allocation2]
        %4270 = vst [vmem:[%s4269] sm:$0xff] %v4253
        %4271 = vst [vmem:[%s4269 + $0x8] sm:$0xff] %v4254
        %4272 = vst [vmem:[%s4269 + $0x10] sm:$0xff] %v4255
        %4273 = vst [vmem:[%s4269 + $0x18] sm:$0xff] %v4256
        %4274 = vst [vmem:[%s4269 + $0x20] sm:$0xff] %v4257
        %4275 = vst [vmem:[%s4269 + $0x28] sm:$0xff] %v4258
        %4276 = vst [vmem:[%s4269 + $0x30] sm:$0xff] %v4259
        %4277 = vst [vmem:[%s4269 + $0x38] sm:$0xff] %v4260
        %4278 = vst [vmem:[%s4269 + $0x40] sm:$0xff] %v4261
        %4279 = vst [vmem:[%s4269 + $0x48] sm:$0xff] %v4262
        %4280 = vst [vmem:[%s4269 + $0x50] sm:$0xff] %v4263
        %4281 = vst [vmem:[%s4269 + $0x58] sm:$0xff] %v4264
        %4282 = vst [vmem:[%s4269 + $0x60] sm:$0xff] %v4265
        %4283 = vst [vmem:[%s4269 + $0x68] sm:$0xff] %v4266
        %4284 = vst [vmem:[%s4269 + $0x70] sm:$0xff] %v4267
        %4285 = vst [vmem:[%s4269 + $0x78] sm:$0xff] %v4268
        %s4286 = sand.u32 %s215, 1
        %s4287 = scalar_lea.sflag [#allocation3], %s4286
        %s4288 = sand.u32 %s215, 1
        %s4289 = smul.addr %s4288, 512
        %s4290 = scalar_lea.vmem [#allocation2], %s4289
        // Predicated region
        $region49: #{raw_global_pointer.1} parent=47 // pred_check
          %p4291 = pneg %p225
        $region50: #{raw_global_pointer.1} parent=47 // pred_check_branch
          %4293 = sbr.rel (%p4291) target = $region52
        $region51: #{raw_global_pointer.1} parent=47 // pred_region
          %s4294 = smul.u32 4, %s26
          %s4296 = ssub.s32 8192, 8192
          %4297 = vsyncadd %s4287, %s4296
          %s4298 = smul.addr %s4294, 16
          %s4299 = smul.addr %s25, 64
          %s4300 = sadd.s32 %s4298, %s4299
          %s4301 = smul.addr %s4300, 128
          %s4302 = scalar_lea.hbm %s7, %s4301
          %s4303 = sshll.u32 %s4290, 4
          %s4304 = int_to_ptr.vmem [resolvable:$true] %s4303
          %4309 = dma.vmem_to_hbm [thread:$0]  %s4304, 8192, %s4302, %s4287, 128, 128, 8
        $region52: #{raw_global_pointer.1} parent=47 // pred_fallthru
          _
      $region48: #{raw_global_pointer.1} parent=5 // pred_fallthru
        _
      %p4310 = scmp.le.s32.totalorder 2, %s16
      // Predicated region
      $region53: #{raw_global_pointer.1} parent=5 // pred_check
        %p4311 = pneg %p4310
      $region54: #{raw_global_pointer.1} parent=5 // pred_check_branch
        %4313 = sbr.rel (%p4311) target = $region56
      $region55: #{raw_global_pointer.1} parent=5 // pred_region
        %s4314 = ssub.s32 %s16, 2
        // Predicated region
        $region57: #{raw_global_pointer.1} parent=55 // pred_check
          %p4315 = pneg %p231
        $region58: #{raw_global_pointer.1} parent=55 // pred_check_branch
          %4317 = sbr.rel (%p4315) target = $region60
        $region59: #{raw_global_pointer.1} parent=55 // pred_region
          %s4318 = sand.u32 %s216, 1
          %s4319 = scalar_lea.sflag [#allocation3], %s4318
          %s4320 = sand.u32 %s216, 1
          %s4321 = smul.addr %s4320, 512
          %s4322 = scalar_lea.vmem [#allocation2], %s4321
          %4323 = dma.done %s4319, 8192
        $region60: #{raw_global_pointer.1} parent=55 // pred_fallthru
          _
      $region56: #{raw_global_pointer.1} parent=5 // pred_fallthru
        _
    $region6: #{raw_global_pointer.1} parent=1 // loop_footer
      %s20 = sadd.s32 1, %s16
    $region7: #{raw_global_pointer.1} parent=1 // loop_footer_branch
      %15 = sbr.rel target = $region3
    $region8: #{raw_global_pointer.1} parent=1 // loop_exit
      _
    %4324 = vsyncpa [#allocation3], 1
    %s4325 = scalar_lea.sflag [#allocation3], 1
    %4326 = vsyncpa %s4325, 1

</llo_original>
